<compile_context>
chip_gen: v7x
topology: tpu7x:2x2x1
jax: 0.10.0
libtpu: 0.0.40
codegen_flags: <defaults>
</compile_context>

<pallas_src>
import jax
import jax.numpy as jnp
from jax.experimental import pallas as pl
from jax.experimental.pallas import tpu as pltpu

EPS = 1e-5
VMEM_LIMIT = 32 * 1024 * 1024   # explicit scoped-VMEM limit (safe on v5e/v6e/v7x)


def _im2col_3x3(a_f32, H, W, C):
    """a_f32: (H+2, W+2, C) f32 with zeros at the 1-px frame.

    Returns the (H*W, 9*C) patch matrix with (ky, kx, cin) minor ordering, matching a
    (3, 3, Cin, Cout) weight reshaped to (9*Cin, Cout)."""
    taps = []
    for ky in range(3):
        for kx in range(3):
            taps.append(a_f32[ky:ky + H, kx:kx + W, :])
    return jnp.concatenate(taps, axis=-1).reshape(H * W, 9 * C)


def conv3x3_stats_kernel(xp_ref, w_ref, y_ref, st_ref):
    """y = conv3x3(x) for one image; emit per-image per-channel sum / sumsq of y."""
    H, W, C = y_ref.shape
    xp = xp_ref[...].astype(jnp.float32)                          # (H+2, W+2, Cin)
    patches = _im2col_3x3(xp, H, W, C).astype(jnp.bfloat16)       # (H*W, 9*Cin) bf16
    y = jnp.dot(patches, w_ref[...], preferred_element_type=jnp.float32)  # (H*W, Cout) f32
    st_ref[0:1, :] = jnp.sum(y, axis=0, keepdims=True)
    st_ref[1:2, :] = jnp.sum(y * y, axis=0, keepdims=True)
    y_ref[...] = y.reshape(H, W, C)


def bn_relu_conv3x3_stats_kernel(yp_ref, s_ref, b_ref, w_ref, y_ref, st_ref):
    """a = relu(bn1(y1)) with the halo masked to zero, y2 = conv3x3(a); BN2 stats."""
    H, W, C = y_ref.shape
    H2, W2, _ = yp_ref.shape
    a = jnp.maximum(yp_ref[...] * s_ref[...] + b_ref[...], 0.0)   # f32 BN1 apply + ReLU
    # Zero the 1-px frame so it acts as conv2's zero padding (BN of the padded zeros
    # would otherwise leak a nonzero bias into the halo).
    row = jax.lax.broadcasted_iota(jnp.int32, (H2, W2, C), 0)
    col = jax.lax.broadcasted_iota(jnp.int32, (H2, W2, C), 1)
    interior = (row >= 1) & (row <= H) & (col >= 1) & (col <= W)
    a = jnp.where(interior, a, 0.0)
    patches = _im2col_3x3(a, H, W, C).astype(jnp.bfloat16)
    y = jnp.dot(patches, w_ref[...], preferred_element_type=jnp.float32)
    st_ref[0:1, :] = jnp.sum(y, axis=0, keepdims=True)
    st_ref[1:2, :] = jnp.sum(y * y, axis=0, keepdims=True)
    y_ref[...] = y.reshape(H, W, C)


def bn_add_relu_kernel(y_ref, x_ref, s_ref, b_ref, o_ref):
    """out = relu(bn2(y2) + identity) on a lane-dense (rows, W*C) layout."""
    o_ref[...] = jnp.maximum(y_ref[...] * s_ref[...] + b_ref[...] + x_ref[...], 0.0)


@jax.jit
def basic_block_pallas(x_nchw, w1_oihw, g1, b1, w2_oihw, g2, b2):
    N, C, H, W = x_nchw.shape
    count = N * H * W

    x_nhwc = jnp.transpose(x_nchw, (0, 2, 3, 1)).astype(jnp.float32)          # NHWC
    xp_bf16 = jnp.pad(x_nhwc, ((0, 0), (1, 1), (1, 1), (0, 0))).astype(jnp.bfloat16)

    def im2col_weight(w_oihw):
        # OIHW -> (kh, kw, Cin, Cout) -> (9*Cin, Cout); bf16 MXU operand.
        return jnp.transpose(w_oihw, (2, 3, 1, 0)).reshape(9 * C, C).astype(jnp.bfloat16)

    w1 = im2col_weight(w1_oihw)
    w2 = im2col_weight(w2_oihw)

    conv_params = pltpu.CompilerParams(
        dimension_semantics=("parallel",), vmem_limit_bytes=VMEM_LIMIT)

    def conv_cost(in_bytes_per_elem):
        return pl.CostEstimate(
            flops=2 * count * (9 * C) * C,
            transcendentals=0,
            bytes_accessed=(N * (H + 2) * (W + 2) * C * in_bytes_per_elem
                            + 9 * C * C * 2 + count * C * 4 + N * 2 * C * 4))

    img_in_spec = pl.BlockSpec((None, H + 2, W + 2, C), lambda n: (n, 0, 0, 0))
    img_out_spec = pl.BlockSpec((None, H, W, C), lambda n: (n, 0, 0, 0))
    st_out_spec = pl.BlockSpec((None, 2, C), lambda n: (n, 0, 0))
    w_spec = pl.BlockSpec((9 * C, C), lambda n: (0, 0))
    ch_spec = pl.BlockSpec((1, 1, C), lambda n: (0, 0, 0))

    # ---- stage 1: conv1 + per-image BN1 partial stats ----
    y1, st1 = pl.pallas_call(
        conv3x3_stats_kernel,
        grid=(N,),
        in_specs=[img_in_spec, w_spec],
        out_specs=(img_out_spec, st_out_spec),
        out_shape=(jax.ShapeDtypeStruct((N, H, W, C), jnp.float32),
                   jax.ShapeDtypeStruct((N, 2, C), jnp.float32)),
        compiler_params=conv_params,
        cost_estimate=conv_cost(2),
    )(xp_bf16, w1)

    def bn_scale_bias(st, gamma, beta):
        s = jnp.sum(st, axis=0)                      # (2, C) global sums over all images
        mean = s[0] / count
        var = s[1] / count - mean * mean             # biased variance (training-mode BN)
        scale = gamma.astype(jnp.float32) * jax.lax.rsqrt(var + EPS)
        bias = beta.astype(jnp.float32) - mean * scale
        return scale, bias

    scale1, bias1 = bn_scale_bias(st1, g1, b1)

    # ---- stage 2: BN1-apply + ReLU + conv2 + per-image BN2 partial stats ----
    y1p = jnp.pad(y1, ((0, 0), (1, 1), (1, 1), (0, 0)))
    y2, st2 = pl.pallas_call(
        bn_relu_conv3x3_stats_kernel,
        grid=(N,),
        in_specs=[img_in_spec, ch_spec, ch_spec, w_spec],
        out_specs=(img_out_spec, st_out_spec),
        out_shape=(jax.ShapeDtypeStruct((N, H, W, C), jnp.float32),
                   jax.ShapeDtypeStruct((N, 2, C), jnp.float32)),
        compiler_params=conv_params,
        cost_estimate=conv_cost(4),
    )(y1p, scale1.reshape(1, 1, C), bias1.reshape(1, 1, C), w2)

    scale2, bias2 = bn_scale_bias(st2, g2, b2)

    # ---- stage 3: BN2-apply + residual add + ReLU (lane-dense layout) ----
    rows, lane = N * H, W * C
    tr = rows
    for cand in (512, 256, 128, 64, 32, 16, 8):      # largest row block dividing rows
        if rows % cand == 0:
            tr = cand
            break
    row_spec = pl.BlockSpec((tr, lane), lambda r: (r, 0))
    vec_spec = pl.BlockSpec((1, lane), lambda r: (0, 0))
    out_flat = pl.pallas_call(
        bn_add_relu_kernel,
        grid=(rows // tr,),
        in_specs=[row_spec, row_spec, vec_spec, vec_spec],
        out_specs=row_spec,
        out_shape=jax.ShapeDtypeStruct((rows, lane), jnp.float32),
        compiler_params=pltpu.CompilerParams(
            dimension_semantics=("parallel",), vmem_limit_bytes=VMEM_LIMIT),
        cost_estimate=pl.CostEstimate(flops=3 * count * C, transcendentals=0,
                                      bytes_accessed=3 * count * C * 4),
    )(y2.reshape(rows, lane), x_nhwc.reshape(rows, lane),
      jnp.tile(scale2, W).reshape(1, lane), jnp.tile(bias2, W).reshape(1, lane))

    return jnp.transpose(out_flat.reshape(N, H, W, C), (0, 3, 1, 2))          # NCHW


def basic_block_reference(x, w1, g1, b1, w2, g2, b2):
    """Pure-JAX reference mirroring the PyTorch forward (training-mode BN).

    Conv operands are cast to bf16 with f32 accumulation, matching the kernel's
    mixed-precision MXU path; all BN / elementwise math stays in f32."""
    def conv(t, w):
        return jax.lax.conv_general_dilated(
            t.astype(jnp.bfloat16), w.astype(jnp.bfloat16),
            window_strides=(1, 1), padding=((1, 1), (1, 1)),
            dimension_numbers=('NCHW', 'OIHW', 'NCHW'),
            preferred_element_type=jnp.float32)

    def bn(t, g, b):
        m = t.mean(axis=(0, 2, 3), keepdims=True)
        v = ((t - m) ** 2).mean(axis=(0, 2, 3), keepdims=True)
        return ((t - m) * jax.lax.rsqrt(v + EPS) * g.reshape(1, -1, 1, 1)
                + b.reshape(1, -1, 1, 1))

    out = jnp.maximum(bn(conv(x, w1), g1, b1), 0.0)
    out = bn(conv(out, w2), g2, b2)
    return jnp.maximum(out + x, 0.0)


if __name__ == "__main__":
    # Small shapes: batch=2, channels=4, spatial=16x16 (inplanes == planes, stride=1,
    # downsample=None -> identity residual).
    N, C, H, W = 2, 4, 16, 16
    key = jax.random.PRNGKey(0)
    kx, kw1, kw2, kg1, kb1, kg2, kb2 = jax.random.split(key, 7)

    x = jax.random.normal(kx, (N, C, H, W), jnp.float32)
    fan_in = C * 3 * 3
    w1 = jax.random.normal(kw1, (C, C, 3, 3), jnp.float32) / jnp.sqrt(fan_in)   # OIHW
    w2 = jax.random.normal(kw2, (C, C, 3, 3), jnp.float32) / jnp.sqrt(fan_in)   # OIHW
    g1 = 1.0 + 0.1 * jax.random.normal(kg1, (C,), jnp.float32)
    b1 = 0.1 * jax.random.normal(kb1, (C,), jnp.float32)
    g2 = 1.0 + 0.1 * jax.random.normal(kg2, (C,), jnp.float32)
    b2 = 0.1 * jax.random.normal(kb2, (C,), jnp.float32)

    out = jax.block_until_ready(basic_block_pallas(x, w1, g1, b1, w2, g2, b2))
    assert out.shape == (N, C, H, W)

    ref = basic_block_reference(x, w1, g1, b1, w2, g2, b2)
    err = float(jnp.max(jnp.abs(out - ref)))
    assert jnp.allclose(out, ref, atol=2e-4, rtol=2e-4), err

    print("KERNEL_OK")
</pallas_src>

<mosaic_0001>
module attributes {stable_mosaic.version = 11 : i64} {
  func.func @conv3x3_stats_kernel(%arg0: i32, %arg1: memref<1x18x18x4xbf16, #tpu.memory_space<vmem>>, %arg2: memref<36x4xbf16, #tpu.memory_space<vmem>>, %arg3: memref<1x16x16x4xf32, #tpu.memory_space<vmem>>, %arg4: memref<1x2x4xf32, #tpu.memory_space<vmem>>) attributes {dimension_semantics = [#tpu.dimension_semantics<parallel>], iteration_bounds = array<i64: 2>, scalar_prefetch = 0 : i64, scratch_operands = 0 : i64, tpu.core_type = #tpu.core_type<tc>, window_params = [{transform_indices = @transform_0, window_bounds = array<i64: 1, 18, 18, 4>}, {pipeline_mode = #tpu.pipeline_mode<synchronous>, transform_indices = @transform_1, window_bounds = array<i64: 36, 4>}, {transform_indices = @transform_2, window_bounds = array<i64: 1, 16, 16, 4>}, {transform_indices = @transform_3, window_bounds = array<i64: 1, 2, 4>}]} {
    %c0 = arith.constant 0 : index
    %c0_0 = arith.constant 0 : index
    %c0_1 = arith.constant 0 : index
    %c0_2 = arith.constant 0 : index
    %0 = vector.load %arg1[%c0, %c0_0, %c0_1, %c0_2] : memref<1x18x18x4xbf16, #tpu.memory_space<vmem>>, vector<1x18x18x4xbf16>
    %1 = vector.shape_cast %0 : vector<1x18x18x4xbf16> to vector<18x18x4xbf16>
    %2 = arith.extf %1 : vector<18x18x4xbf16> to vector<18x18x4xf32>
    %3 = vector.extract_strided_slice %2 {offsets = [0, 0, 0], sizes = [16, 16, 4], strides = [1, 1, 1]} : vector<18x18x4xf32> to vector<16x16x4xf32>
    %4 = vector.extract_strided_slice %2 {offsets = [0, 1, 0], sizes = [16, 16, 4], strides = [1, 1, 1]} : vector<18x18x4xf32> to vector<16x16x4xf32>
    %5 = vector.extract_strided_slice %2 {offsets = [0, 2, 0], sizes = [16, 16, 4], strides = [1, 1, 1]} : vector<18x18x4xf32> to vector<16x16x4xf32>
    %6 = vector.extract_strided_slice %2 {offsets = [1, 0, 0], sizes = [16, 16, 4], strides = [1, 1, 1]} : vector<18x18x4xf32> to vector<16x16x4xf32>
    %7 = vector.extract_strided_slice %2 {offsets = [1, 1, 0], sizes = [16, 16, 4], strides = [1, 1, 1]} : vector<18x18x4xf32> to vector<16x16x4xf32>
    %8 = vector.extract_strided_slice %2 {offsets = [1, 2, 0], sizes = [16, 16, 4], strides = [1, 1, 1]} : vector<18x18x4xf32> to vector<16x16x4xf32>
    %9 = vector.extract_strided_slice %2 {offsets = [2, 0, 0], sizes = [16, 16, 4], strides = [1, 1, 1]} : vector<18x18x4xf32> to vector<16x16x4xf32>
    %10 = vector.extract_strided_slice %2 {offsets = [2, 1, 0], sizes = [16, 16, 4], strides = [1, 1, 1]} : vector<18x18x4xf32> to vector<16x16x4xf32>
    %11 = vector.extract_strided_slice %2 {offsets = [2, 2, 0], sizes = [16, 16, 4], strides = [1, 1, 1]} : vector<18x18x4xf32> to vector<16x16x4xf32>
    %12 = tpu.concatenate %3, %4, %5, %6, %7, %8, %9, %10, %11 in 2 : vector<16x16x4xf32>, vector<16x16x4xf32>, vector<16x16x4xf32>, vector<16x16x4xf32>, vector<16x16x4xf32>, vector<16x16x4xf32>, vector<16x16x4xf32>, vector<16x16x4xf32>, vector<16x16x4xf32> -> vector<16x16x36xf32>
    %13 = vector.shape_cast %12 : vector<16x16x36xf32> to vector<256x36xf32>
    %14 = arith.truncf %13 : vector<256x36xf32> to vector<256x36xbf16>
    %c0_3 = arith.constant 0 : index
    %c0_4 = arith.constant 0 : index
    %15 = vector.load %arg2[%c0_3, %c0_4] : memref<36x4xbf16, #tpu.memory_space<vmem>>, vector<36x4xbf16>
    %cst = arith.constant dense<0.000000e+00> : vector<256x4xf32>
    %16 = tpu.matmul %14, %15, %cst {dimension_numbers = #tpu.dot_dimension_numbers<[1], [0], [0], [1], [0, 0, 1, 1], [], []>} : vector<256x36xbf16>, vector<36x4xbf16>, vector<256x4xf32> -> vector<256x4xf32>
    %cst_5 = arith.constant dense<0.000000e+00> : vector<4xf32>
    %17 = vector.multi_reduction <add>, %16, %cst_5 [0] : vector<256x4xf32> to vector<4xf32>
    %18 = vector.shape_cast %17 : vector<4xf32> to vector<1x4xf32>
    %c0_6 = arith.constant 0 : index
    %c0_7 = arith.constant 0 : index
    %c0_8 = arith.constant 0 : index
    %19 = vector.load %arg4[%c0_6, %c0_7, %c0_8] : memref<1x2x4xf32, #tpu.memory_space<vmem>>, vector<1x1x4xf32>
    %20 = vector.shape_cast %19 : vector<1x1x4xf32> to vector<1x4xf32>
    %21 = vector.shape_cast %18 : vector<1x4xf32> to vector<1x1x4xf32>
    tpu.vector_store %arg4[%c0_6, %c0_7, %c0_8], %21 {strides = array<i32>} : memref<1x2x4xf32, #tpu.memory_space<vmem>>, vector<1x1x4xf32>,
    %22 = arith.mulf %16, %16 : vector<256x4xf32>
    %cst_9 = arith.constant dense<0.000000e+00> : vector<4xf32>
    %23 = vector.multi_reduction <add>, %22, %cst_9 [0] : vector<256x4xf32> to vector<4xf32>
    %24 = vector.shape_cast %23 : vector<4xf32> to vector<1x4xf32>
    %c0_10 = arith.constant 0 : index
    %c1 = arith.constant 1 : index
    %c0_11 = arith.constant 0 : index
    %25 = vector.load %arg4[%c0_10, %c1, %c0_11] : memref<1x2x4xf32, #tpu.memory_space<vmem>>, vector<1x1x4xf32>
    %26 = vector.shape_cast %25 : vector<1x1x4xf32> to vector<1x4xf32>
    %27 = vector.shape_cast %24 : vector<1x4xf32> to vector<1x1x4xf32>
    tpu.vector_store %arg4[%c0_10, %c1, %c0_11], %27 {strides = array<i32>} : memref<1x2x4xf32, #tpu.memory_space<vmem>>, vector<1x1x4xf32>,
    %28 = vector.shape_cast %16 : vector<256x4xf32> to vector<16x16x4xf32>
    %c0_12 = arith.constant 0 : index
    %c0_13 = arith.constant 0 : index
    %c0_14 = arith.constant 0 : index
    %c0_15 = arith.constant 0 : index
    %29 = vector.load %arg3[%c0_12, %c0_13, %c0_14, %c0_15] : memref<1x16x16x4xf32, #tpu.memory_space<vmem>>, vector<1x16x16x4xf32>
    %30 = vector.shape_cast %29 : vector<1x16x16x4xf32> to vector<16x16x4xf32>
    %31 = vector.shape_cast %28 : vector<16x16x4xf32> to vector<1x16x16x4xf32>
    tpu.vector_store %arg3[%c0_12, %c0_13, %c0_14, %c0_15], %31 {strides = array<i32>} : memref<1x16x16x4xf32, #tpu.memory_space<vmem>>, vector<1x16x16x4xf32>,
    return
  }
  func.func @transform_0(%arg0: i32) -> (i32, i32, i32, i32) {
    %c0_i32 = arith.constant 0 : i32
    %c0_i32_0 = arith.constant 0 : i32
    %c0_i32_1 = arith.constant 0 : i32
    %c0_i32_2 = arith.constant 0 : i32
    return %arg0, %c0_i32, %c0_i32_0, %c0_i32_1 : i32, i32, i32, i32
  }
  func.func @transform_1(%arg0: i32) -> (i32, i32) {
    %c0_i32 = arith.constant 0 : i32
    %c0_i32_0 = arith.constant 0 : i32
    %c0_i32_1 = arith.constant 0 : i32
    return %c0_i32, %c0_i32_0 : i32, i32
  }
  func.func @transform_2(%arg0: i32) -> (i32, i32, i32, i32) {
    %c0_i32 = arith.constant 0 : i32
    %c0_i32_0 = arith.constant 0 : i32
    %c0_i32_1 = arith.constant 0 : i32
    %c0_i32_2 = arith.constant 0 : i32
    return %arg0, %c0_i32, %c0_i32_0, %c0_i32_1 : i32, i32, i32, i32
  }
  func.func @transform_3(%arg0: i32) -> (i32, i32, i32) {
    %c0_i32 = arith.constant 0 : i32
    %c0_i32_0 = arith.constant 0 : i32
    %c0_i32_1 = arith.constant 0 : i32
    return %arg0, %c0_i32, %c0_i32_0 : i32, i32, i32
  }
}

module attributes {stable_mosaic.version = 11 : i64} {
  func.func @bn_relu_conv3x3_stats_kernel(%arg0: i32, %arg1: memref<1x18x18x4xf32, #tpu.memory_space<vmem>>, %arg2: memref<1x1x4xf32, #tpu.memory_space<vmem>>, %arg3: memref<1x1x4xf32, #tpu.memory_space<vmem>>, %arg4: memref<36x4xbf16, #tpu.memory_space<vmem>>, %arg5: memref<1x16x16x4xf32, #tpu.memory_space<vmem>>, %arg6: memref<1x2x4xf32, #tpu.memory_space<vmem>>) attributes {dimension_semantics = [#tpu.dimension_semantics<parallel>], iteration_bounds = array<i64: 2>, scalar_prefetch = 0 : i64, scratch_operands = 0 : i64, tpu.core_type = #tpu.core_type<tc>, window_params = [{transform_indices = @transform_0, window_bounds = array<i64: 1, 18, 18, 4>}, {pipeline_mode = #tpu.pipeline_mode<synchronous>, transform_indices = @transform_1, window_bounds = array<i64: 1, 1, 4>}, {pipeline_mode = #tpu.pipeline_mode<synchronous>, transform_indices = @transform_2, window_bounds = array<i64: 1, 1, 4>}, {pipeline_mode = #tpu.pipeline_mode<synchronous>, transform_indices = @transform_3, window_bounds = array<i64: 36, 4>}, {transform_indices = @transform_4, window_bounds = array<i64: 1, 16, 16, 4>}, {transform_indices = @transform_5, window_bounds = array<i64: 1, 2, 4>}]} {
    %c0 = arith.constant 0 : index
    %c0_0 = arith.constant 0 : index
    %c0_1 = arith.constant 0 : index
    %c0_2 = arith.constant 0 : index
    %0 = vector.load %arg1[%c0, %c0_0, %c0_1, %c0_2] : memref<1x18x18x4xf32, #tpu.memory_space<vmem>>, vector<1x18x18x4xf32>
    %1 = vector.shape_cast %0 : vector<1x18x18x4xf32> to vector<18x18x4xf32>
    %c0_3 = arith.constant 0 : index
    %c0_4 = arith.constant 0 : index
    %c0_5 = arith.constant 0 : index
    %2 = vector.load %arg2[%c0_3, %c0_4, %c0_5] : memref<1x1x4xf32, #tpu.memory_space<vmem>>, vector<1x1x4xf32>
    %3 = vector.broadcast %2 : vector<1x1x4xf32> to vector<18x18x4xf32>
    %4 = arith.mulf %1, %3 : vector<18x18x4xf32>
    %c0_6 = arith.constant 0 : index
    %c0_7 = arith.constant 0 : index
    %c0_8 = arith.constant 0 : index
    %5 = vector.load %arg3[%c0_6, %c0_7, %c0_8] : memref<1x1x4xf32, #tpu.memory_space<vmem>>, vector<1x1x4xf32>
    %6 = vector.broadcast %5 : vector<1x1x4xf32> to vector<18x18x4xf32>
    %7 = arith.addf %4, %6 : vector<18x18x4xf32>
    %cst = arith.constant 0.000000e+00 : f32
    %8 = vector.broadcast %cst : f32 to vector<18x18x4xf32>
    %9 = arith.maximumf %7, %8 : vector<18x18x4xf32>
    %10 = tpu.iota {dimensions = array<i32: 0>} : vector<18x18x4xi32>
    %11 = tpu.iota {dimensions = array<i32: 1>} : vector<18x18x4xi32>
    %c1_i32 = arith.constant 1 : i32
    %12 = vector.broadcast %c1_i32 : i32 to vector<18x18x4xi32>
    %13 = arith.cmpi sge, %10, %12 : vector<18x18x4xi32>
    %c16_i32 = arith.constant 16 : i32
    %14 = vector.broadcast %c16_i32 : i32 to vector<18x18x4xi32>
    %15 = arith.cmpi sle, %10, %14 : vector<18x18x4xi32>
    %16 = arith.andi %13, %15 : vector<18x18x4xi1>
    %c1_i32_9 = arith.constant 1 : i32
    %17 = vector.broadcast %c1_i32_9 : i32 to vector<18x18x4xi32>
    %18 = arith.cmpi sge, %11, %17 : vector<18x18x4xi32>
    %19 = arith.andi %16, %18 : vector<18x18x4xi1>
    %c16_i32_10 = arith.constant 16 : i32
    %20 = vector.broadcast %c16_i32_10 : i32 to vector<18x18x4xi32>
    %21 = arith.cmpi sle, %11, %20 : vector<18x18x4xi32>
    %22 = arith.andi %19, %21 : vector<18x18x4xi1>
    %cst_11 = arith.constant 0.000000e+00 : f32
    %23 = vector.broadcast %cst_11 : f32 to vector<18x18x4xf32>
    %24 = arith.select %22, %9, %23 : vector<18x18x4xi1>, vector<18x18x4xf32>
    %25 = vector.extract_strided_slice %24 {offsets = [0, 0, 0], sizes = [16, 16, 4], strides = [1, 1, 1]} : vector<18x18x4xf32> to vector<16x16x4xf32>
    %26 = vector.extract_strided_slice %24 {offsets = [0, 1, 0], sizes = [16, 16, 4], strides = [1, 1, 1]} : vector<18x18x4xf32> to vector<16x16x4xf32>
    %27 = vector.extract_strided_slice %24 {offsets = [0, 2, 0], sizes = [16, 16, 4], strides = [1, 1, 1]} : vector<18x18x4xf32> to vector<16x16x4xf32>
    %28 = vector.extract_strided_slice %24 {offsets = [1, 0, 0], sizes = [16, 16, 4], strides = [1, 1, 1]} : vector<18x18x4xf32> to vector<16x16x4xf32>
    %29 = vector.extract_strided_slice %24 {offsets = [1, 1, 0], sizes = [16, 16, 4], strides = [1, 1, 1]} : vector<18x18x4xf32> to vector<16x16x4xf32>
    %30 = vector.extract_strided_slice %24 {offsets = [1, 2, 0], sizes = [16, 16, 4], strides = [1, 1, 1]} : vector<18x18x4xf32> to vector<16x16x4xf32>
    %31 = vector.extract_strided_slice %24 {offsets = [2, 0, 0], sizes = [16, 16, 4], strides = [1, 1, 1]} : vector<18x18x4xf32> to vector<16x16x4xf32>
    %32 = vector.extract_strided_slice %24 {offsets = [2, 1, 0], sizes = [16, 16, 4], strides = [1, 1, 1]} : vector<18x18x4xf32> to vector<16x16x4xf32>
    %33 = vector.extract_strided_slice %24 {offsets = [2, 2, 0], sizes = [16, 16, 4], strides = [1, 1, 1]} : vector<18x18x4xf32> to vector<16x16x4xf32>
    %34 = tpu.concatenate %25, %26, %27, %28, %29, %30, %31, %32, %33 in 2 : vector<16x16x4xf32>, vector<16x16x4xf32>, vector<16x16x4xf32>, vector<16x16x4xf32>, vector<16x16x4xf32>, vector<16x16x4xf32>, vector<16x16x4xf32>, vector<16x16x4xf32>, vector<16x16x4xf32> -> vector<16x16x36xf32>
    %35 = vector.shape_cast %34 : vector<16x16x36xf32> to vector<256x36xf32>
    %36 = arith.truncf %35 : vector<256x36xf32> to vector<256x36xbf16>
    %c0_12 = arith.constant 0 : index
    %c0_13 = arith.constant 0 : index
    %37 = vector.load %arg4[%c0_12, %c0_13] : memref<36x4xbf16, #tpu.memory_space<vmem>>, vector<36x4xbf16>
    %cst_14 = arith.constant dense<0.000000e+00> : vector<256x4xf32>
    %38 = tpu.matmul %36, %37, %cst_14 {dimension_numbers = #tpu.dot_dimension_numbers<[1], [0], [0], [1], [0, 0, 1, 1], [], []>} : vector<256x36xbf16>, vector<36x4xbf16>, vector<256x4xf32> -> vector<256x4xf32>
    %cst_15 = arith.constant dense<0.000000e+00> : vector<4xf32>
    %39 = vector.multi_reduction <add>, %38, %cst_15 [0] : vector<256x4xf32> to vector<4xf32>
    %40 = vector.shape_cast %39 : vector<4xf32> to vector<1x4xf32>
    %c0_16 = arith.constant 0 : index
    %c0_17 = arith.constant 0 : index
    %c0_18 = arith.constant 0 : index
    %41 = vector.load %arg6[%c0_16, %c0_17, %c0_18] : memref<1x2x4xf32, #tpu.memory_space<vmem>>, vector<1x1x4xf32>
    %42 = vector.shape_cast %41 : vector<1x1x4xf32> to vector<1x4xf32>
    %43 = vector.shape_cast %40 : vector<1x4xf32> to vector<1x1x4xf32>
    tpu.vector_store %arg6[%c0_16, %c0_17, %c0_18], %43 {strides = array<i32>} : memref<1x2x4xf32, #tpu.memory_space<vmem>>, vector<1x1x4xf32>,
    %44 = arith.mulf %38, %38 : vector<256x4xf32>
    %cst_19 = arith.constant dense<0.000000e+00> : vector<4xf32>
    %45 = vector.multi_reduction <add>, %44, %cst_19 [0] : vector<256x4xf32> to vector<4xf32>
    %46 = vector.shape_cast %45 : vector<4xf32> to vector<1x4xf32>
    %c0_20 = arith.constant 0 : index
    %c1 = arith.constant 1 : index
    %c0_21 = arith.constant 0 : index
    %47 = vector.load %arg6[%c0_20, %c1, %c0_21] : memref<1x2x4xf32, #tpu.memory_space<vmem>>, vector<1x1x4xf32>
    %48 = vector.shape_cast %47 : vector<1x1x4xf32> to vector<1x4xf32>
    %49 = vector.shape_cast %46 : vector<1x4xf32> to vector<1x1x4xf32>
    tpu.vector_store %arg6[%c0_20, %c1, %c0_21], %49 {strides = array<i32>} : memref<1x2x4xf32, #tpu.memory_space<vmem>>, vector<1x1x4xf32>,
    %50 = vector.shape_cast %38 : vector<256x4xf32> to vector<16x16x4xf32>
    %c0_22 = arith.constant 0 : index
    %c0_23 = arith.constant 0 : index
    %c0_24 = arith.constant 0 : index
    %c0_25 = arith.constant 0 : index
    %51 = vector.load %arg5[%c0_22, %c0_23, %c0_24, %c0_25] : memref<1x16x16x4xf32, #tpu.memory_space<vmem>>, vector<1x16x16x4xf32>
    %52 = vector.shape_cast %51 : vector<1x16x16x4xf32> to vector<16x16x4xf32>
    %53 = vector.shape_cast %50 : vector<16x16x4xf32> to vector<1x16x16x4xf32>
    tpu.vector_store %arg5[%c0_22, %c0_23, %c0_24, %c0_25], %53 {strides = array<i32>} : memref<1x16x16x4xf32, #tpu.memory_space<vmem>>, vector<1x16x16x4xf32>,
    return
  }
  func.func @transform_0(%arg0: i32) -> (i32, i32, i32, i32) {
    %c0_i32 = arith.constant 0 : i32
    %c0_i32_0 = arith.constant 0 : i32
    %c0_i32_1 = arith.constant 0 : i32
    %c0_i32_2 = arith.constant 0 : i32
    return %arg0, %c0_i32, %c0_i32_0, %c0_i32_1 : i32, i32, i32, i32
  }
  func.func @transform_1(%arg0: i32) -> (i32, i32, i32) {
    %c0_i32 = arith.constant 0 : i32
    %c0_i32_0 = arith.constant 0 : i32
    %c0_i32_1 = arith.constant 0 : i32
    %c0_i32_2 = arith.constant 0 : i32
    return %c0_i32, %c0_i32_0, %c0_i32_1 : i32, i32, i32
  }
  func.func @transform_2(%arg0: i32) -> (i32, i32, i32) {
    %c0_i32 = arith.constant 0 : i32
    %c0_i32_0 = arith.constant 0 : i32
    %c0_i32_1 = arith.constant 0 : i32
    %c0_i32_2 = arith.constant 0 : i32
    return %c0_i32, %c0_i32_0, %c0_i32_1 : i32, i32, i32
  }
  func.func @transform_3(%arg0: i32) -> (i32, i32) {
    %c0_i32 = arith.constant 0 : i32
    %c0_i32_0 = arith.constant 0 : i32
    %c0_i32_1 = arith.constant 0 : i32
    return %c0_i32, %c0_i32_0 : i32, i32
  }
  func.func @transform_4(%arg0: i32) -> (i32, i32, i32, i32) {
    %c0_i32 = arith.constant 0 : i32
    %c0_i32_0 = arith.constant 0 : i32
    %c0_i32_1 = arith.constant 0 : i32
    %c0_i32_2 = arith.constant 0 : i32
    return %arg0, %c0_i32, %c0_i32_0, %c0_i32_1 : i32, i32, i32, i32
  }
  func.func @transform_5(%arg0: i32) -> (i32, i32, i32) {
    %c0_i32 = arith.constant 0 : i32
    %c0_i32_0 = arith.constant 0 : i32
    %c0_i32_1 = arith.constant 0 : i32
    return %arg0, %c0_i32, %c0_i32_0 : i32, i32, i32
  }
}

module attributes {stable_mosaic.version = 11 : i64} {
  func.func @bn_add_relu_kernel(%arg0: i32, %arg1: memref<32x64xf32, #tpu.memory_space<vmem>>, %arg2: memref<32x64xf32, #tpu.memory_space<vmem>>, %arg3: memref<1x64xf32, #tpu.memory_space<vmem>>, %arg4: memref<1x64xf32, #tpu.memory_space<vmem>>, %arg5: memref<32x64xf32, #tpu.memory_space<vmem>>) attributes {dimension_semantics = [#tpu.dimension_semantics<parallel>], iteration_bounds = array<i64: 1>, scalar_prefetch = 0 : i64, scratch_operands = 0 : i64, tpu.core_type = #tpu.core_type<tc>, window_params = [{transform_indices = @transform_0, window_bounds = array<i64: 32, 64>}, {transform_indices = @transform_1, window_bounds = array<i64: 32, 64>}, {pipeline_mode = #tpu.pipeline_mode<synchronous>, transform_indices = @transform_2, window_bounds = array<i64: 1, 64>}, {pipeline_mode = #tpu.pipeline_mode<synchronous>, transform_indices = @transform_3, window_bounds = array<i64: 1, 64>}, {transform_indices = @transform_4, window_bounds = array<i64: 32, 64>}]} {
    %c0 = arith.constant 0 : index
    %c0_0 = arith.constant 0 : index
    %0 = vector.load %arg1[%c0, %c0_0] : memref<32x64xf32, #tpu.memory_space<vmem>>, vector<32x64xf32>
    %c0_1 = arith.constant 0 : index
    %c0_2 = arith.constant 0 : index
    %1 = vector.load %arg3[%c0_1, %c0_2] : memref<1x64xf32, #tpu.memory_space<vmem>>, vector<1x64xf32>
    %2 = vector.broadcast %1 : vector<1x64xf32> to vector<32x64xf32>
    %3 = arith.mulf %0, %2 : vector<32x64xf32>
    %c0_3 = arith.constant 0 : index
    %c0_4 = arith.constant 0 : index
    %4 = vector.load %arg4[%c0_3, %c0_4] : memref<1x64xf32, #tpu.memory_space<vmem>>, vector<1x64xf32>
    %5 = vector.broadcast %4 : vector<1x64xf32> to vector<32x64xf32>
    %6 = arith.addf %3, %5 : vector<32x64xf32>
    %c0_5 = arith.constant 0 : index
    %c0_6 = arith.constant 0 : index
    %7 = vector.load %arg2[%c0_5, %c0_6] : memref<32x64xf32, #tpu.memory_space<vmem>>, vector<32x64xf32>
    %8 = arith.addf %6, %7 : vector<32x64xf32>
    %cst = arith.constant 0.000000e+00 : f32
    %9 = vector.broadcast %cst : f32 to vector<32x64xf32>
    %10 = arith.maximumf %8, %9 : vector<32x64xf32>
    %c0_7 = arith.constant 0 : index
    %c0_8 = arith.constant 0 : index
    %11 = vector.load %arg5[%c0_7, %c0_8] : memref<32x64xf32, #tpu.memory_space<vmem>>, vector<32x64xf32>
    tpu.vector_store %arg5[%c0_7, %c0_8], %10 {strides = array<i32>} : memref<32x64xf32, #tpu.memory_space<vmem>>, vector<32x64xf32>,
    return
  }
  func.func @transform_0(%arg0: i32) -> (i32, i32) {
    %c0_i32 = arith.constant 0 : i32
    %c0_i32_0 = arith.constant 0 : i32
    return %arg0, %c0_i32 : i32, i32
  }
  func.func @transform_1(%arg0: i32) -> (i32, i32) {
    %c0_i32 = arith.constant 0 : i32
    %c0_i32_0 = arith.constant 0 : i32
    return %arg0, %c0_i32 : i32, i32
  }
  func.func @transform_2(%arg0: i32) -> (i32, i32) {
    %c0_i32 = arith.constant 0 : i32
    %c0_i32_0 = arith.constant 0 : i32
    %c0_i32_1 = arith.constant 0 : i32
    return %c0_i32, %c0_i32_0 : i32, i32
  }
  func.func @transform_3(%arg0: i32) -> (i32, i32) {
    %c0_i32 = arith.constant 0 : i32
    %c0_i32_0 = arith.constant 0 : i32
    %c0_i32_1 = arith.constant 0 : i32
    return %c0_i32, %c0_i32_0 : i32, i32
  }
  func.func @transform_4(%arg0: i32) -> (i32, i32) {
    %c0_i32 = arith.constant 0 : i32
    %c0_i32_0 = arith.constant 0 : i32
    return %arg0, %c0_i32 : i32, i32
  }
}

</mosaic_0001>

<llo_original>
// kernel: tile.13
$region0: #{tile.13}
  #allocation0 [shape = 's32[1]{0}', space=sflag, size = 0x4, scoped, tag = 'scoped memory for tile.13']
  %s0 = inlined_call_operand.vmem [shape: f32[4], index: 0, kind: input, shape index: {}]
  %s1 = inlined_call_operand.vmem [shape: f32[16,4], index: 1, kind: output, shape index: {}]
  // Predicated region
  $region2: #{tile.13} parent=0 // pred_check
    _
  $region3: #{tile.13} parent=0 // pred_check_branch
    %3 = sbr.rel (0) target = $region5
  $region4: #{tile.13} parent=0 // pred_region
    _
  $region5: #{tile.13} parent=0 // pred_fallthru
    _
  %v4 = vld [vmem:[%s0] ss:$0 sm:$0xff]
  %5 = vst [vmem:[%s1] sm:$0xff] %v4
  %s6 = scalar_lea.vmem %s1, 8
  %7 = vst [vmem:[%s6] sm:$0xff] %v4

// kernel: tile.14
$region0: #{tile.14}
  %s0 = inlined_call_operand.vmem [shape: f32[16,4], index: 0, kind: input, shape index: {}]
  %s1 = inlined_call_operand.vmem [shape: f32[1,64], index: 1, kind: output, shape index: {}]
  $region1: #{tile.14} parent=0
    #allocation0 [shape = 'u8[4096]{0}', space=vmem, size = 0x1000, scoped, tag = 'scoped mem for output reshape']
    %v2 = vld [vmem:[%s0] sm:$0x1]
    %vm3 = vcmask 31744
    %4 = vst.msk [vmem:[#allocation0] sm:$0x1] %vm3, %v2
    %s5 = scalar_lea.vmem %s0, 15
    %v6 = vld [vmem:[%s5] sm:$0x1]
    %7 = vrot.lane.b32.xlu0 %v6, 60
    %v8 = vpop.permute.xlu0 %7
    %vm9 = vcmask 523744
    %10 = vst.msk [vmem:[#allocation0] sm:$0x1] %vm9, %v8
    %s11 = scalar_lea.vmem %s0, 14
    %v12 = vld [vmem:[%s11] sm:$0x1]
    %13 = vrot.lane.b32.xlu0 %v12, 56
    %v14 = vpop.permute.xlu0 %13
    %vm15 = vcmask 490944
    %16 = vst.msk [vmem:[#allocation0] sm:$0x1] %vm15, %v14
    %s17 = scalar_lea.vmem %s0, 13
    %v18 = vld [vmem:[%s17] sm:$0x1]
    %19 = vrot.lane.b32.xlu0 %v18, 52
    %v20 = vpop.permute.xlu0 %19
    %vm21 = vcmask 458144
    %22 = vst.msk [vmem:[#allocation0] sm:$0x1] %vm21, %v20
    %s23 = scalar_lea.vmem %s0, 12
    %v24 = vld [vmem:[%s23] sm:$0x1]
    %25 = vrot.lane.b32.xlu0 %v24, 48
    %v26 = vpop.permute.xlu0 %25
    %vm27 = vcmask 425344
    %28 = vst.msk [vmem:[#allocation0] sm:$0x1] %vm27, %v26
    %s29 = scalar_lea.vmem %s0, 11
    %v30 = vld [vmem:[%s29] sm:$0x1]
    %31 = vrot.lane.b32.xlu0 %v30, 44
    %v32 = vpop.permute.xlu0 %31
    %vm33 = vcmask 392544
    %34 = vst.msk [vmem:[#allocation0] sm:$0x1] %vm33, %v32
    %s35 = scalar_lea.vmem %s0, 10
    %v36 = vld [vmem:[%s35] sm:$0x1]
    %37 = vrot.lane.b32.xlu0 %v36, 40
    %v38 = vpop.permute.xlu0 %37
    %vm39 = vcmask 359744
    %40 = vst.msk [vmem:[#allocation0] sm:$0x1] %vm39, %v38
    %s41 = scalar_lea.vmem %s0, 9
    %v42 = vld [vmem:[%s41] sm:$0x1]
    %43 = vrot.lane.b32.xlu0 %v42, 36
    %v44 = vpop.permute.xlu0 %43
    %vm45 = vcmask 326944
    %46 = vst.msk [vmem:[#allocation0] sm:$0x1] %vm45, %v44
    %s47 = scalar_lea.vmem %s0, 8
    %v48 = vld [vmem:[%s47] sm:$0x1]
    %49 = vrot.lane.b32.xlu0 %v48, 32
    %v50 = vpop.permute.xlu0 %49
    %vm51 = vcmask 294144
    %52 = vst.msk [vmem:[#allocation0] sm:$0x1] %vm51, %v50
    %s53 = scalar_lea.vmem %s0, 7
    %v54 = vld [vmem:[%s53] sm:$0x1]
    %55 = vrot.lane.b32.xlu0 %v54, 28
    %v56 = vpop.permute.xlu0 %55
    %vm57 = vcmask 261344
    %58 = vst.msk [vmem:[#allocation0] sm:$0x1] %vm57, %v56
    %s59 = scalar_lea.vmem %s0, 6
    %v60 = vld [vmem:[%s59] sm:$0x1]
    %61 = vrot.lane.b32.xlu0 %v60, 24
    %v62 = vpop.permute.xlu0 %61
    %vm63 = vcmask 228544
    %64 = vst.msk [vmem:[#allocation0] sm:$0x1] %vm63, %v62
    %s65 = scalar_lea.vmem %s0, 5
    %v66 = vld [vmem:[%s65] sm:$0x1]
    %67 = vrot.lane.b32.xlu0 %v66, 20
    %v68 = vpop.permute.xlu0 %67
    %vm69 = vcmask 195744
    %70 = vst.msk [vmem:[#allocation0] sm:$0x1] %vm69, %v68
    %s71 = scalar_lea.vmem %s0, 4
    %v72 = vld [vmem:[%s71] sm:$0x1]
    %73 = vrot.lane.b32.xlu0 %v72, 16
    %v74 = vpop.permute.xlu0 %73
    %vm75 = vcmask 162944
    %76 = vst.msk [vmem:[#allocation0] sm:$0x1] %vm75, %v74
    %s77 = scalar_lea.vmem %s0, 3
    %v78 = vld [vmem:[%s77] sm:$0x1]
    %79 = vrot.lane.b32.xlu0 %v78, 12
    %v80 = vpop.permute.xlu0 %79
    %vm81 = vcmask 130144
    %82 = vst.msk [vmem:[#allocation0] sm:$0x1] %vm81, %v80
    %s83 = scalar_lea.vmem %s0, 2
    %v84 = vld [vmem:[%s83] sm:$0x1]
    %85 = vrot.lane.b32.xlu0 %v84, 8
    %v86 = vpop.permute.xlu0 %85
    %vm87 = vcmask 97344
    %88 = vst.msk [vmem:[#allocation0] sm:$0x1] %vm87, %v86
    %s89 = scalar_lea.vmem %s0, 1
    %v90 = vld [vmem:[%s89] sm:$0x1]
    %91 = vrot.lane.b32.xlu0 %v90, 4
    %v92 = vpop.permute.xlu0 %91
    %vm93 = vcmask 64544
    %94 = vst.msk [vmem:[#allocation0] sm:$0x1] %vm93, %v92
    %s96 = sshllo.u32 0, 1
    %v98 = vld [vmem:[#allocation0] sm:%s96]
    %s99 = sshllo.u32 0, 1
    %100 = vst [vmem:[%s1] sm:%s99] %v98

// kernel: basic_block_pallas.5
$region0: #{basic_block_pallas.5}
  #allocation0 [shape = 'u32[]', space=smem, size = 0x4, offset = 0x4, fixed_abs, tag = 'smem constant byte address 0x4 - core index']
  #allocation1 [shape = 'u32[144,128]{1,0:T(1,128)}', space=vmem, size = 0x12000, scoped, tag = 'internal scratch']
  %s0 = inlined_call_operand.vmem [shape: f32[32,64], index: 0, kind: input, shape index: {}]
  %s1 = inlined_call_operand.vmem [shape: f32[32,64], index: 1, kind: input, shape index: {}]
  %s2 = inlined_call_operand.vmem [shape: f32[1,64], index: 2, kind: input, shape index: {}]
  %s3 = inlined_call_operand.vmem [shape: f32[1,64], index: 3, kind: input, shape index: {}]
  %s4 = inlined_call_operand.vmem [shape: f32[32,64], index: 4, kind: output, shape index: {}]
  %s5 = sld [smem:[#allocation0]]
  $region26: #{basic_block_pallas.5} parent=0
    _
  %s7 = ssub.s32 1, %s5
  %s8 = scalar_select 0, %s7, %s5
  // Predicated region
  $region2: #{basic_block_pallas.5} parent=0 // pred_check
    _
  $region3: #{basic_block_pallas.5} parent=0 // pred_check_branch
    %10 = sbr.rel (0) target = $region5
  $region4: #{basic_block_pallas.5} parent=0 // pred_region
    _
  $region5: #{basic_block_pallas.5} parent=0 // pred_fallthru
    _
  // Predicated region
  $region6: #{basic_block_pallas.5} parent=0 // pred_check
    _
  $region7: #{basic_block_pallas.5} parent=0 // pred_check_branch
    %12 = sbr.rel (0) target = $region9
  $region8: #{basic_block_pallas.5} parent=0 // pred_region
    _
  $region9: #{basic_block_pallas.5} parent=0 // pred_fallthru
    _
  // Predicated region
  $region10: #{basic_block_pallas.5} parent=0 // pred_check
    _
  $region11: #{basic_block_pallas.5} parent=0 // pred_check_branch
    %14 = sbr.rel (0) target = $region13
  $region12: #{basic_block_pallas.5} parent=0 // pred_region
    _
  $region13: #{basic_block_pallas.5} parent=0 // pred_fallthru
    _
  // Predicated region
  $region14: #{basic_block_pallas.5} parent=0 // pred_check
    _
  $region15: #{basic_block_pallas.5} parent=0 // pred_check_branch
    %16 = sbr.rel (0) target = $region17
  $region16: #{basic_block_pallas.5} parent=0 // pred_region
    _
  $region17: #{basic_block_pallas.5} parent=0 // pred_fallthru
    _
  %v17 = vld [vmem:[%s0] sm:$0xff]
  %v18 = vld [vmem:[%s0 + $0x8] sm:$0xff]
  %v19 = vld [vmem:[%s0 + $0x10] sm:$0xff]
  %v20 = vld [vmem:[%s0 + $0x18] sm:$0xff]
  %v21 = vld [vmem:[%s2] sm:$0x1]
  %v23 = vlaneseq
  %v24 = vshrl.u32 %v23, 7
  %v25 = vsub.s32 0, %v24
  %v26 = vrot.slane %v21, %v25
  %v28 = vmul.f32 %v17, %v26
  %v29 = vmul.f32 %v18, %v26
  %v30 = vmul.f32 %v19, %v26
  %v31 = vmul.f32 %v20, %v26
  %v32 = vld [vmem:[%s3] sm:$0x1]
  %v34 = vlaneseq
  %v35 = vshrl.u32 %v34, 7
  %v36 = vsub.s32 0, %v35
  %v37 = vrot.slane %v32, %v36
  %v39 = vadd.f32 %v28, %v37
  %v40 = vadd.f32 %v29, %v37
  %v41 = vadd.f32 %v30, %v37
  %v42 = vadd.f32 %v31, %v37
  %v43 = vld [vmem:[%s1] sm:$0xff]
  %v44 = vld [vmem:[%s1 + $0x8] sm:$0xff]
  %v45 = vld [vmem:[%s1 + $0x10] sm:$0xff]
  %v46 = vld [vmem:[%s1 + $0x18] sm:$0xff]
  %v47 = vadd.f32 %v39, %v43
  %v48 = vadd.f32 %v40, %v44
  %v49 = vadd.f32 %v41, %v45
  %v50 = vadd.f32 %v42, %v46
  %v51 = vmax.f32 %v47, 0.0
  %v52 = vmax.f32 %v48, 0.0
  %v53 = vmax.f32 %v49, 0.0
  %v54 = vmax.f32 %v50, 0.0
  %vm55 = vcmask 523264
  %56 = vst.msk [vmem:[%s4] sm:$0xff] %vm55, %v51
  %57 = vst.msk [vmem:[%s4 + $0x8] sm:$0xff] %vm55, %v52
  %58 = vst.msk [vmem:[%s4 + $0x10] sm:$0xff] %vm55, %v53
  %59 = vst.msk [vmem:[%s4 + $0x18] sm:$0xff] %vm55, %v54
  // Predicated region
  $region18: #{basic_block_pallas.5} parent=0 // pred_check
    _
  $region19: #{basic_block_pallas.5} parent=0 // pred_check_branch
    %61 = sbr.rel (0) target = $region21
  $region20: #{basic_block_pallas.5} parent=0 // pred_region
    _
  $region21: #{basic_block_pallas.5} parent=0 // pred_fallthru
    _
  // Predicated region
  $region22: #{basic_block_pallas.5} parent=0 // pred_check
    _
  $region23: #{basic_block_pallas.5} parent=0 // pred_check_branch
    %63 = sbr.rel (0) target = $region25
  $region24: #{basic_block_pallas.5} parent=0 // pred_region
    _
  $region25: #{basic_block_pallas.5} parent=0 // pred_fallthru
    _

// kernel: basic_block_pallas.3
$region0: #{basic_block_pallas.3}
  #allocation0 [shape = 'u32[]', space=smem, size = 0x4, offset = 0x4, fixed_abs, tag = 'smem constant byte address 0x4 - core index']
  #allocation1 [shape = 'u32[144,128]{1,0:T(1,128)}', space=vmem, size = 0x12000, scoped, tag = 'internal scratch']
  %s0 = inlined_call_operand.vmem [shape: bf16[2,18,18,4], index: 0, kind: input, shape index: {}]
  %s1 = inlined_call_operand.vmem [shape: bf16[36,4], index: 1, kind: input, shape index: {}]
  %s2 = inlined_call_operand.vmem [shape: f32[2,16,16,4], index: 2, kind: output, shape index: {0}]
  %s3 = inlined_call_operand.vmem [shape: f32[2,2,4], index: 3, kind: output, shape index: {1}]
  %4 = xla_tuple %s2, %s3
  %s5 = sld [smem:[#allocation0]]
  $region49: #{basic_block_pallas.3} parent=0
    _
  %s7 = ssub.s32 1, %s5
  %s8 = scalar_select 0, %s7, %s5
  loop: start=0, step=1, limit=4
  $region2: #{basic_block_pallas.3} parent=0 // loop_pre_header
    _
  $region3: #{basic_block_pallas.3} parent=0 // loop_header
    %s10 = sphi 0, %s14
    %p11 = scmp.ge.s32.totalorder %s10, 4
    %s20 = sphi 0, %s22
    %s23 = sphi 0, %s20
    %s24 = sphi 0, %s23
    %s40 = sphi 0, %s24
    %s44 = sphi 0, %s44
    %s46 = sphi 0, %s44
    %s47 = sphi 0, %s46
    %s61 = sphi 0, %s47
    %s67 = sphi 0, %s69
    %s70 = sphi 0, %s67
    %s71 = sphi 0, %s70
    %s87 = sphi 0, %s71
    %s93 = sphi 0, %s95
    %s96 = sphi 0, %s93
    %s97 = sphi 0, %s96
    %s113 = sphi 0, %s97
  $region4: #{basic_block_pallas.3} parent=0 // loop_header_branch
    %13 = sbr.rel (%p11) target = $region8
  $region5: #{basic_block_pallas.3} parent=0 // loop_body
    %s15 = ssub.s32 %s10, 1
    %s16 = ssub.s32 %s10, 2
    %s17 = sadd.s32 %s10, 1
    %s18 = ssub.s32 %s10, %s17
    %p19 = scmp.eq.s32.totalorder %s18, 0
    %s21 = sadd.s32 %s20, 1
    %s22 = scalar_select %p19, %s20, %s21
    %p25 = pneg %p19
    %p26 = scmp.eq.s32.totalorder %s10, 1
    %p27 = por %p25, %p26
    %p28 = scmp.ne.s32.totalorder %s20, %s23
    %p29 = scmp.eq.s32.totalorder %s10, 0
    %p30 = por %p28, %p29
    %p31 = scmp.ne.s32.totalorder %s20, %s23
    %p32 = scmp.eq.s32.totalorder %s15, 1
    %p33 = por %p31, %p32
    %p34 = scmp.ne.s32.totalorder %s23, %s24
    %p35 = scmp.eq.s32.totalorder %s15, 0
    %p36 = por %p34, %p35
    %p37 = scmp.ne.s32.totalorder %s23, %s24
    %p38 = scmp.eq.s32.totalorder %s16, 1
    %p39 = por %p37, %p38
    %p41 = scmp.ne.s32.totalorder %s24, %s40
    %p42 = scmp.eq.s32.totalorder %s16, 0
    %p43 = por %p41, %p42
    %s45 = sadd.s32 %s44, 1
    %p48 = scmp.eq.s32.totalorder %s10, 1
    %p49 = scmp.ne.s32.totalorder %s44, %s46
    %p50 = scmp.eq.s32.totalorder %s10, 0
    %p51 = por %p49, %p50
    %p52 = scmp.ne.s32.totalorder %s44, %s46
    %p53 = scmp.eq.s32.totalorder %s15, 1
    %p54 = por %p52, %p53
    %p55 = scmp.ne.s32.totalorder %s46, %s47
    %p56 = scmp.eq.s32.totalorder %s15, 0
    %p57 = por %p55, %p56
    %p58 = scmp.ne.s32.totalorder %s46, %s47
    %p59 = scmp.eq.s32.totalorder %s16, 1
    %p60 = por %p58, %p59
    %p62 = scmp.ne.s32.totalorder %s47, %s61
    %p63 = scmp.eq.s32.totalorder %s16, 0
    %p64 = por %p62, %p63
    %s65 = ssub.s32 %s10, %s17
    %p66 = scmp.eq.s32.totalorder %s65, 0
    %s68 = sadd.s32 %s67, 1
    %s69 = scalar_select %p66, %s67, %s68
    %p72 = pneg %p66
    %p73 = scmp.eq.s32.totalorder %s10, 1
    %p74 = por %p72, %p73
    %p75 = scmp.ne.s32.totalorder %s67, %s70
    %p76 = scmp.eq.s32.totalorder %s10, 0
    %p77 = por %p75, %p76
    %p78 = scmp.ne.s32.totalorder %s67, %s70
    %p79 = scmp.eq.s32.totalorder %s15, 1
    %p80 = por %p78, %p79
    %p81 = scmp.ne.s32.totalorder %s70, %s71
    %p82 = scmp.eq.s32.totalorder %s15, 0
    %p83 = por %p81, %p82
    %p84 = scmp.ne.s32.totalorder %s70, %s71
    %p85 = scmp.eq.s32.totalorder %s16, 1
    %p86 = por %p84, %p85
    %p88 = scmp.ne.s32.totalorder %s71, %s87
    %p89 = scmp.eq.s32.totalorder %s16, 0
    %p90 = por %p88, %p89
    %s91 = ssub.s32 %s10, %s17
    %p92 = scmp.eq.s32.totalorder %s91, 0
    %s94 = sadd.s32 %s93, 1
    %s95 = scalar_select %p92, %s93, %s94
    %p98 = pneg %p92
    %p99 = scmp.eq.s32.totalorder %s10, 1
    %p100 = por %p98, %p99
    %p101 = scmp.ne.s32.totalorder %s93, %s96
    %p102 = scmp.eq.s32.totalorder %s10, 0
    %p103 = por %p101, %p102
    %p104 = scmp.ne.s32.totalorder %s93, %s96
    %p105 = scmp.eq.s32.totalorder %s15, 1
    %p106 = por %p104, %p105
    %p107 = scmp.ne.s32.totalorder %s96, %s97
    %p108 = scmp.eq.s32.totalorder %s15, 0
    %p109 = por %p107, %p108
    %p110 = scmp.ne.s32.totalorder %s96, %s97
    %p111 = scmp.eq.s32.totalorder %s16, 1
    %p112 = por %p110, %p111
    %p114 = scmp.ne.s32.totalorder %s97, %s113
    %p115 = scmp.eq.s32.totalorder %s16, 0
    %p116 = por %p114, %p115
    %p117 = scmp.le.s32.totalorder 1, %s10
    %p118 = scmp.lt.s32.totalorder %s10, 3
    %p119 = pnand %p117, %p118
    %p120 = pneg %p119
    // Predicated region
    $region9: #{basic_block_pallas.3} parent=5 // pred_check
      _
    $region10: #{basic_block_pallas.3} parent=5 // pred_check_branch
      %122 = sbr.rel (%p119) target = $region12
    $region11: #{basic_block_pallas.3} parent=5 // pred_region
      %s123 = ssub.s32 %s10, 1
      // Predicated region
      $region13: #{basic_block_pallas.3} parent=11 // pred_check
        %p124 = pneg %p57
      $region14: #{basic_block_pallas.3} parent=11 // pred_check_branch
        %126 = sbr.rel (%p124) target = $region16
      $region15: #{basic_block_pallas.3} parent=11 // pred_region
        _
      $region16: #{basic_block_pallas.3} parent=11 // pred_fallthru
        _
    $region12: #{basic_block_pallas.3} parent=5 // pred_fallthru
      _
    %p127 = scmp.lt.s32.totalorder %s10, 2
    // Predicated region
    $region17: #{basic_block_pallas.3} parent=5 // pred_check
      %p128 = pneg %p127
    $region18: #{basic_block_pallas.3} parent=5 // pred_check_branch
      %130 = sbr.rel (%p128) target = $region20
    $region19: #{basic_block_pallas.3} parent=5 // pred_region
      // Predicated region
      $region21: #{basic_block_pallas.3} parent=19 // pred_check
        %p131 = pneg %p30
      $region22: #{basic_block_pallas.3} parent=19 // pred_check_branch
        %133 = sbr.rel (%p131) target = $region24
      $region23: #{basic_block_pallas.3} parent=19 // pred_region
        %p134 = scmp.lt.s32.totalorder %s10, 1
        %s135 = scalar_select %p134, %s10, 1
        %s136 = smul.addr %s135, 54
        %s137 = smul.addr %s136, 4
        %s138 = scalar_lea.vmem %s0, %s137
      $region24: #{basic_block_pallas.3} parent=19 // pred_fallthru
        _
    $region20: #{basic_block_pallas.3} parent=5 // pred_fallthru
      _
    %p139 = scmp.le.s32.totalorder 1, %s10
    %p140 = scmp.lt.s32.totalorder %s10, 3
    %p141 = pnand %p139, %p140
    %p142 = pneg %p141
    // Predicated region
    $region25: #{basic_block_pallas.3} parent=5 // pred_check
      _
    $region26: #{basic_block_pallas.3} parent=5 // pred_check_branch
      %144 = sbr.rel (%p141) target = $region28
    $region27: #{basic_block_pallas.3} parent=5 // pred_region
      %s145 = ssub.s32 %s10, 1
      %p146 = scmp.lt.s32.totalorder %s15, 1
      %s147 = scalar_select %p146, %s15, 1
      %s148 = smul.addr %s147, 54
      %s149 = smul.addr %s148, 4
      %s150 = scalar_lea.vmem %s0, %s149
      %p151 = pneg %p36
      %p152 = pneg %p33
      %p153 = pneg %p57
      %p154 = pneg %p54
      %p155 = pneg %p83
      %p156 = pneg %p80
      %p157 = scmp.lt.s32.totalorder %s15, 1
      %s158 = scalar_select %p157, %s15, 1
      %s159 = smul.addr %s158, 32
      %s160 = smul.addr %s159, 8
      %s161 = scalar_lea.vmem %s2, %s160
      %p162 = pneg %p109
      %p163 = pneg %p106
      %p164 = scmp.lt.s32.totalorder %s15, 1
      %s165 = scalar_select %p164, %s15, 1
      %s166 = smul.addr %s165, 2
      %s167 = scalar_lea.vmem %s3, %s166
      %p168 = scmp.lt.s32.totalorder %s15, 1
      %s169 = scalar_select %p168, %s15, 1
      %s170 = smul.addr %s169, 54
      %s171 = smul.addr %s170, 4
      %s172 = scalar_lea.vmem %s0, %s171
      %p173 = scmp.lt.s32.totalorder %s15, 1
      %s174 = scalar_select %p173, %s15, 1
      %s175 = smul.addr %s174, 32
      %s176 = smul.addr %s175, 8
      %s177 = scalar_lea.vmem %s2, %s176
      %p178 = scmp.lt.s32.totalorder %s15, 1
      %s179 = scalar_select %p178, %s15, 1
      %s180 = smul.addr %s179, 2
      %s181 = scalar_lea.vmem %s3, %s180
      %v183 = vld [vmem:[%s172] sm:$0xf]
      %v184 = vld [vmem:[%s172 + $0x4] sm:$0xf]
      %v185 = vld [vmem:[%s172 + $0x8] sm:$0x1]
      %v186 = vld [vmem:[%s172 + $0xc] sm:$0xf]
      %v187 = vld [vmem:[%s172 + $0x10] sm:$0xf]
      %v188 = vld [vmem:[%s172 + $0x14] sm:$0x1]
      %v189 = vld [vmem:[%s172 + $0x18] sm:$0xf]
      %v190 = vld [vmem:[%s172 + $0x1c] sm:$0xf]
      %v191 = vld [vmem:[%s172 + $0x20] sm:$0x1]
      %v192 = vld [vmem:[%s172 + $0x24] sm:$0xf]
      %v193 = vld [vmem:[%s172 + $0x28] sm:$0xf]
      %v194 = vld [vmem:[%s172 + $0x2c] sm:$0x1]
      %v195 = vld [vmem:[%s172 + $0x30] sm:$0xf]
      %v196 = vld [vmem:[%s172 + $0x34] sm:$0xf]
      %v197 = vld [vmem:[%s172 + $0x38] sm:$0x1]
      %v198 = vld [vmem:[%s172 + $0x3c] sm:$0xf]
      %v199 = vld [vmem:[%s172 + $0x40] sm:$0xf]
      %v200 = vld [vmem:[%s172 + $0x44] sm:$0x1]
      %v201 = vld [vmem:[%s172 + $0x48] sm:$0xf]
      %v202 = vld [vmem:[%s172 + $0x4c] sm:$0xf]
      %v203 = vld [vmem:[%s172 + $0x50] sm:$0x1]
      %v204 = vld [vmem:[%s172 + $0x54] sm:$0xf]
      %v205 = vld [vmem:[%s172 + $0x58] sm:$0xf]
      %v206 = vld [vmem:[%s172 + $0x5c] sm:$0x1]
      %v207 = vld [vmem:[%s172 + $0x60] sm:$0xf]
      %v208 = vld [vmem:[%s172 + $0x64] sm:$0xf]
      %v209 = vld [vmem:[%s172 + $0x68] sm:$0x1]
      %v210 = vld [vmem:[%s172 + $0x6c] sm:$0xf]
      %v211 = vld [vmem:[%s172 + $0x70] sm:$0xf]
      %v212 = vld [vmem:[%s172 + $0x74] sm:$0x1]
      %v213 = vld [vmem:[%s172 + $0x78] sm:$0xf]
      %v214 = vld [vmem:[%s172 + $0x7c] sm:$0xf]
      %v215 = vld [vmem:[%s172 + $0x80] sm:$0x1]
      %v216 = vld [vmem:[%s172 + $0x84] sm:$0xf]
      %v217 = vld [vmem:[%s172 + $0x88] sm:$0xf]
      %v218 = vld [vmem:[%s172 + $0x8c] sm:$0x1]
      %v219 = vld [vmem:[%s172 + $0x90] sm:$0xf]
      %v220 = vld [vmem:[%s172 + $0x94] sm:$0xf]
      %v221 = vld [vmem:[%s172 + $0x98] sm:$0x1]
      %v222 = vld [vmem:[%s172 + $0x9c] sm:$0xf]
      %v223 = vld [vmem:[%s172 + $0xa0] sm:$0xf]
      %v224 = vld [vmem:[%s172 + $0xa4] sm:$0x1]
      %v225 = vld [vmem:[%s172 + $0xa8] sm:$0xf]
      %v226 = vld [vmem:[%s172 + $0xac] sm:$0xf]
      %v227 = vld [vmem:[%s172 + $0xb0] sm:$0x1]
      %v228 = vld [vmem:[%s172 + $0xb4] sm:$0xf]
      %v229 = vld [vmem:[%s172 + $0xb8] sm:$0xf]
      %v230 = vld [vmem:[%s172 + $0xbc] sm:$0x1]
      %v231 = vld [vmem:[%s172 + $0xc0] sm:$0xf]
      %v232 = vld [vmem:[%s172 + $0xc4] sm:$0xf]
      %v233 = vld [vmem:[%s172 + $0xc8] sm:$0x1]
      %v234 = vld [vmem:[%s172 + $0xcc] sm:$0xf]
      %v235 = vld [vmem:[%s172 + $0xd0] sm:$0xf]
      %v236 = vld [vmem:[%s172 + $0xd4] sm:$0x1]
      %v237 = vunpack.c.l.bf16 %v183
      %v238 = vunpack.c.l.bf16 %v184
      %v239 = vunpack.c.l.bf16 %v185
      %v240 = vunpack.c.l.bf16 %v186
      %v241 = vunpack.c.l.bf16 %v187
      %v242 = vunpack.c.l.bf16 %v188
      %v243 = vunpack.c.l.bf16 %v189
      %v244 = vunpack.c.l.bf16 %v190
      %v245 = vunpack.c.l.bf16 %v191
      %v246 = vunpack.c.l.bf16 %v192
      %v247 = vunpack.c.l.bf16 %v193
      %v248 = vunpack.c.l.bf16 %v194
      %v249 = vunpack.c.l.bf16 %v195
      %v250 = vunpack.c.l.bf16 %v196
      %v251 = vunpack.c.l.bf16 %v197
      %v252 = vunpack.c.l.bf16 %v198
      %v253 = vunpack.c.l.bf16 %v199
      %v254 = vunpack.c.l.bf16 %v200
      %v255 = vunpack.c.l.bf16 %v201
      %v256 = vunpack.c.l.bf16 %v202
      %v257 = vunpack.c.l.bf16 %v203
      %v258 = vunpack.c.l.bf16 %v204
      %v259 = vunpack.c.l.bf16 %v205
      %v260 = vunpack.c.l.bf16 %v206
      %v261 = vunpack.c.l.bf16 %v207
      %v262 = vunpack.c.l.bf16 %v208
      %v263 = vunpack.c.l.bf16 %v209
      %v264 = vunpack.c.l.bf16 %v210
      %v265 = vunpack.c.l.bf16 %v211
      %v266 = vunpack.c.l.bf16 %v212
      %v267 = vunpack.c.l.bf16 %v213
      %v268 = vunpack.c.l.bf16 %v214
      %v269 = vunpack.c.l.bf16 %v215
      %v270 = vunpack.c.l.bf16 %v216
      %v271 = vunpack.c.l.bf16 %v217
      %v272 = vunpack.c.l.bf16 %v218
      %v273 = vunpack.c.l.bf16 %v219
      %v274 = vunpack.c.l.bf16 %v220
      %v275 = vunpack.c.l.bf16 %v221
      %v276 = vunpack.c.l.bf16 %v222
      %v277 = vunpack.c.l.bf16 %v223
      %v278 = vunpack.c.l.bf16 %v224
      %v279 = vunpack.c.l.bf16 %v225
      %v280 = vunpack.c.l.bf16 %v226
      %v281 = vunpack.c.l.bf16 %v227
      %v282 = vunpack.c.l.bf16 %v228
      %v283 = vunpack.c.l.bf16 %v229
      %v284 = vunpack.c.l.bf16 %v230
      %v285 = vunpack.c.l.bf16 %v231
      %v286 = vunpack.c.l.bf16 %v232
      %v287 = vunpack.c.l.bf16 %v233
      %v288 = vunpack.c.l.bf16 %v234
      %v289 = vunpack.c.l.bf16 %v235
      %v290 = vunpack.c.l.bf16 %v236
      %vm339 = vcmask 1046528
      %v340 = vrot.slane %v237, 1
      %v341 = vrot.slane %v238, 1
      %v342 = vsel %vm339, %v340, %v341
      %v343 = vrot.slane %v239, 1
      %v344 = vsel %vm339, %v341, %v343
      %v345 = vrot.slane %v240, 1
      %v346 = vrot.slane %v241, 1
      %v347 = vsel %vm339, %v345, %v346
      %v348 = vrot.slane %v242, 1
      %v349 = vsel %vm339, %v346, %v348
      %v350 = vrot.slane %v243, 1
      %v351 = vrot.slane %v244, 1
      %v352 = vsel %vm339, %v350, %v351
      %v353 = vrot.slane %v245, 1
      %v354 = vsel %vm339, %v351, %v353
      %v355 = vrot.slane %v246, 1
      %v356 = vrot.slane %v247, 1
      %v357 = vsel %vm339, %v355, %v356
      %v358 = vrot.slane %v248, 1
      %v359 = vsel %vm339, %v356, %v358
      %v360 = vrot.slane %v249, 1
      %v361 = vrot.slane %v250, 1
      %v362 = vsel %vm339, %v360, %v361
      %v363 = vrot.slane %v251, 1
      %v364 = vsel %vm339, %v361, %v363
      %v365 = vrot.slane %v252, 1
      %v366 = vrot.slane %v253, 1
      %v367 = vsel %vm339, %v365, %v366
      %v368 = vrot.slane %v254, 1
      %v369 = vsel %vm339, %v366, %v368
      %v370 = vrot.slane %v255, 1
      %v371 = vrot.slane %v256, 1
      %v372 = vsel %vm339, %v370, %v371
      %v373 = vrot.slane %v257, 1
      %v374 = vsel %vm339, %v371, %v373
      %v375 = vrot.slane %v258, 1
      %v376 = vrot.slane %v259, 1
      %v377 = vsel %vm339, %v375, %v376
      %v378 = vrot.slane %v260, 1
      %v379 = vsel %vm339, %v376, %v378
      %v380 = vrot.slane %v261, 1
      %v381 = vrot.slane %v262, 1
      %v382 = vsel %vm339, %v380, %v381
      %v383 = vrot.slane %v263, 1
      %v384 = vsel %vm339, %v381, %v383
      %v385 = vrot.slane %v264, 1
      %v386 = vrot.slane %v265, 1
      %v387 = vsel %vm339, %v385, %v386
      %v388 = vrot.slane %v266, 1
      %v389 = vsel %vm339, %v386, %v388
      %v390 = vrot.slane %v267, 1
      %v391 = vrot.slane %v268, 1
      %v392 = vsel %vm339, %v390, %v391
      %v393 = vrot.slane %v269, 1
      %v394 = vsel %vm339, %v391, %v393
      %v395 = vrot.slane %v270, 1
      %v396 = vrot.slane %v271, 1
      %v397 = vsel %vm339, %v395, %v396
      %v398 = vrot.slane %v272, 1
      %v399 = vsel %vm339, %v396, %v398
      %v400 = vrot.slane %v273, 1
      %v401 = vrot.slane %v274, 1
      %v402 = vsel %vm339, %v400, %v401
      %v403 = vrot.slane %v275, 1
      %v404 = vsel %vm339, %v401, %v403
      %v405 = vrot.slane %v276, 1
      %v406 = vrot.slane %v277, 1
      %v407 = vsel %vm339, %v405, %v406
      %v408 = vrot.slane %v278, 1
      %v409 = vsel %vm339, %v406, %v408
      %v410 = vrot.slane %v279, 1
      %v411 = vrot.slane %v280, 1
      %v412 = vsel %vm339, %v410, %v411
      %v413 = vrot.slane %v281, 1
      %v414 = vsel %vm339, %v411, %v413
      %v415 = vrot.slane %v282, 1
      %v416 = vrot.slane %v283, 1
      %v417 = vsel %vm339, %v415, %v416
      %v418 = vrot.slane %v284, 1
      %v419 = vsel %vm339, %v416, %v418
      %420 = vrot.lane.b32.xlu0 %v342, 4
      %v421 = vpop.permute.xlu0 %420
      %422 = vrot.lane.b32.xlu0 %v344, 4
      %v423 = vpop.permute.xlu0 %422
      %424 = vrot.lane.b32.xlu0 %v347, 4
      %v425 = vpop.permute.xlu0 %424
      %426 = vrot.lane.b32.xlu0 %v349, 4
      %v427 = vpop.permute.xlu0 %426
      %428 = vrot.lane.b32.xlu0 %v352, 4
      %v429 = vpop.permute.xlu0 %428
      %430 = vrot.lane.b32.xlu0 %v354, 4
      %v431 = vpop.permute.xlu0 %430
      %432 = vrot.lane.b32.xlu0 %v357, 4
      %v433 = vpop.permute.xlu0 %432
      %434 = vrot.lane.b32.xlu0 %v359, 4
      %v435 = vpop.permute.xlu0 %434
      %436 = vrot.lane.b32.xlu0 %v362, 4
      %v437 = vpop.permute.xlu0 %436
      %438 = vrot.lane.b32.xlu0 %v364, 4
      %v439 = vpop.permute.xlu0 %438
      %440 = vrot.lane.b32.xlu0 %v367, 4
      %v441 = vpop.permute.xlu0 %440
      %442 = vrot.lane.b32.xlu0 %v369, 4
      %v443 = vpop.permute.xlu0 %442
      %444 = vrot.lane.b32.xlu0 %v372, 4
      %v445 = vpop.permute.xlu0 %444
      %446 = vrot.lane.b32.xlu0 %v374, 4
      %v447 = vpop.permute.xlu0 %446
      %448 = vrot.lane.b32.xlu0 %v377, 4
      %v449 = vpop.permute.xlu0 %448
      %450 = vrot.lane.b32.xlu0 %v379, 4
      %v451 = vpop.permute.xlu0 %450
      %452 = vrot.lane.b32.xlu0 %v382, 4
      %v453 = vpop.permute.xlu0 %452
      %454 = vrot.lane.b32.xlu0 %v384, 4
      %v455 = vpop.permute.xlu0 %454
      %456 = vrot.lane.b32.xlu0 %v387, 4
      %v457 = vpop.permute.xlu0 %456
      %458 = vrot.lane.b32.xlu0 %v389, 4
      %v459 = vpop.permute.xlu0 %458
      %460 = vrot.lane.b32.xlu0 %v392, 4
      %v461 = vpop.permute.xlu0 %460
      %462 = vrot.lane.b32.xlu0 %v394, 4
      %v463 = vpop.permute.xlu0 %462
      %464 = vrot.lane.b32.xlu0 %v397, 4
      %v465 = vpop.permute.xlu0 %464
      %466 = vrot.lane.b32.xlu0 %v399, 4
      %v467 = vpop.permute.xlu0 %466
      %468 = vrot.lane.b32.xlu0 %v402, 4
      %v469 = vpop.permute.xlu0 %468
      %470 = vrot.lane.b32.xlu0 %v404, 4
      %v471 = vpop.permute.xlu0 %470
      %472 = vrot.lane.b32.xlu0 %v407, 4
      %v473 = vpop.permute.xlu0 %472
      %474 = vrot.lane.b32.xlu0 %v409, 4
      %v475 = vpop.permute.xlu0 %474
      %476 = vrot.lane.b32.xlu0 %v412, 4
      %v477 = vpop.permute.xlu0 %476
      %478 = vrot.lane.b32.xlu0 %v414, 4
      %v479 = vpop.permute.xlu0 %478
      %480 = vrot.lane.b32.xlu0 %v417, 4
      %v481 = vpop.permute.xlu0 %480
      %482 = vrot.lane.b32.xlu0 %v419, 4
      %v483 = vpop.permute.xlu0 %482
      %vm516 = vcmask 1045504
      %v517 = vrot.slane %v237, 2
      %v518 = vrot.slane %v238, 2
      %v519 = vsel %vm516, %v517, %v518
      %v520 = vrot.slane %v239, 2
      %v521 = vsel %vm516, %v518, %v520
      %v522 = vrot.slane %v240, 2
      %v523 = vrot.slane %v241, 2
      %v524 = vsel %vm516, %v522, %v523
      %v525 = vrot.slane %v242, 2
      %v526 = vsel %vm516, %v523, %v525
      %v527 = vrot.slane %v243, 2
      %v528 = vrot.slane %v244, 2
      %v529 = vsel %vm516, %v527, %v528
      %v530 = vrot.slane %v245, 2
      %v531 = vsel %vm516, %v528, %v530
      %v532 = vrot.slane %v246, 2
      %v533 = vrot.slane %v247, 2
      %v534 = vsel %vm516, %v532, %v533
      %v535 = vrot.slane %v248, 2
      %v536 = vsel %vm516, %v533, %v535
      %v537 = vrot.slane %v249, 2
      %v538 = vrot.slane %v250, 2
      %v539 = vsel %vm516, %v537, %v538
      %v540 = vrot.slane %v251, 2
      %v541 = vsel %vm516, %v538, %v540
      %v542 = vrot.slane %v252, 2
      %v543 = vrot.slane %v253, 2
      %v544 = vsel %vm516, %v542, %v543
      %v545 = vrot.slane %v254, 2
      %v546 = vsel %vm516, %v543, %v545
      %v547 = vrot.slane %v255, 2
      %v548 = vrot.slane %v256, 2
      %v549 = vsel %vm516, %v547, %v548
      %v550 = vrot.slane %v257, 2
      %v551 = vsel %vm516, %v548, %v550
      %v552 = vrot.slane %v258, 2
      %v553 = vrot.slane %v259, 2
      %v554 = vsel %vm516, %v552, %v553
      %v555 = vrot.slane %v260, 2
      %v556 = vsel %vm516, %v553, %v555
      %v557 = vrot.slane %v261, 2
      %v558 = vrot.slane %v262, 2
      %v559 = vsel %vm516, %v557, %v558
      %v560 = vrot.slane %v263, 2
      %v561 = vsel %vm516, %v558, %v560
      %v562 = vrot.slane %v264, 2
      %v563 = vrot.slane %v265, 2
      %v564 = vsel %vm516, %v562, %v563
      %v565 = vrot.slane %v266, 2
      %v566 = vsel %vm516, %v563, %v565
      %v567 = vrot.slane %v267, 2
      %v568 = vrot.slane %v268, 2
      %v569 = vsel %vm516, %v567, %v568
      %v570 = vrot.slane %v269, 2
      %v571 = vsel %vm516, %v568, %v570
      %v572 = vrot.slane %v270, 2
      %v573 = vrot.slane %v271, 2
      %v574 = vsel %vm516, %v572, %v573
      %v575 = vrot.slane %v272, 2
      %v576 = vsel %vm516, %v573, %v575
      %v577 = vrot.slane %v273, 2
      %v578 = vrot.slane %v274, 2
      %v579 = vsel %vm516, %v577, %v578
      %v580 = vrot.slane %v275, 2
      %v581 = vsel %vm516, %v578, %v580
      %v582 = vrot.slane %v276, 2
      %v583 = vrot.slane %v277, 2
      %v584 = vsel %vm516, %v582, %v583
      %v585 = vrot.slane %v278, 2
      %v586 = vsel %vm516, %v583, %v585
      %v587 = vrot.slane %v279, 2
      %v588 = vrot.slane %v280, 2
      %v589 = vsel %vm516, %v587, %v588
      %v590 = vrot.slane %v281, 2
      %v591 = vsel %vm516, %v588, %v590
      %v592 = vrot.slane %v282, 2
      %v593 = vrot.slane %v283, 2
      %v594 = vsel %vm516, %v592, %v593
      %v595 = vrot.slane %v284, 2
      %v596 = vsel %vm516, %v593, %v595
      %597 = vrot.lane.b32.xlu0 %v519, 8
      %v598 = vpop.permute.xlu0 %597
      %599 = vrot.lane.b32.xlu0 %v521, 8
      %v600 = vpop.permute.xlu0 %599
      %601 = vrot.lane.b32.xlu0 %v524, 8
      %v602 = vpop.permute.xlu0 %601
      %603 = vrot.lane.b32.xlu0 %v526, 8
      %v604 = vpop.permute.xlu0 %603
      %605 = vrot.lane.b32.xlu0 %v529, 8
      %v606 = vpop.permute.xlu0 %605
      %607 = vrot.lane.b32.xlu0 %v531, 8
      %v608 = vpop.permute.xlu0 %607
      %609 = vrot.lane.b32.xlu0 %v534, 8
      %v610 = vpop.permute.xlu0 %609
      %611 = vrot.lane.b32.xlu0 %v536, 8
      %v612 = vpop.permute.xlu0 %611
      %613 = vrot.lane.b32.xlu0 %v539, 8
      %v614 = vpop.permute.xlu0 %613
      %615 = vrot.lane.b32.xlu0 %v541, 8
      %v616 = vpop.permute.xlu0 %615
      %617 = vrot.lane.b32.xlu0 %v544, 8
      %v618 = vpop.permute.xlu0 %617
      %619 = vrot.lane.b32.xlu0 %v546, 8
      %v620 = vpop.permute.xlu0 %619
      %621 = vrot.lane.b32.xlu0 %v549, 8
      %v622 = vpop.permute.xlu0 %621
      %623 = vrot.lane.b32.xlu0 %v551, 8
      %v624 = vpop.permute.xlu0 %623
      %625 = vrot.lane.b32.xlu0 %v554, 8
      %v626 = vpop.permute.xlu0 %625
      %627 = vrot.lane.b32.xlu0 %v556, 8
      %v628 = vpop.permute.xlu0 %627
      %629 = vrot.lane.b32.xlu0 %v559, 8
      %v630 = vpop.permute.xlu0 %629
      %631 = vrot.lane.b32.xlu0 %v561, 8
      %v632 = vpop.permute.xlu0 %631
      %633 = vrot.lane.b32.xlu0 %v564, 8
      %v634 = vpop.permute.xlu0 %633
      %635 = vrot.lane.b32.xlu0 %v566, 8
      %v636 = vpop.permute.xlu0 %635
      %637 = vrot.lane.b32.xlu0 %v569, 8
      %v638 = vpop.permute.xlu0 %637
      %639 = vrot.lane.b32.xlu0 %v571, 8
      %v640 = vpop.permute.xlu0 %639
      %641 = vrot.lane.b32.xlu0 %v574, 8
      %v642 = vpop.permute.xlu0 %641
      %643 = vrot.lane.b32.xlu0 %v576, 8
      %v644 = vpop.permute.xlu0 %643
      %645 = vrot.lane.b32.xlu0 %v579, 8
      %v646 = vpop.permute.xlu0 %645
      %647 = vrot.lane.b32.xlu0 %v581, 8
      %v648 = vpop.permute.xlu0 %647
      %649 = vrot.lane.b32.xlu0 %v584, 8
      %v650 = vpop.permute.xlu0 %649
      %651 = vrot.lane.b32.xlu0 %v586, 8
      %v652 = vpop.permute.xlu0 %651
      %653 = vrot.lane.b32.xlu0 %v589, 8
      %v654 = vpop.permute.xlu0 %653
      %655 = vrot.lane.b32.xlu0 %v591, 8
      %v656 = vpop.permute.xlu0 %655
      %657 = vrot.lane.b32.xlu0 %v594, 8
      %v658 = vpop.permute.xlu0 %657
      %659 = vrot.lane.b32.xlu0 %v596, 8
      %v660 = vpop.permute.xlu0 %659
      %695 = vrot.lane.b32.xlu0 %v240, 12
      %v696 = vpop.permute.xlu0 %695
      %697 = vrot.lane.b32.xlu0 %v241, 12
      %v698 = vpop.permute.xlu0 %697
      %699 = vrot.lane.b32.xlu0 %v243, 12
      %v700 = vpop.permute.xlu0 %699
      %701 = vrot.lane.b32.xlu0 %v244, 12
      %v702 = vpop.permute.xlu0 %701
      %703 = vrot.lane.b32.xlu0 %v246, 12
      %v704 = vpop.permute.xlu0 %703
      %705 = vrot.lane.b32.xlu0 %v247, 12
      %v706 = vpop.permute.xlu0 %705
      %707 = vrot.lane.b32.xlu0 %v249, 12
      %v708 = vpop.permute.xlu0 %707
      %709 = vrot.lane.b32.xlu0 %v250, 12
      %v710 = vpop.permute.xlu0 %709
      %711 = vrot.lane.b32.xlu0 %v252, 12
      %v712 = vpop.permute.xlu0 %711
      %713 = vrot.lane.b32.xlu0 %v253, 12
      %v714 = vpop.permute.xlu0 %713
      %715 = vrot.lane.b32.xlu0 %v255, 12
      %v716 = vpop.permute.xlu0 %715
      %717 = vrot.lane.b32.xlu0 %v256, 12
      %v718 = vpop.permute.xlu0 %717
      %719 = vrot.lane.b32.xlu0 %v258, 12
      %v720 = vpop.permute.xlu0 %719
      %721 = vrot.lane.b32.xlu0 %v259, 12
      %v722 = vpop.permute.xlu0 %721
      %723 = vrot.lane.b32.xlu0 %v261, 12
      %v724 = vpop.permute.xlu0 %723
      %725 = vrot.lane.b32.xlu0 %v262, 12
      %v726 = vpop.permute.xlu0 %725
      %727 = vrot.lane.b32.xlu0 %v264, 12
      %v728 = vpop.permute.xlu0 %727
      %729 = vrot.lane.b32.xlu0 %v265, 12
      %v730 = vpop.permute.xlu0 %729
      %731 = vrot.lane.b32.xlu0 %v267, 12
      %v732 = vpop.permute.xlu0 %731
      %733 = vrot.lane.b32.xlu0 %v268, 12
      %v734 = vpop.permute.xlu0 %733
      %735 = vrot.lane.b32.xlu0 %v270, 12
      %v736 = vpop.permute.xlu0 %735
      %737 = vrot.lane.b32.xlu0 %v271, 12
      %v738 = vpop.permute.xlu0 %737
      %739 = vrot.lane.b32.xlu0 %v273, 12
      %v740 = vpop.permute.xlu0 %739
      %741 = vrot.lane.b32.xlu0 %v274, 12
      %v742 = vpop.permute.xlu0 %741
      %743 = vrot.lane.b32.xlu0 %v276, 12
      %v744 = vpop.permute.xlu0 %743
      %745 = vrot.lane.b32.xlu0 %v277, 12
      %v746 = vpop.permute.xlu0 %745
      %747 = vrot.lane.b32.xlu0 %v279, 12
      %v748 = vpop.permute.xlu0 %747
      %749 = vrot.lane.b32.xlu0 %v280, 12
      %v750 = vpop.permute.xlu0 %749
      %751 = vrot.lane.b32.xlu0 %v282, 12
      %v752 = vpop.permute.xlu0 %751
      %753 = vrot.lane.b32.xlu0 %v283, 12
      %v754 = vpop.permute.xlu0 %753
      %755 = vrot.lane.b32.xlu0 %v285, 12
      %v756 = vpop.permute.xlu0 %755
      %757 = vrot.lane.b32.xlu0 %v286, 12
      %v758 = vpop.permute.xlu0 %757
      %v792 = vrot.slane %v285, 1
      %v793 = vrot.slane %v286, 1
      %v794 = vsel %vm339, %v792, %v793
      %v795 = vrot.slane %v287, 1
      %v796 = vsel %vm339, %v793, %v795
      %797 = vrot.lane.b32.xlu0 %v347, 16
      %v798 = vpop.permute.xlu0 %797
      %799 = vrot.lane.b32.xlu0 %v349, 16
      %v800 = vpop.permute.xlu0 %799
      %801 = vrot.lane.b32.xlu0 %v352, 16
      %v802 = vpop.permute.xlu0 %801
      %803 = vrot.lane.b32.xlu0 %v354, 16
      %v804 = vpop.permute.xlu0 %803
      %805 = vrot.lane.b32.xlu0 %v357, 16
      %v806 = vpop.permute.xlu0 %805
      %807 = vrot.lane.b32.xlu0 %v359, 16
      %v808 = vpop.permute.xlu0 %807
      %809 = vrot.lane.b32.xlu0 %v362, 16
      %v810 = vpop.permute.xlu0 %809
      %811 = vrot.lane.b32.xlu0 %v364, 16
      %v812 = vpop.permute.xlu0 %811
      %813 = vrot.lane.b32.xlu0 %v367, 16
      %v814 = vpop.permute.xlu0 %813
      %815 = vrot.lane.b32.xlu0 %v369, 16
      %v816 = vpop.permute.xlu0 %815
      %817 = vrot.lane.b32.xlu0 %v372, 16
      %v818 = vpop.permute.xlu0 %817
      %819 = vrot.lane.b32.xlu0 %v374, 16
      %v820 = vpop.permute.xlu0 %819
      %821 = vrot.lane.b32.xlu0 %v377, 16
      %v822 = vpop.permute.xlu0 %821
      %823 = vrot.lane.b32.xlu0 %v379, 16
      %v824 = vpop.permute.xlu0 %823
      %825 = vrot.lane.b32.xlu0 %v382, 16
      %v826 = vpop.permute.xlu0 %825
      %827 = vrot.lane.b32.xlu0 %v384, 16
      %v828 = vpop.permute.xlu0 %827
      %829 = vrot.lane.b32.xlu0 %v387, 16
      %v830 = vpop.permute.xlu0 %829
      %831 = vrot.lane.b32.xlu0 %v389, 16
      %v832 = vpop.permute.xlu0 %831
      %833 = vrot.lane.b32.xlu0 %v392, 16
      %v834 = vpop.permute.xlu0 %833
      %835 = vrot.lane.b32.xlu0 %v394, 16
      %v836 = vpop.permute.xlu0 %835
      %837 = vrot.lane.b32.xlu0 %v397, 16
      %v838 = vpop.permute.xlu0 %837
      %839 = vrot.lane.b32.xlu0 %v399, 16
      %v840 = vpop.permute.xlu0 %839
      %841 = vrot.lane.b32.xlu0 %v402, 16
      %v842 = vpop.permute.xlu0 %841
      %843 = vrot.lane.b32.xlu0 %v404, 16
      %v844 = vpop.permute.xlu0 %843
      %845 = vrot.lane.b32.xlu0 %v407, 16
      %v846 = vpop.permute.xlu0 %845
      %847 = vrot.lane.b32.xlu0 %v409, 16
      %v848 = vpop.permute.xlu0 %847
      %849 = vrot.lane.b32.xlu0 %v412, 16
      %v850 = vpop.permute.xlu0 %849
      %851 = vrot.lane.b32.xlu0 %v414, 16
      %v852 = vpop.permute.xlu0 %851
      %853 = vrot.lane.b32.xlu0 %v417, 16
      %v854 = vpop.permute.xlu0 %853
      %855 = vrot.lane.b32.xlu0 %v419, 16
      %v856 = vpop.permute.xlu0 %855
      %857 = vrot.lane.b32.xlu0 %v794, 16
      %v858 = vpop.permute.xlu0 %857
      %859 = vrot.lane.b32.xlu0 %v796, 16
      %v860 = vpop.permute.xlu0 %859
      %v893 = vrot.slane %v285, 2
      %v894 = vrot.slane %v286, 2
      %v895 = vsel %vm516, %v893, %v894
      %v896 = vrot.slane %v287, 2
      %v897 = vsel %vm516, %v894, %v896
      %898 = vrot.lane.b32.xlu0 %v524, 20
      %v899 = vpop.permute.xlu0 %898
      %900 = vrot.lane.b32.xlu0 %v526, 20
      %v901 = vpop.permute.xlu0 %900
      %902 = vrot.lane.b32.xlu0 %v529, 20
      %v903 = vpop.permute.xlu0 %902
      %904 = vrot.lane.b32.xlu0 %v531, 20
      %v905 = vpop.permute.xlu0 %904
      %906 = vrot.lane.b32.xlu0 %v534, 20
      %v907 = vpop.permute.xlu0 %906
      %908 = vrot.lane.b32.xlu0 %v536, 20
      %v909 = vpop.permute.xlu0 %908
      %910 = vrot.lane.b32.xlu0 %v539, 20
      %v911 = vpop.permute.xlu0 %910
      %912 = vrot.lane.b32.xlu0 %v541, 20
      %v913 = vpop.permute.xlu0 %912
      %914 = vrot.lane.b32.xlu0 %v544, 20
      %v915 = vpop.permute.xlu0 %914
      %916 = vrot.lane.b32.xlu0 %v546, 20
      %v917 = vpop.permute.xlu0 %916
      %918 = vrot.lane.b32.xlu0 %v549, 20
      %v919 = vpop.permute.xlu0 %918
      %920 = vrot.lane.b32.xlu0 %v551, 20
      %v921 = vpop.permute.xlu0 %920
      %922 = vrot.lane.b32.xlu0 %v554, 20
      %v923 = vpop.permute.xlu0 %922
      %924 = vrot.lane.b32.xlu0 %v556, 20
      %v925 = vpop.permute.xlu0 %924
      %926 = vrot.lane.b32.xlu0 %v559, 20
      %v927 = vpop.permute.xlu0 %926
      %928 = vrot.lane.b32.xlu0 %v561, 20
      %v929 = vpop.permute.xlu0 %928
      %930 = vrot.lane.b32.xlu0 %v564, 20
      %v931 = vpop.permute.xlu0 %930
      %932 = vrot.lane.b32.xlu0 %v566, 20
      %v933 = vpop.permute.xlu0 %932
      %934 = vrot.lane.b32.xlu0 %v569, 20
      %v935 = vpop.permute.xlu0 %934
      %936 = vrot.lane.b32.xlu0 %v571, 20
      %v937 = vpop.permute.xlu0 %936
      %938 = vrot.lane.b32.xlu0 %v574, 20
      %v939 = vpop.permute.xlu0 %938
      %940 = vrot.lane.b32.xlu0 %v576, 20
      %v941 = vpop.permute.xlu0 %940
      %942 = vrot.lane.b32.xlu0 %v579, 20
      %v943 = vpop.permute.xlu0 %942
      %944 = vrot.lane.b32.xlu0 %v581, 20
      %v945 = vpop.permute.xlu0 %944
      %946 = vrot.lane.b32.xlu0 %v584, 20
      %v947 = vpop.permute.xlu0 %946
      %948 = vrot.lane.b32.xlu0 %v586, 20
      %v949 = vpop.permute.xlu0 %948
      %950 = vrot.lane.b32.xlu0 %v589, 20
      %v951 = vpop.permute.xlu0 %950
      %952 = vrot.lane.b32.xlu0 %v591, 20
      %v953 = vpop.permute.xlu0 %952
      %954 = vrot.lane.b32.xlu0 %v594, 20
      %v955 = vpop.permute.xlu0 %954
      %956 = vrot.lane.b32.xlu0 %v596, 20
      %v957 = vpop.permute.xlu0 %956
      %958 = vrot.lane.b32.xlu0 %v895, 20
      %v959 = vpop.permute.xlu0 %958
      %960 = vrot.lane.b32.xlu0 %v897, 20
      %v961 = vpop.permute.xlu0 %960
      %996 = vrot.lane.b32.xlu0 %v243, 24
      %v997 = vpop.permute.xlu0 %996
      %998 = vrot.lane.b32.xlu0 %v244, 24
      %v999 = vpop.permute.xlu0 %998
      %1000 = vrot.lane.b32.xlu0 %v246, 24
      %v1001 = vpop.permute.xlu0 %1000
      %1002 = vrot.lane.b32.xlu0 %v247, 24
      %v1003 = vpop.permute.xlu0 %1002
      %1004 = vrot.lane.b32.xlu0 %v249, 24
      %v1005 = vpop.permute.xlu0 %1004
      %1006 = vrot.lane.b32.xlu0 %v250, 24
      %v1007 = vpop.permute.xlu0 %1006
      %1008 = vrot.lane.b32.xlu0 %v252, 24
      %v1009 = vpop.permute.xlu0 %1008
      %1010 = vrot.lane.b32.xlu0 %v253, 24
      %v1011 = vpop.permute.xlu0 %1010
      %1012 = vrot.lane.b32.xlu0 %v255, 24
      %v1013 = vpop.permute.xlu0 %1012
      %1014 = vrot.lane.b32.xlu0 %v256, 24
      %v1015 = vpop.permute.xlu0 %1014
      %1016 = vrot.lane.b32.xlu0 %v258, 24
      %v1017 = vpop.permute.xlu0 %1016
      %1018 = vrot.lane.b32.xlu0 %v259, 24
      %v1019 = vpop.permute.xlu0 %1018
      %1020 = vrot.lane.b32.xlu0 %v261, 24
      %v1021 = vpop.permute.xlu0 %1020
      %1022 = vrot.lane.b32.xlu0 %v262, 24
      %v1023 = vpop.permute.xlu0 %1022
      %1024 = vrot.lane.b32.xlu0 %v264, 24
      %v1025 = vpop.permute.xlu0 %1024
      %1026 = vrot.lane.b32.xlu0 %v265, 24
      %v1027 = vpop.permute.xlu0 %1026
      %1028 = vrot.lane.b32.xlu0 %v267, 24
      %v1029 = vpop.permute.xlu0 %1028
      %1030 = vrot.lane.b32.xlu0 %v268, 24
      %v1031 = vpop.permute.xlu0 %1030
      %1032 = vrot.lane.b32.xlu0 %v270, 24
      %v1033 = vpop.permute.xlu0 %1032
      %1034 = vrot.lane.b32.xlu0 %v271, 24
      %v1035 = vpop.permute.xlu0 %1034
      %1036 = vrot.lane.b32.xlu0 %v273, 24
      %v1037 = vpop.permute.xlu0 %1036
      %1038 = vrot.lane.b32.xlu0 %v274, 24
      %v1039 = vpop.permute.xlu0 %1038
      %1040 = vrot.lane.b32.xlu0 %v276, 24
      %v1041 = vpop.permute.xlu0 %1040
      %1042 = vrot.lane.b32.xlu0 %v277, 24
      %v1043 = vpop.permute.xlu0 %1042
      %1044 = vrot.lane.b32.xlu0 %v279, 24
      %v1045 = vpop.permute.xlu0 %1044
      %1046 = vrot.lane.b32.xlu0 %v280, 24
      %v1047 = vpop.permute.xlu0 %1046
      %1048 = vrot.lane.b32.xlu0 %v282, 24
      %v1049 = vpop.permute.xlu0 %1048
      %1050 = vrot.lane.b32.xlu0 %v283, 24
      %v1051 = vpop.permute.xlu0 %1050
      %1052 = vrot.lane.b32.xlu0 %v285, 24
      %v1053 = vpop.permute.xlu0 %1052
      %1054 = vrot.lane.b32.xlu0 %v286, 24
      %v1055 = vpop.permute.xlu0 %1054
      %1056 = vrot.lane.b32.xlu0 %v288, 24
      %v1057 = vpop.permute.xlu0 %1056
      %1058 = vrot.lane.b32.xlu0 %v289, 24
      %v1059 = vpop.permute.xlu0 %1058
      %v1093 = vrot.slane %v288, 1
      %v1094 = vrot.slane %v289, 1
      %v1095 = vsel %vm339, %v1093, %v1094
      %v1096 = vrot.slane %v290, 1
      %v1097 = vsel %vm339, %v1094, %v1096
      %1098 = vrot.lane.b32.xlu0 %v352, 28
      %v1099 = vpop.permute.xlu0 %1098
      %1100 = vrot.lane.b32.xlu0 %v354, 28
      %v1101 = vpop.permute.xlu0 %1100
      %1102 = vrot.lane.b32.xlu0 %v357, 28
      %v1103 = vpop.permute.xlu0 %1102
      %1104 = vrot.lane.b32.xlu0 %v359, 28
      %v1105 = vpop.permute.xlu0 %1104
      %1106 = vrot.lane.b32.xlu0 %v362, 28
      %v1107 = vpop.permute.xlu0 %1106
      %1108 = vrot.lane.b32.xlu0 %v364, 28
      %v1109 = vpop.permute.xlu0 %1108
      %1110 = vrot.lane.b32.xlu0 %v367, 28
      %v1111 = vpop.permute.xlu0 %1110
      %1112 = vrot.lane.b32.xlu0 %v369, 28
      %v1113 = vpop.permute.xlu0 %1112
      %1114 = vrot.lane.b32.xlu0 %v372, 28
      %v1115 = vpop.permute.xlu0 %1114
      %1116 = vrot.lane.b32.xlu0 %v374, 28
      %v1117 = vpop.permute.xlu0 %1116
      %1118 = vrot.lane.b32.xlu0 %v377, 28
      %v1119 = vpop.permute.xlu0 %1118
      %1120 = vrot.lane.b32.xlu0 %v379, 28
      %v1121 = vpop.permute.xlu0 %1120
      %1122 = vrot.lane.b32.xlu0 %v382, 28
      %v1123 = vpop.permute.xlu0 %1122
      %1124 = vrot.lane.b32.xlu0 %v384, 28
      %v1125 = vpop.permute.xlu0 %1124
      %1126 = vrot.lane.b32.xlu0 %v387, 28
      %v1127 = vpop.permute.xlu0 %1126
      %1128 = vrot.lane.b32.xlu0 %v389, 28
      %v1129 = vpop.permute.xlu0 %1128
      %1130 = vrot.lane.b32.xlu0 %v392, 28
      %v1131 = vpop.permute.xlu0 %1130
      %1132 = vrot.lane.b32.xlu0 %v394, 28
      %v1133 = vpop.permute.xlu0 %1132
      %1134 = vrot.lane.b32.xlu0 %v397, 28
      %v1135 = vpop.permute.xlu0 %1134
      %1136 = vrot.lane.b32.xlu0 %v399, 28
      %v1137 = vpop.permute.xlu0 %1136
      %1138 = vrot.lane.b32.xlu0 %v402, 28
      %v1139 = vpop.permute.xlu0 %1138
      %1140 = vrot.lane.b32.xlu0 %v404, 28
      %v1141 = vpop.permute.xlu0 %1140
      %1142 = vrot.lane.b32.xlu0 %v407, 28
      %v1143 = vpop.permute.xlu0 %1142
      %1144 = vrot.lane.b32.xlu0 %v409, 28
      %v1145 = vpop.permute.xlu0 %1144
      %1146 = vrot.lane.b32.xlu0 %v412, 28
      %v1147 = vpop.permute.xlu0 %1146
      %1148 = vrot.lane.b32.xlu0 %v414, 28
      %v1149 = vpop.permute.xlu0 %1148
      %1150 = vrot.lane.b32.xlu0 %v417, 28
      %v1151 = vpop.permute.xlu0 %1150
      %1152 = vrot.lane.b32.xlu0 %v419, 28
      %v1153 = vpop.permute.xlu0 %1152
      %1154 = vrot.lane.b32.xlu0 %v794, 28
      %v1155 = vpop.permute.xlu0 %1154
      %1156 = vrot.lane.b32.xlu0 %v796, 28
      %v1157 = vpop.permute.xlu0 %1156
      %1158 = vrot.lane.b32.xlu0 %v1095, 28
      %v1159 = vpop.permute.xlu0 %1158
      %1160 = vrot.lane.b32.xlu0 %v1097, 28
      %v1161 = vpop.permute.xlu0 %1160
      %v1194 = vrot.slane %v288, 2
      %v1195 = vrot.slane %v289, 2
      %v1196 = vsel %vm516, %v1194, %v1195
      %v1197 = vrot.slane %v290, 2
      %v1198 = vsel %vm516, %v1195, %v1197
      %1199 = vrot.lane.b32.xlu0 %v529, 32
      %v1200 = vpop.permute.xlu0 %1199
      %1201 = vrot.lane.b32.xlu0 %v531, 32
      %v1202 = vpop.permute.xlu0 %1201
      %1203 = vrot.lane.b32.xlu0 %v534, 32
      %v1204 = vpop.permute.xlu0 %1203
      %1205 = vrot.lane.b32.xlu0 %v536, 32
      %v1206 = vpop.permute.xlu0 %1205
      %1207 = vrot.lane.b32.xlu0 %v539, 32
      %v1208 = vpop.permute.xlu0 %1207
      %1209 = vrot.lane.b32.xlu0 %v541, 32
      %v1210 = vpop.permute.xlu0 %1209
      %1211 = vrot.lane.b32.xlu0 %v544, 32
      %v1212 = vpop.permute.xlu0 %1211
      %1213 = vrot.lane.b32.xlu0 %v546, 32
      %v1214 = vpop.permute.xlu0 %1213
      %1215 = vrot.lane.b32.xlu0 %v549, 32
      %v1216 = vpop.permute.xlu0 %1215
      %1217 = vrot.lane.b32.xlu0 %v551, 32
      %v1218 = vpop.permute.xlu0 %1217
      %1219 = vrot.lane.b32.xlu0 %v554, 32
      %v1220 = vpop.permute.xlu0 %1219
      %1221 = vrot.lane.b32.xlu0 %v556, 32
      %v1222 = vpop.permute.xlu0 %1221
      %1223 = vrot.lane.b32.xlu0 %v559, 32
      %v1224 = vpop.permute.xlu0 %1223
      %1225 = vrot.lane.b32.xlu0 %v561, 32
      %v1226 = vpop.permute.xlu0 %1225
      %1227 = vrot.lane.b32.xlu0 %v564, 32
      %v1228 = vpop.permute.xlu0 %1227
      %1229 = vrot.lane.b32.xlu0 %v566, 32
      %v1230 = vpop.permute.xlu0 %1229
      %1231 = vrot.lane.b32.xlu0 %v569, 32
      %v1232 = vpop.permute.xlu0 %1231
      %1233 = vrot.lane.b32.xlu0 %v571, 32
      %v1234 = vpop.permute.xlu0 %1233
      %1235 = vrot.lane.b32.xlu0 %v574, 32
      %v1236 = vpop.permute.xlu0 %1235
      %1237 = vrot.lane.b32.xlu0 %v576, 32
      %v1238 = vpop.permute.xlu0 %1237
      %1239 = vrot.lane.b32.xlu0 %v579, 32
      %v1240 = vpop.permute.xlu0 %1239
      %1241 = vrot.lane.b32.xlu0 %v581, 32
      %v1242 = vpop.permute.xlu0 %1241
      %1243 = vrot.lane.b32.xlu0 %v584, 32
      %v1244 = vpop.permute.xlu0 %1243
      %1245 = vrot.lane.b32.xlu0 %v586, 32
      %v1246 = vpop.permute.xlu0 %1245
      %1247 = vrot.lane.b32.xlu0 %v589, 32
      %v1248 = vpop.permute.xlu0 %1247
      %1249 = vrot.lane.b32.xlu0 %v591, 32
      %v1250 = vpop.permute.xlu0 %1249
      %1251 = vrot.lane.b32.xlu0 %v594, 32
      %v1252 = vpop.permute.xlu0 %1251
      %1253 = vrot.lane.b32.xlu0 %v596, 32
      %v1254 = vpop.permute.xlu0 %1253
      %1255 = vrot.lane.b32.xlu0 %v895, 32
      %v1256 = vpop.permute.xlu0 %1255
      %1257 = vrot.lane.b32.xlu0 %v897, 32
      %v1258 = vpop.permute.xlu0 %1257
      %1259 = vrot.lane.b32.xlu0 %v1196, 32
      %v1260 = vpop.permute.xlu0 %1259
      %1261 = vrot.lane.b32.xlu0 %v1198, 32
      %v1262 = vpop.permute.xlu0 %1261
      %vm1295 = vcmask 31744
      %v1296 = vsel %vm1295, %v237, %v421
      %v1297 = vsel %vm1295, %v238, %v423
      %v1298 = vsel %vm1295, %v240, %v425
      %v1299 = vsel %vm1295, %v241, %v427
      %v1300 = vsel %vm1295, %v243, %v429
      %v1301 = vsel %vm1295, %v244, %v431
      %v1302 = vsel %vm1295, %v246, %v433
      %v1303 = vsel %vm1295, %v247, %v435
      %v1304 = vsel %vm1295, %v249, %v437
      %v1305 = vsel %vm1295, %v250, %v439
      %v1306 = vsel %vm1295, %v252, %v441
      %v1307 = vsel %vm1295, %v253, %v443
      %v1308 = vsel %vm1295, %v255, %v445
      %v1309 = vsel %vm1295, %v256, %v447
      %v1310 = vsel %vm1295, %v258, %v449
      %v1311 = vsel %vm1295, %v259, %v451
      %v1312 = vsel %vm1295, %v261, %v453
      %v1313 = vsel %vm1295, %v262, %v455
      %v1314 = vsel %vm1295, %v264, %v457
      %v1315 = vsel %vm1295, %v265, %v459
      %v1316 = vsel %vm1295, %v267, %v461
      %v1317 = vsel %vm1295, %v268, %v463
      %v1318 = vsel %vm1295, %v270, %v465
      %v1319 = vsel %vm1295, %v271, %v467
      %v1320 = vsel %vm1295, %v273, %v469
      %v1321 = vsel %vm1295, %v274, %v471
      %v1322 = vsel %vm1295, %v276, %v473
      %v1323 = vsel %vm1295, %v277, %v475
      %v1324 = vsel %vm1295, %v279, %v477
      %v1325 = vsel %vm1295, %v280, %v479
      %v1326 = vsel %vm1295, %v282, %v481
      %v1327 = vsel %vm1295, %v283, %v483
      %vm1328 = vcmask 64512
      %v1329 = vsel %vm1328, %v1296, %v598
      %v1330 = vsel %vm1328, %v1297, %v600
      %v1331 = vsel %vm1328, %v1298, %v602
      %v1332 = vsel %vm1328, %v1299, %v604
      %v1333 = vsel %vm1328, %v1300, %v606
      %v1334 = vsel %vm1328, %v1301, %v608
      %v1335 = vsel %vm1328, %v1302, %v610
      %v1336 = vsel %vm1328, %v1303, %v612
      %v1337 = vsel %vm1328, %v1304, %v614
      %v1338 = vsel %vm1328, %v1305, %v616
      %v1339 = vsel %vm1328, %v1306, %v618
      %v1340 = vsel %vm1328, %v1307, %v620
      %v1341 = vsel %vm1328, %v1308, %v622
      %v1342 = vsel %vm1328, %v1309, %v624
      %v1343 = vsel %vm1328, %v1310, %v626
      %v1344 = vsel %vm1328, %v1311, %v628
      %v1345 = vsel %vm1328, %v1312, %v630
      %v1346 = vsel %vm1328, %v1313, %v632
      %v1347 = vsel %vm1328, %v1314, %v634
      %v1348 = vsel %vm1328, %v1315, %v636
      %v1349 = vsel %vm1328, %v1316, %v638
      %v1350 = vsel %vm1328, %v1317, %v640
      %v1351 = vsel %vm1328, %v1318, %v642
      %v1352 = vsel %vm1328, %v1319, %v644
      %v1353 = vsel %vm1328, %v1320, %v646
      %v1354 = vsel %vm1328, %v1321, %v648
      %v1355 = vsel %vm1328, %v1322, %v650
      %v1356 = vsel %vm1328, %v1323, %v652
      %v1357 = vsel %vm1328, %v1324, %v654
      %v1358 = vsel %vm1328, %v1325, %v656
      %v1359 = vsel %vm1328, %v1326, %v658
      %v1360 = vsel %vm1328, %v1327, %v660
      %vm1361 = vcmask 97280
      %v1362 = vsel %vm1361, %v1329, %v696
      %v1363 = vsel %vm1361, %v1330, %v698
      %v1364 = vsel %vm1361, %v1331, %v700
      %v1365 = vsel %vm1361, %v1332, %v702
      %v1366 = vsel %vm1361, %v1333, %v704
      %v1367 = vsel %vm1361, %v1334, %v706
      %v1368 = vsel %vm1361, %v1335, %v708
      %v1369 = vsel %vm1361, %v1336, %v710
      %v1370 = vsel %vm1361, %v1337, %v712
      %v1371 = vsel %vm1361, %v1338, %v714
      %v1372 = vsel %vm1361, %v1339, %v716
      %v1373 = vsel %vm1361, %v1340, %v718
      %v1374 = vsel %vm1361, %v1341, %v720
      %v1375 = vsel %vm1361, %v1342, %v722
      %v1376 = vsel %vm1361, %v1343, %v724
      %v1377 = vsel %vm1361, %v1344, %v726
      %v1378 = vsel %vm1361, %v1345, %v728
      %v1379 = vsel %vm1361, %v1346, %v730
      %v1380 = vsel %vm1361, %v1347, %v732
      %v1381 = vsel %vm1361, %v1348, %v734
      %v1382 = vsel %vm1361, %v1349, %v736
      %v1383 = vsel %vm1361, %v1350, %v738
      %v1384 = vsel %vm1361, %v1351, %v740
      %v1385 = vsel %vm1361, %v1352, %v742
      %v1386 = vsel %vm1361, %v1353, %v744
      %v1387 = vsel %vm1361, %v1354, %v746
      %v1388 = vsel %vm1361, %v1355, %v748
      %v1389 = vsel %vm1361, %v1356, %v750
      %v1390 = vsel %vm1361, %v1357, %v752
      %v1391 = vsel %vm1361, %v1358, %v754
      %v1392 = vsel %vm1361, %v1359, %v756
      %v1393 = vsel %vm1361, %v1360, %v758
      %vm1394 = vcmask 130048
      %v1395 = vsel %vm1394, %v1362, %v798
      %v1396 = vsel %vm1394, %v1363, %v800
      %v1397 = vsel %vm1394, %v1364, %v802
      %v1398 = vsel %vm1394, %v1365, %v804
      %v1399 = vsel %vm1394, %v1366, %v806
      %v1400 = vsel %vm1394, %v1367, %v808
      %v1401 = vsel %vm1394, %v1368, %v810
      %v1402 = vsel %vm1394, %v1369, %v812
      %v1403 = vsel %vm1394, %v1370, %v814
      %v1404 = vsel %vm1394, %v1371, %v816
      %v1405 = vsel %vm1394, %v1372, %v818
      %v1406 = vsel %vm1394, %v1373, %v820
      %v1407 = vsel %vm1394, %v1374, %v822
      %v1408 = vsel %vm1394, %v1375, %v824
      %v1409 = vsel %vm1394, %v1376, %v826
      %v1410 = vsel %vm1394, %v1377, %v828
      %v1411 = vsel %vm1394, %v1378, %v830
      %v1412 = vsel %vm1394, %v1379, %v832
      %v1413 = vsel %vm1394, %v1380, %v834
      %v1414 = vsel %vm1394, %v1381, %v836
      %v1415 = vsel %vm1394, %v1382, %v838
      %v1416 = vsel %vm1394, %v1383, %v840
      %v1417 = vsel %vm1394, %v1384, %v842
      %v1418 = vsel %vm1394, %v1385, %v844
      %v1419 = vsel %vm1394, %v1386, %v846
      %v1420 = vsel %vm1394, %v1387, %v848
      %v1421 = vsel %vm1394, %v1388, %v850
      %v1422 = vsel %vm1394, %v1389, %v852
      %v1423 = vsel %vm1394, %v1390, %v854
      %v1424 = vsel %vm1394, %v1391, %v856
      %v1425 = vsel %vm1394, %v1392, %v858
      %v1426 = vsel %vm1394, %v1393, %v860
      %vm1427 = vcmask 162816
      %v1428 = vsel %vm1427, %v1395, %v899
      %v1429 = vsel %vm1427, %v1396, %v901
      %v1430 = vsel %vm1427, %v1397, %v903
      %v1431 = vsel %vm1427, %v1398, %v905
      %v1432 = vsel %vm1427, %v1399, %v907
      %v1433 = vsel %vm1427, %v1400, %v909
      %v1434 = vsel %vm1427, %v1401, %v911
      %v1435 = vsel %vm1427, %v1402, %v913
      %v1436 = vsel %vm1427, %v1403, %v915
      %v1437 = vsel %vm1427, %v1404, %v917
      %v1438 = vsel %vm1427, %v1405, %v919
      %v1439 = vsel %vm1427, %v1406, %v921
      %v1440 = vsel %vm1427, %v1407, %v923
      %v1441 = vsel %vm1427, %v1408, %v925
      %v1442 = vsel %vm1427, %v1409, %v927
      %v1443 = vsel %vm1427, %v1410, %v929
      %v1444 = vsel %vm1427, %v1411, %v931
      %v1445 = vsel %vm1427, %v1412, %v933
      %v1446 = vsel %vm1427, %v1413, %v935
      %v1447 = vsel %vm1427, %v1414, %v937
      %v1448 = vsel %vm1427, %v1415, %v939
      %v1449 = vsel %vm1427, %v1416, %v941
      %v1450 = vsel %vm1427, %v1417, %v943
      %v1451 = vsel %vm1427, %v1418, %v945
      %v1452 = vsel %vm1427, %v1419, %v947
      %v1453 = vsel %vm1427, %v1420, %v949
      %v1454 = vsel %vm1427, %v1421, %v951
      %v1455 = vsel %vm1427, %v1422, %v953
      %v1456 = vsel %vm1427, %v1423, %v955
      %v1457 = vsel %vm1427, %v1424, %v957
      %v1458 = vsel %vm1427, %v1425, %v959
      %v1459 = vsel %vm1427, %v1426, %v961
      %vm1460 = vcmask 195584
      %v1461 = vsel %vm1460, %v1428, %v997
      %v1462 = vsel %vm1460, %v1429, %v999
      %v1463 = vsel %vm1460, %v1430, %v1001
      %v1464 = vsel %vm1460, %v1431, %v1003
      %v1465 = vsel %vm1460, %v1432, %v1005
      %v1466 = vsel %vm1460, %v1433, %v1007
      %v1467 = vsel %vm1460, %v1434, %v1009
      %v1468 = vsel %vm1460, %v1435, %v1011
      %v1469 = vsel %vm1460, %v1436, %v1013
      %v1470 = vsel %vm1460, %v1437, %v1015
      %v1471 = vsel %vm1460, %v1438, %v1017
      %v1472 = vsel %vm1460, %v1439, %v1019
      %v1473 = vsel %vm1460, %v1440, %v1021
      %v1474 = vsel %vm1460, %v1441, %v1023
      %v1475 = vsel %vm1460, %v1442, %v1025
      %v1476 = vsel %vm1460, %v1443, %v1027
      %v1477 = vsel %vm1460, %v1444, %v1029
      %v1478 = vsel %vm1460, %v1445, %v1031
      %v1479 = vsel %vm1460, %v1446, %v1033
      %v1480 = vsel %vm1460, %v1447, %v1035
      %v1481 = vsel %vm1460, %v1448, %v1037
      %v1482 = vsel %vm1460, %v1449, %v1039
      %v1483 = vsel %vm1460, %v1450, %v1041
      %v1484 = vsel %vm1460, %v1451, %v1043
      %v1485 = vsel %vm1460, %v1452, %v1045
      %v1486 = vsel %vm1460, %v1453, %v1047
      %v1487 = vsel %vm1460, %v1454, %v1049
      %v1488 = vsel %vm1460, %v1455, %v1051
      %v1489 = vsel %vm1460, %v1456, %v1053
      %v1490 = vsel %vm1460, %v1457, %v1055
      %v1491 = vsel %vm1460, %v1458, %v1057
      %v1492 = vsel %vm1460, %v1459, %v1059
      %vm1493 = vcmask 228352
      %v1494 = vsel %vm1493, %v1461, %v1099
      %v1495 = vsel %vm1493, %v1462, %v1101
      %v1496 = vsel %vm1493, %v1463, %v1103
      %v1497 = vsel %vm1493, %v1464, %v1105
      %v1498 = vsel %vm1493, %v1465, %v1107
      %v1499 = vsel %vm1493, %v1466, %v1109
      %v1500 = vsel %vm1493, %v1467, %v1111
      %v1501 = vsel %vm1493, %v1468, %v1113
      %v1502 = vsel %vm1493, %v1469, %v1115
      %v1503 = vsel %vm1493, %v1470, %v1117
      %v1504 = vsel %vm1493, %v1471, %v1119
      %v1505 = vsel %vm1493, %v1472, %v1121
      %v1506 = vsel %vm1493, %v1473, %v1123
      %v1507 = vsel %vm1493, %v1474, %v1125
      %v1508 = vsel %vm1493, %v1475, %v1127
      %v1509 = vsel %vm1493, %v1476, %v1129
      %v1510 = vsel %vm1493, %v1477, %v1131
      %v1511 = vsel %vm1493, %v1478, %v1133
      %v1512 = vsel %vm1493, %v1479, %v1135
      %v1513 = vsel %vm1493, %v1480, %v1137
      %v1514 = vsel %vm1493, %v1481, %v1139
      %v1515 = vsel %vm1493, %v1482, %v1141
      %v1516 = vsel %vm1493, %v1483, %v1143
      %v1517 = vsel %vm1493, %v1484, %v1145
      %v1518 = vsel %vm1493, %v1485, %v1147
      %v1519 = vsel %vm1493, %v1486, %v1149
      %v1520 = vsel %vm1493, %v1487, %v1151
      %v1521 = vsel %vm1493, %v1488, %v1153
      %v1522 = vsel %vm1493, %v1489, %v1155
      %v1523 = vsel %vm1493, %v1490, %v1157
      %v1524 = vsel %vm1493, %v1491, %v1159
      %v1525 = vsel %vm1493, %v1492, %v1161
      %vm1526 = vcmask 261120
      %v1527 = vsel %vm1526, %v1494, %v1200
      %v1528 = vsel %vm1526, %v1495, %v1202
      %v1529 = vsel %vm1526, %v1496, %v1204
      %v1530 = vsel %vm1526, %v1497, %v1206
      %v1531 = vsel %vm1526, %v1498, %v1208
      %v1532 = vsel %vm1526, %v1499, %v1210
      %v1533 = vsel %vm1526, %v1500, %v1212
      %v1534 = vsel %vm1526, %v1501, %v1214
      %v1535 = vsel %vm1526, %v1502, %v1216
      %v1536 = vsel %vm1526, %v1503, %v1218
      %v1537 = vsel %vm1526, %v1504, %v1220
      %v1538 = vsel %vm1526, %v1505, %v1222
      %v1539 = vsel %vm1526, %v1506, %v1224
      %v1540 = vsel %vm1526, %v1507, %v1226
      %v1541 = vsel %vm1526, %v1508, %v1228
      %v1542 = vsel %vm1526, %v1509, %v1230
      %v1543 = vsel %vm1526, %v1510, %v1232
      %v1544 = vsel %vm1526, %v1511, %v1234
      %v1545 = vsel %vm1526, %v1512, %v1236
      %v1546 = vsel %vm1526, %v1513, %v1238
      %v1547 = vsel %vm1526, %v1514, %v1240
      %v1548 = vsel %vm1526, %v1515, %v1242
      %v1549 = vsel %vm1526, %v1516, %v1244
      %v1550 = vsel %vm1526, %v1517, %v1246
      %v1551 = vsel %vm1526, %v1518, %v1248
      %v1552 = vsel %vm1526, %v1519, %v1250
      %v1553 = vsel %vm1526, %v1520, %v1252
      %v1554 = vsel %vm1526, %v1521, %v1254
      %v1555 = vsel %vm1526, %v1522, %v1256
      %v1556 = vsel %vm1526, %v1523, %v1258
      %v1557 = vsel %vm1526, %v1524, %v1260
      %v1558 = vsel %vm1526, %v1525, %v1262
      %v1559 = vpack.c.bf16 %v1528, %v1527
      %v1560 = vpack.c.bf16 %v1530, %v1529
      %v1561 = vpack.c.bf16 %v1532, %v1531
      %v1562 = vpack.c.bf16 %v1534, %v1533
      %v1563 = vpack.c.bf16 %v1536, %v1535
      %v1564 = vpack.c.bf16 %v1538, %v1537
      %v1565 = vpack.c.bf16 %v1540, %v1539
      %v1566 = vpack.c.bf16 %v1542, %v1541
      %v1567 = vpack.c.bf16 %v1544, %v1543
      %v1568 = vpack.c.bf16 %v1546, %v1545
      %v1569 = vpack.c.bf16 %v1548, %v1547
      %v1570 = vpack.c.bf16 %v1550, %v1549
      %v1571 = vpack.c.bf16 %v1552, %v1551
      %v1572 = vpack.c.bf16 %v1554, %v1553
      %v1573 = vpack.c.bf16 %v1556, %v1555
      %v1574 = vpack.c.bf16 %v1558, %v1557
      %v1575 = vld [vmem:[%s1] sm:$0xf]
      %v1576 = vld [vmem:[%s1 + $0x4] sm:$0xf]
      %v1577 = vld [vmem:[%s1 + $0x8] sm:$0xf]
      %v1578 = vld [vmem:[%s1 + $0xc] sm:$0xf]
      %v1579 = vld [vmem:[%s1 + $0x10] sm:$0x3]
      %v1585 = vunpack.c.l.b16 %v1575
      %v1586 = vunpack.c.l.b16 %v1576
      %v1587 = vunpack.c.l.b16 %v1577
      %v1588 = vunpack.c.l.b16 %v1578
      %v1589 = vunpack.c.l.b16 %v1579
      %v1590 = vpack.c.b16 %v1586, %v1585
      %v1591 = vpack.c.b16 %v1588, %v1587
      %v1592 = vpack.c.b16 %v1589, %v1589
      %vm1595 = vcmask 293888
      %v1597 = vsel %vm1595, %v1559, 0
      %v1600 = vsel %vm1595, %v1560, 0
      %v1603 = vsel %vm1595, %v1561, 0
      %v1606 = vsel %vm1595, %v1562, 0
      %v1609 = vsel %vm1595, %v1563, 0
      %v1612 = vsel %vm1595, %v1564, 0
      %v1615 = vsel %vm1595, %v1565, 0
      %v1618 = vsel %vm1595, %v1566, 0
      %v1621 = vsel %vm1595, %v1567, 0
      %v1624 = vsel %vm1595, %v1568, 0
      %v1627 = vsel %vm1595, %v1569, 0
      %v1630 = vsel %vm1595, %v1570, 0
      %v1633 = vsel %vm1595, %v1571, 0
      %v1636 = vsel %vm1595, %v1572, 0
      %v1639 = vsel %vm1595, %v1573, 0
      %v1642 = vsel %vm1595, %v1574, 0
      %vm1644 = vcmask 1041408
      %v1646 = vsel %vm1644, %v1592, 0
      %1648 = vmatprep.subr.bf16.mxu0 0
      %1649 = vmatpush1.bf16.msra.mxu0 %v1590
      %1650 = vmatprep.subr.bf16.mxu0 0
      %1651 = vmatpush1.bf16.msra.mxu0 %v1591
      %1652 = vmatprep.subr.bf16.mxu0 0
      %1653 = vmatpush1.bf16.msra.mxu0 %v1646
      %1654 = vmatprep.subr.bf16.mxu0 0
      %1655 = vmatpush1.bf16.msra.mxu0 0
      %1656 = vmatprep.subr.bf16.mxu0 0
      %1657 = vmatpush1.bf16.msra.mxu0 0
      %1658 = vmatprep.subr.bf16.mxu0 0
      %1659 = vmatpush1.bf16.msra.mxu0 0
      %1660 = vmatprep.subr.bf16.mxu0 0
      %1661 = vmatpush1.bf16.msra.mxu0 0
      %1662 = vmatprep.subr.bf16.mxu0 0
      %1663 = vmatpush1.bf16.msra.mxu0 0
      %1664 = vmatprep.subr.bf16.mxu0 0
      %1665 = vmatpush1.bf16.msra.mxu0 0
      %1666 = vmatprep.subr.bf16.mxu0 0
      %1667 = vmatpush1.bf16.msra.mxu0 0
      %1668 = vmatprep.subr.bf16.mxu0 0
      %1669 = vmatpush1.bf16.msra.mxu0 0
      %1670 = vmatprep.subr.bf16.mxu0 0
      %1671 = vmatpush1.bf16.msra.mxu0 0
      %1672 = vmatprep.subr.bf16.mxu0 0
      %1673 = vmatpush1.bf16.msra.mxu0 0
      %1674 = vmatprep.subr.bf16.mxu0 0
      %1675 = vmatpush1.bf16.msra.mxu0 0
      %1676 = vmatprep.subr.bf16.mxu0 0
      %1677 = vmatpush1.bf16.msra.mxu0 0
      %1678 = vmatprep.subr.bf16.mxu0 0
      %1679 = vmatpush1.bf16.msra.mxu0 0
      %1680 = vmatprep.mubr.bf16.mxu0 0
      %1681 = vmatmul.mubr.bf16.gmra.mrb[0].mxu0 %v1597
      %v1682 = vpop.f32.mrb[0].mxu0
      %v1683 = vadd.f32 0.0, %v1682
      %v1684 = vpop.f32.mrb[0].mxu0
      %v1685 = vpop.f32.mrb[0].mxu0
      %v1686 = vadd.f32 0.0, %v1685
      %v1687 = vpop.f32.mrb[0].mxu0
      %1688 = vmatprep.mubr.bf16.mxu0 0
      %1689 = vmatmul.mubr.bf16.gmra.mrb[0].mxu0 %v1600
      %v1690 = vpop.f32.mrb[0].mxu0
      %v1691 = vadd.f32 0.0, %v1690
      %v1692 = vpop.f32.mrb[0].mxu0
      %v1693 = vpop.f32.mrb[0].mxu0
      %v1694 = vadd.f32 0.0, %v1693
      %v1695 = vpop.f32.mrb[0].mxu0
      %1696 = vmatprep.mubr.bf16.mxu0 0
      %1697 = vmatmul.mubr.bf16.gmra.mrb[0].mxu0 %v1603
      %v1698 = vpop.f32.mrb[0].mxu0
      %v1699 = vadd.f32 0.0, %v1698
      %v1700 = vpop.f32.mrb[0].mxu0
      %v1701 = vpop.f32.mrb[0].mxu0
      %v1702 = vadd.f32 0.0, %v1701
      %v1703 = vpop.f32.mrb[0].mxu0
      %1704 = vmatprep.mubr.bf16.mxu0 0
      %1705 = vmatmul.mubr.bf16.gmra.mrb[0].mxu0 %v1606
      %v1706 = vpop.f32.mrb[0].mxu0
      %v1707 = vadd.f32 0.0, %v1706
      %v1708 = vpop.f32.mrb[0].mxu0
      %v1709 = vpop.f32.mrb[0].mxu0
      %v1710 = vadd.f32 0.0, %v1709
      %v1711 = vpop.f32.mrb[0].mxu0
      %1712 = vmatprep.mubr.bf16.mxu0 0
      %1713 = vmatmul.mubr.bf16.gmra.mrb[0].mxu0 %v1609
      %v1714 = vpop.f32.mrb[0].mxu0
      %v1715 = vadd.f32 0.0, %v1714
      %v1716 = vpop.f32.mrb[0].mxu0
      %v1717 = vpop.f32.mrb[0].mxu0
      %v1718 = vadd.f32 0.0, %v1717
      %v1719 = vpop.f32.mrb[0].mxu0
      %1720 = vmatprep.mubr.bf16.mxu0 0
      %1721 = vmatmul.mubr.bf16.gmra.mrb[0].mxu0 %v1612
      %v1722 = vpop.f32.mrb[0].mxu0
      %v1723 = vadd.f32 0.0, %v1722
      %v1724 = vpop.f32.mrb[0].mxu0
      %v1725 = vpop.f32.mrb[0].mxu0
      %v1726 = vadd.f32 0.0, %v1725
      %v1727 = vpop.f32.mrb[0].mxu0
      %1728 = vmatprep.mubr.bf16.mxu0 0
      %1729 = vmatmul.mubr.bf16.gmra.mrb[0].mxu0 %v1615
      %v1730 = vpop.f32.mrb[0].mxu0
      %v1731 = vadd.f32 0.0, %v1730
      %v1732 = vpop.f32.mrb[0].mxu0
      %v1733 = vpop.f32.mrb[0].mxu0
      %v1734 = vadd.f32 0.0, %v1733
      %v1735 = vpop.f32.mrb[0].mxu0
      %1736 = vmatprep.mubr.bf16.mxu0 0
      %1737 = vmatmul.mubr.bf16.gmra.mrb[0].mxu0 %v1618
      %v1738 = vpop.f32.mrb[0].mxu0
      %v1739 = vadd.f32 0.0, %v1738
      %v1740 = vpop.f32.mrb[0].mxu0
      %v1741 = vpop.f32.mrb[0].mxu0
      %v1742 = vadd.f32 0.0, %v1741
      %v1743 = vpop.f32.mrb[0].mxu0
      %1744 = vmatprep.mubr.bf16.mxu0 0
      %1745 = vmatmul.mubr.bf16.gmra.mrb[0].mxu0 %v1621
      %v1746 = vpop.f32.mrb[0].mxu0
      %v1747 = vadd.f32 0.0, %v1746
      %v1748 = vpop.f32.mrb[0].mxu0
      %v1749 = vpop.f32.mrb[0].mxu0
      %v1750 = vadd.f32 0.0, %v1749
      %v1751 = vpop.f32.mrb[0].mxu0
      %1752 = vmatprep.mubr.bf16.mxu0 0
      %1753 = vmatmul.mubr.bf16.gmra.mrb[0].mxu0 %v1624
      %v1754 = vpop.f32.mrb[0].mxu0
      %v1755 = vadd.f32 0.0, %v1754
      %v1756 = vpop.f32.mrb[0].mxu0
      %v1757 = vpop.f32.mrb[0].mxu0
      %v1758 = vadd.f32 0.0, %v1757
      %v1759 = vpop.f32.mrb[0].mxu0
      %1760 = vmatprep.mubr.bf16.mxu0 0
      %1761 = vmatmul.mubr.bf16.gmra.mrb[0].mxu0 %v1627
      %v1762 = vpop.f32.mrb[0].mxu0
      %v1763 = vadd.f32 0.0, %v1762
      %v1764 = vpop.f32.mrb[0].mxu0
      %v1765 = vpop.f32.mrb[0].mxu0
      %v1766 = vadd.f32 0.0, %v1765
      %v1767 = vpop.f32.mrb[0].mxu0
      %1768 = vmatprep.mubr.bf16.mxu0 0
      %1769 = vmatmul.mubr.bf16.gmra.mrb[0].mxu0 %v1630
      %v1770 = vpop.f32.mrb[0].mxu0
      %v1771 = vadd.f32 0.0, %v1770
      %v1772 = vpop.f32.mrb[0].mxu0
      %v1773 = vpop.f32.mrb[0].mxu0
      %v1774 = vadd.f32 0.0, %v1773
      %v1775 = vpop.f32.mrb[0].mxu0
      %1776 = vmatprep.mubr.bf16.mxu0 0
      %1777 = vmatmul.mubr.bf16.gmra.mrb[0].mxu0 %v1633
      %v1778 = vpop.f32.mrb[0].mxu0
      %v1779 = vadd.f32 0.0, %v1778
      %v1780 = vpop.f32.mrb[0].mxu0
      %v1781 = vpop.f32.mrb[0].mxu0
      %v1782 = vadd.f32 0.0, %v1781
      %v1783 = vpop.f32.mrb[0].mxu0
      %1784 = vmatprep.mubr.bf16.mxu0 0
      %1785 = vmatmul.mubr.bf16.gmra.mrb[0].mxu0 %v1636
      %v1786 = vpop.f32.mrb[0].mxu0
      %v1787 = vadd.f32 0.0, %v1786
      %v1788 = vpop.f32.mrb[0].mxu0
      %v1789 = vpop.f32.mrb[0].mxu0
      %v1790 = vadd.f32 0.0, %v1789
      %v1791 = vpop.f32.mrb[0].mxu0
      %1792 = vmatprep.mubr.bf16.mxu0 0
      %1793 = vmatmul.mubr.bf16.gmra.mrb[0].mxu0 %v1639
      %v1794 = vpop.f32.mrb[0].mxu0
      %v1795 = vadd.f32 0.0, %v1794
      %v1796 = vpop.f32.mrb[0].mxu0
      %v1797 = vpop.f32.mrb[0].mxu0
      %v1798 = vadd.f32 0.0, %v1797
      %v1799 = vpop.f32.mrb[0].mxu0
      %1800 = vmatprep.mubr.bf16.mxu0 0
      %1801 = vmatmul.mubr.bf16.gmra.mrb[0].mxu0 %v1642
      %v1802 = vpop.f32.mrb[0].mxu0
      %v1803 = vadd.f32 0.0, %v1802
      %v1804 = vpop.f32.mrb[0].mxu0
      %v1805 = vpop.f32.mrb[0].mxu0
      %v1806 = vadd.f32 0.0, %v1805
      %v1807 = vpop.f32.mrb[0].mxu0
      %1808 = vdwg.mxu0
      %v1809 = vsel %vm1295, %v1683, 0.0
      %v1810 = vsel %vm1295, %v1686, 0.0
      %v1811 = vadd.f32 %v1809, %v1810
      %v1812 = vsel %vm1295, %v1691, 0.0
      %v1813 = vadd.f32 %v1811, %v1812
      %v1814 = vsel %vm1295, %v1694, 0.0
      %v1815 = vadd.f32 %v1813, %v1814
      %v1816 = vsel %vm1295, %v1699, 0.0
      %v1817 = vadd.f32 %v1815, %v1816
      %v1818 = vsel %vm1295, %v1702, 0.0
      %v1819 = vadd.f32 %v1817, %v1818
      %v1820 = vsel %vm1295, %v1707, 0.0
      %v1821 = vadd.f32 %v1819, %v1820
      %v1822 = vsel %vm1295, %v1710, 0.0
      %v1823 = vadd.f32 %v1821, %v1822
      %v1824 = vsel %vm1295, %v1715, 0.0
      %v1825 = vadd.f32 %v1823, %v1824
      %v1826 = vsel %vm1295, %v1718, 0.0
      %v1827 = vadd.f32 %v1825, %v1826
      %v1828 = vsel %vm1295, %v1723, 0.0
      %v1829 = vadd.f32 %v1827, %v1828
      %v1830 = vsel %vm1295, %v1726, 0.0
      %v1831 = vadd.f32 %v1829, %v1830
      %v1832 = vsel %vm1295, %v1731, 0.0
      %v1833 = vadd.f32 %v1831, %v1832
      %v1834 = vsel %vm1295, %v1734, 0.0
      %v1835 = vadd.f32 %v1833, %v1834
      %v1836 = vsel %vm1295, %v1739, 0.0
      %v1837 = vadd.f32 %v1835, %v1836
      %v1838 = vsel %vm1295, %v1742, 0.0
      %v1839 = vadd.f32 %v1837, %v1838
      %v1840 = vsel %vm1295, %v1747, 0.0
      %v1841 = vadd.f32 %v1839, %v1840
      %v1842 = vsel %vm1295, %v1750, 0.0
      %v1843 = vadd.f32 %v1841, %v1842
      %v1844 = vsel %vm1295, %v1755, 0.0
      %v1845 = vadd.f32 %v1843, %v1844
      %v1846 = vsel %vm1295, %v1758, 0.0
      %v1847 = vadd.f32 %v1845, %v1846
      %v1848 = vsel %vm1295, %v1763, 0.0
      %v1849 = vadd.f32 %v1847, %v1848
      %v1850 = vsel %vm1295, %v1766, 0.0
      %v1851 = vadd.f32 %v1849, %v1850
      %v1852 = vsel %vm1295, %v1771, 0.0
      %v1853 = vadd.f32 %v1851, %v1852
      %v1854 = vsel %vm1295, %v1774, 0.0
      %v1855 = vadd.f32 %v1853, %v1854
      %v1856 = vsel %vm1295, %v1779, 0.0
      %v1857 = vadd.f32 %v1855, %v1856
      %v1858 = vsel %vm1295, %v1782, 0.0
      %v1859 = vadd.f32 %v1857, %v1858
      %v1860 = vsel %vm1295, %v1787, 0.0
      %v1861 = vadd.f32 %v1859, %v1860
      %v1862 = vsel %vm1295, %v1790, 0.0
      %v1863 = vadd.f32 %v1861, %v1862
      %v1864 = vsel %vm1295, %v1795, 0.0
      %v1865 = vadd.f32 %v1863, %v1864
      %v1866 = vsel %vm1295, %v1798, 0.0
      %v1867 = vadd.f32 %v1865, %v1866
      %v1868 = vsel %vm1295, %v1803, 0.0
      %v1869 = vadd.f32 %v1867, %v1868
      %v1870 = vsel %vm1295, %v1806, 0.0
      %v1871 = vadd.f32 %v1869, %v1870
      %v1872 = vrot.slane %v1871, 4
      %v1873 = vadd.f32 %v1871, %v1872
      %v1874 = vrot.slane %v1873, 2
      %v1875 = vadd.f32 %v1873, %v1874
      %v1876 = vrot.slane %v1875, 1
      %v1877 = vadd.f32 %v1875, %v1876
      %vm1878 = vcmask 24576
      %1879 = vst.msk [vmem:[%s181] sm:$0x1] %vm1878, %v1877
      %v1880 = vmul.f32 %v1683, %v1683
      %v1881 = vmul.f32 %v1686, %v1686
      %v1882 = vmul.f32 %v1691, %v1691
      %v1883 = vmul.f32 %v1694, %v1694
      %v1884 = vmul.f32 %v1699, %v1699
      %v1885 = vmul.f32 %v1702, %v1702
      %v1886 = vmul.f32 %v1707, %v1707
      %v1887 = vmul.f32 %v1710, %v1710
      %v1888 = vmul.f32 %v1715, %v1715
      %v1889 = vmul.f32 %v1718, %v1718
      %v1890 = vmul.f32 %v1723, %v1723
      %v1891 = vmul.f32 %v1726, %v1726
      %v1892 = vmul.f32 %v1731, %v1731
      %v1893 = vmul.f32 %v1734, %v1734
      %v1894 = vmul.f32 %v1739, %v1739
      %v1895 = vmul.f32 %v1742, %v1742
      %v1896 = vmul.f32 %v1747, %v1747
      %v1897 = vmul.f32 %v1750, %v1750
      %v1898 = vmul.f32 %v1755, %v1755
      %v1899 = vmul.f32 %v1758, %v1758
      %v1900 = vmul.f32 %v1763, %v1763
      %v1901 = vmul.f32 %v1766, %v1766
      %v1902 = vmul.f32 %v1771, %v1771
      %v1903 = vmul.f32 %v1774, %v1774
      %v1904 = vmul.f32 %v1779, %v1779
      %v1905 = vmul.f32 %v1782, %v1782
      %v1906 = vmul.f32 %v1787, %v1787
      %v1907 = vmul.f32 %v1790, %v1790
      %v1908 = vmul.f32 %v1795, %v1795
      %v1909 = vmul.f32 %v1798, %v1798
      %v1910 = vmul.f32 %v1803, %v1803
      %v1911 = vmul.f32 %v1806, %v1806
      %v1912 = vsel %vm1295, %v1880, 0.0
      %v1913 = vsel %vm1295, %v1881, 0.0
      %v1914 = vadd.f32 %v1912, %v1913
      %v1915 = vsel %vm1295, %v1882, 0.0
      %v1916 = vadd.f32 %v1914, %v1915
      %v1917 = vsel %vm1295, %v1883, 0.0
      %v1918 = vadd.f32 %v1916, %v1917
      %v1919 = vsel %vm1295, %v1884, 0.0
      %v1920 = vadd.f32 %v1918, %v1919
      %v1921 = vsel %vm1295, %v1885, 0.0
      %v1922 = vadd.f32 %v1920, %v1921
      %v1923 = vsel %vm1295, %v1886, 0.0
      %v1924 = vadd.f32 %v1922, %v1923
      %v1925 = vsel %vm1295, %v1887, 0.0
      %v1926 = vadd.f32 %v1924, %v1925
      %v1927 = vsel %vm1295, %v1888, 0.0
      %v1928 = vadd.f32 %v1926, %v1927
      %v1929 = vsel %vm1295, %v1889, 0.0
      %v1930 = vadd.f32 %v1928, %v1929
      %v1931 = vsel %vm1295, %v1890, 0.0
      %v1932 = vadd.f32 %v1930, %v1931
      %v1933 = vsel %vm1295, %v1891, 0.0
      %v1934 = vadd.f32 %v1932, %v1933
      %v1935 = vsel %vm1295, %v1892, 0.0
      %v1936 = vadd.f32 %v1934, %v1935
      %v1937 = vsel %vm1295, %v1893, 0.0
      %v1938 = vadd.f32 %v1936, %v1937
      %v1939 = vsel %vm1295, %v1894, 0.0
      %v1940 = vadd.f32 %v1938, %v1939
      %v1941 = vsel %vm1295, %v1895, 0.0
      %v1942 = vadd.f32 %v1940, %v1941
      %v1943 = vsel %vm1295, %v1896, 0.0
      %v1944 = vadd.f32 %v1942, %v1943
      %v1945 = vsel %vm1295, %v1897, 0.0
      %v1946 = vadd.f32 %v1944, %v1945
      %v1947 = vsel %vm1295, %v1898, 0.0
      %v1948 = vadd.f32 %v1946, %v1947
      %v1949 = vsel %vm1295, %v1899, 0.0
      %v1950 = vadd.f32 %v1948, %v1949
      %v1951 = vsel %vm1295, %v1900, 0.0
      %v1952 = vadd.f32 %v1950, %v1951
      %v1953 = vsel %vm1295, %v1901, 0.0
      %v1954 = vadd.f32 %v1952, %v1953
      %v1955 = vsel %vm1295, %v1902, 0.0
      %v1956 = vadd.f32 %v1954, %v1955
      %v1957 = vsel %vm1295, %v1903, 0.0
      %v1958 = vadd.f32 %v1956, %v1957
      %v1959 = vsel %vm1295, %v1904, 0.0
      %v1960 = vadd.f32 %v1958, %v1959
      %v1961 = vsel %vm1295, %v1905, 0.0
      %v1962 = vadd.f32 %v1960, %v1961
      %v1963 = vsel %vm1295, %v1906, 0.0
      %v1964 = vadd.f32 %v1962, %v1963
      %v1965 = vsel %vm1295, %v1907, 0.0
      %v1966 = vadd.f32 %v1964, %v1965
      %v1967 = vsel %vm1295, %v1908, 0.0
      %v1968 = vadd.f32 %v1966, %v1967
      %v1969 = vsel %vm1295, %v1909, 0.0
      %v1970 = vadd.f32 %v1968, %v1969
      %v1971 = vsel %vm1295, %v1910, 0.0
      %v1972 = vadd.f32 %v1970, %v1971
      %v1973 = vsel %vm1295, %v1911, 0.0
      %v1974 = vadd.f32 %v1972, %v1973
      %v1975 = vrot.slane %v1974, 4
      %v1976 = vadd.f32 %v1974, %v1975
      %v1977 = vrot.slane %v1976, 2
      %v1978 = vadd.f32 %v1976, %v1977
      %v1979 = vrot.slane %v1978, 1
      %v1980 = vadd.f32 %v1978, %v1979
      %1981 = vst.msk [vmem:[%s181 + $0x1] sm:$0x1] %vm1878, %v1980
      %1982 = vst.msk [vmem:[%s177] sm:$0xff] %vm1295, %v1683
      %1983 = vst.msk [vmem:[%s177 + $0x8] sm:$0xff] %vm1295, %v1686
      %1984 = vst.msk [vmem:[%s177 + $0x10] sm:$0xff] %vm1295, %v1691
      %1985 = vst.msk [vmem:[%s177 + $0x18] sm:$0xff] %vm1295, %v1694
      %1986 = vst.msk [vmem:[%s177 + $0x20] sm:$0xff] %vm1295, %v1699
      %1987 = vst.msk [vmem:[%s177 + $0x28] sm:$0xff] %vm1295, %v1702
      %1988 = vst.msk [vmem:[%s177 + $0x30] sm:$0xff] %vm1295, %v1707
      %1989 = vst.msk [vmem:[%s177 + $0x38] sm:$0xff] %vm1295, %v1710
      %1990 = vst.msk [vmem:[%s177 + $0x40] sm:$0xff] %vm1295, %v1715
      %1991 = vst.msk [vmem:[%s177 + $0x48] sm:$0xff] %vm1295, %v1718
      %1992 = vst.msk [vmem:[%s177 + $0x50] sm:$0xff] %vm1295, %v1723
      %1993 = vst.msk [vmem:[%s177 + $0x58] sm:$0xff] %vm1295, %v1726
      %1994 = vst.msk [vmem:[%s177 + $0x60] sm:$0xff] %vm1295, %v1731
      %1995 = vst.msk [vmem:[%s177 + $0x68] sm:$0xff] %vm1295, %v1734
      %1996 = vst.msk [vmem:[%s177 + $0x70] sm:$0xff] %vm1295, %v1739
      %1997 = vst.msk [vmem:[%s177 + $0x78] sm:$0xff] %vm1295, %v1742
      %1998 = vst.msk [vmem:[%s177 + $0x80] sm:$0xff] %vm1295, %v1747
      %1999 = vst.msk [vmem:[%s177 + $0x88] sm:$0xff] %vm1295, %v1750
      %2000 = vst.msk [vmem:[%s177 + $0x90] sm:$0xff] %vm1295, %v1755
      %2001 = vst.msk [vmem:[%s177 + $0x98] sm:$0xff] %vm1295, %v1758
      %2002 = vst.msk [vmem:[%s177 + $0xa0] sm:$0xff] %vm1295, %v1763
      %2003 = vst.msk [vmem:[%s177 + $0xa8] sm:$0xff] %vm1295, %v1766
      %2004 = vst.msk [vmem:[%s177 + $0xb0] sm:$0xff] %vm1295, %v1771
      %2005 = vst.msk [vmem:[%s177 + $0xb8] sm:$0xff] %vm1295, %v1774
      %2006 = vst.msk [vmem:[%s177 + $0xc0] sm:$0xff] %vm1295, %v1779
      %2007 = vst.msk [vmem:[%s177 + $0xc8] sm:$0xff] %vm1295, %v1782
      %2008 = vst.msk [vmem:[%s177 + $0xd0] sm:$0xff] %vm1295, %v1787
      %2009 = vst.msk [vmem:[%s177 + $0xd8] sm:$0xff] %vm1295, %v1790
      %2010 = vst.msk [vmem:[%s177 + $0xe0] sm:$0xff] %vm1295, %v1795
      %2011 = vst.msk [vmem:[%s177 + $0xe8] sm:$0xff] %vm1295, %v1798
      %2012 = vst.msk [vmem:[%s177 + $0xf0] sm:$0xff] %vm1295, %v1803
      %2013 = vst.msk [vmem:[%s177 + $0xf8] sm:$0xff] %vm1295, %v1806
      %p2014 = scmp.lt.s32.totalorder %s15, 1
      %s2015 = scalar_select %p2014, %s15, 1
      %s2016 = smul.addr %s2015, 32
      %s2017 = smul.addr %s2016, 8
      %s2018 = scalar_lea.vmem %s2, %s2017
      %p2019 = scmp.lt.s32.totalorder %s15, 1
      %s2020 = scalar_select %p2019, %s15, 1
      %s2021 = smul.addr %s2020, 2
      %s2022 = scalar_lea.vmem %s3, %s2021
      // Predicated region
      $region29: #{basic_block_pallas.3} parent=27 // pred_check
        %p2023 = pneg %p80
      $region30: #{basic_block_pallas.3} parent=27 // pred_check_branch
        %2025 = sbr.rel (%p2023) target = $region32
      $region31: #{basic_block_pallas.3} parent=27 // pred_region
        _
      $region32: #{basic_block_pallas.3} parent=27 // pred_fallthru
        _
      // Predicated region
      $region33: #{basic_block_pallas.3} parent=27 // pred_check
        %p2026 = pneg %p106
      $region34: #{basic_block_pallas.3} parent=27 // pred_check_branch
        %2028 = sbr.rel (%p2026) target = $region36
      $region35: #{basic_block_pallas.3} parent=27 // pred_region
        _
      $region36: #{basic_block_pallas.3} parent=27 // pred_fallthru
        _
    $region28: #{basic_block_pallas.3} parent=5 // pred_fallthru
      _
    %p2029 = scmp.le.s32.totalorder 2, %s10
    // Predicated region
    $region37: #{basic_block_pallas.3} parent=5 // pred_check
      %p2030 = pneg %p2029
    $region38: #{basic_block_pallas.3} parent=5 // pred_check_branch
      %2032 = sbr.rel (%p2030) target = $region40
    $region39: #{basic_block_pallas.3} parent=5 // pred_region
      %s2033 = ssub.s32 %s10, 2
      // Predicated region
      $region41: #{basic_block_pallas.3} parent=39 // pred_check
        %p2034 = pneg %p86
      $region42: #{basic_block_pallas.3} parent=39 // pred_check_branch
        %2036 = sbr.rel (%p2034) target = $region44
      $region43: #{basic_block_pallas.3} parent=39 // pred_region
        %p2037 = scmp.lt.s32.totalorder %s16, 1
        %s2038 = scalar_select %p2037, %s16, 1
        %s2039 = smul.addr %s2038, 32
        %s2040 = smul.addr %s2039, 8
        %s2041 = scalar_lea.vmem %s2, %s2040
      $region44: #{basic_block_pallas.3} parent=39 // pred_fallthru
        _
      // Predicated region
      $region45: #{basic_block_pallas.3} parent=39 // pred_check
        %p2042 = pneg %p112
      $region46: #{basic_block_pallas.3} parent=39 // pred_check_branch
        %2044 = sbr.rel (%p2042) target = $region48
      $region47: #{basic_block_pallas.3} parent=39 // pred_region
        %p2045 = scmp.lt.s32.totalorder %s16, 1
        %s2046 = scalar_select %p2045, %s16, 1
        %s2047 = smul.addr %s2046, 2
        %s2048 = scalar_lea.vmem %s3, %s2047
      $region48: #{basic_block_pallas.3} parent=39 // pred_fallthru
        _
    $region40: #{basic_block_pallas.3} parent=5 // pred_fallthru
      _
  $region6: #{basic_block_pallas.3} parent=0 // loop_footer
    %s14 = sadd.s32 1, %s10
  $region7: #{basic_block_pallas.3} parent=0 // loop_footer_branch
    %9 = sbr.rel target = $region3
  $region8: #{basic_block_pallas.3} parent=0 // loop_exit
    _

// kernel: basic_block_pallas.4
$region0: #{basic_block_pallas.4}
  #allocation0 [shape = 'u32[]', space=smem, size = 0x4, offset = 0x4, fixed_abs, tag = 'smem constant byte address 0x4 - core index']
  #allocation1 [shape = 'u32[144,128]{1,0:T(1,128)}', space=vmem, size = 0x12000, scoped, tag = 'internal scratch']
  %s0 = inlined_call_operand.vmem [shape: f32[2,18,18,4], index: 0, kind: input, shape index: {}]
  %s1 = inlined_call_operand.vmem [shape: f32[1,1,4], index: 1, kind: input, shape index: {}]
  %s2 = inlined_call_operand.vmem [shape: f32[1,1,4], index: 2, kind: input, shape index: {}]
  %s3 = inlined_call_operand.vmem [shape: bf16[36,4], index: 3, kind: input, shape index: {}]
  %s4 = inlined_call_operand.vmem [shape: f32[2,16,16,4], index: 4, kind: output, shape index: {0}]
  %s5 = inlined_call_operand.vmem [shape: f32[2,2,4], index: 5, kind: output, shape index: {1}]
  %6 = xla_tuple %s4, %s5
  %s7 = sld [smem:[#allocation0]]
  $region57: #{basic_block_pallas.4} parent=0
    _
  %s9 = ssub.s32 1, %s7
  %s10 = scalar_select 0, %s9, %s7
  loop: start=0, step=1, limit=4
  $region2: #{basic_block_pallas.4} parent=0 // loop_pre_header
    _
  $region3: #{basic_block_pallas.4} parent=0 // loop_header
    %s12 = sphi 0, %s16
    %p13 = scmp.ge.s32.totalorder %s12, 4
    %s22 = sphi 0, %s24
    %s25 = sphi 0, %s22
    %s26 = sphi 0, %s25
    %s42 = sphi 0, %s26
    %s46 = sphi 0, %s46
    %s48 = sphi 0, %s46
    %s49 = sphi 0, %s48
    %s63 = sphi 0, %s49
    %s67 = sphi 0, %s67
    %s69 = sphi 0, %s67
    %s70 = sphi 0, %s69
    %s84 = sphi 0, %s70
    %s88 = sphi 0, %s88
    %s90 = sphi 0, %s88
    %s91 = sphi 0, %s90
    %s105 = sphi 0, %s91
    %s111 = sphi 0, %s113
    %s114 = sphi 0, %s111
    %s115 = sphi 0, %s114
    %s131 = sphi 0, %s115
    %s137 = sphi 0, %s139
    %s140 = sphi 0, %s137
    %s141 = sphi 0, %s140
    %s157 = sphi 0, %s141
  $region4: #{basic_block_pallas.4} parent=0 // loop_header_branch
    %15 = sbr.rel (%p13) target = $region8
  $region5: #{basic_block_pallas.4} parent=0 // loop_body
    %s17 = ssub.s32 %s12, 1
    %s18 = ssub.s32 %s12, 2
    %s19 = sadd.s32 %s12, 1
    %s20 = ssub.s32 %s12, %s19
    %p21 = scmp.eq.s32.totalorder %s20, 0
    %s23 = sadd.s32 %s22, 1
    %s24 = scalar_select %p21, %s22, %s23
    %p27 = pneg %p21
    %p28 = scmp.eq.s32.totalorder %s12, 1
    %p29 = por %p27, %p28
    %p30 = scmp.ne.s32.totalorder %s22, %s25
    %p31 = scmp.eq.s32.totalorder %s12, 0
    %p32 = por %p30, %p31
    %p33 = scmp.ne.s32.totalorder %s22, %s25
    %p34 = scmp.eq.s32.totalorder %s17, 1
    %p35 = por %p33, %p34
    %p36 = scmp.ne.s32.totalorder %s25, %s26
    %p37 = scmp.eq.s32.totalorder %s17, 0
    %p38 = por %p36, %p37
    %p39 = scmp.ne.s32.totalorder %s25, %s26
    %p40 = scmp.eq.s32.totalorder %s18, 1
    %p41 = por %p39, %p40
    %p43 = scmp.ne.s32.totalorder %s26, %s42
    %p44 = scmp.eq.s32.totalorder %s18, 0
    %p45 = por %p43, %p44
    %s47 = sadd.s32 %s46, 1
    %p50 = scmp.eq.s32.totalorder %s12, 1
    %p51 = scmp.ne.s32.totalorder %s46, %s48
    %p52 = scmp.eq.s32.totalorder %s12, 0
    %p53 = por %p51, %p52
    %p54 = scmp.ne.s32.totalorder %s46, %s48
    %p55 = scmp.eq.s32.totalorder %s17, 1
    %p56 = por %p54, %p55
    %p57 = scmp.ne.s32.totalorder %s48, %s49
    %p58 = scmp.eq.s32.totalorder %s17, 0
    %p59 = por %p57, %p58
    %p60 = scmp.ne.s32.totalorder %s48, %s49
    %p61 = scmp.eq.s32.totalorder %s18, 1
    %p62 = por %p60, %p61
    %p64 = scmp.ne.s32.totalorder %s49, %s63
    %p65 = scmp.eq.s32.totalorder %s18, 0
    %p66 = por %p64, %p65
    %s68 = sadd.s32 %s67, 1
    %p71 = scmp.eq.s32.totalorder %s12, 1
    %p72 = scmp.ne.s32.totalorder %s67, %s69
    %p73 = scmp.eq.s32.totalorder %s12, 0
    %p74 = por %p72, %p73
    %p75 = scmp.ne.s32.totalorder %s67, %s69
    %p76 = scmp.eq.s32.totalorder %s17, 1
    %p77 = por %p75, %p76
    %p78 = scmp.ne.s32.totalorder %s69, %s70
    %p79 = scmp.eq.s32.totalorder %s17, 0
    %p80 = por %p78, %p79
    %p81 = scmp.ne.s32.totalorder %s69, %s70
    %p82 = scmp.eq.s32.totalorder %s18, 1
    %p83 = por %p81, %p82
    %p85 = scmp.ne.s32.totalorder %s70, %s84
    %p86 = scmp.eq.s32.totalorder %s18, 0
    %p87 = por %p85, %p86
    %s89 = sadd.s32 %s88, 1
    %p92 = scmp.eq.s32.totalorder %s12, 1
    %p93 = scmp.ne.s32.totalorder %s88, %s90
    %p94 = scmp.eq.s32.totalorder %s12, 0
    %p95 = por %p93, %p94
    %p96 = scmp.ne.s32.totalorder %s88, %s90
    %p97 = scmp.eq.s32.totalorder %s17, 1
    %p98 = por %p96, %p97
    %p99 = scmp.ne.s32.totalorder %s90, %s91
    %p100 = scmp.eq.s32.totalorder %s17, 0
    %p101 = por %p99, %p100
    %p102 = scmp.ne.s32.totalorder %s90, %s91
    %p103 = scmp.eq.s32.totalorder %s18, 1
    %p104 = por %p102, %p103
    %p106 = scmp.ne.s32.totalorder %s91, %s105
    %p107 = scmp.eq.s32.totalorder %s18, 0
    %p108 = por %p106, %p107
    %s109 = ssub.s32 %s12, %s19
    %p110 = scmp.eq.s32.totalorder %s109, 0
    %s112 = sadd.s32 %s111, 1
    %s113 = scalar_select %p110, %s111, %s112
    %p116 = pneg %p110
    %p117 = scmp.eq.s32.totalorder %s12, 1
    %p118 = por %p116, %p117
    %p119 = scmp.ne.s32.totalorder %s111, %s114
    %p120 = scmp.eq.s32.totalorder %s12, 0
    %p121 = por %p119, %p120
    %p122 = scmp.ne.s32.totalorder %s111, %s114
    %p123 = scmp.eq.s32.totalorder %s17, 1
    %p124 = por %p122, %p123
    %p125 = scmp.ne.s32.totalorder %s114, %s115
    %p126 = scmp.eq.s32.totalorder %s17, 0
    %p127 = por %p125, %p126
    %p128 = scmp.ne.s32.totalorder %s114, %s115
    %p129 = scmp.eq.s32.totalorder %s18, 1
    %p130 = por %p128, %p129
    %p132 = scmp.ne.s32.totalorder %s115, %s131
    %p133 = scmp.eq.s32.totalorder %s18, 0
    %p134 = por %p132, %p133
    %s135 = ssub.s32 %s12, %s19
    %p136 = scmp.eq.s32.totalorder %s135, 0
    %s138 = sadd.s32 %s137, 1
    %s139 = scalar_select %p136, %s137, %s138
    %p142 = pneg %p136
    %p143 = scmp.eq.s32.totalorder %s12, 1
    %p144 = por %p142, %p143
    %p145 = scmp.ne.s32.totalorder %s137, %s140
    %p146 = scmp.eq.s32.totalorder %s12, 0
    %p147 = por %p145, %p146
    %p148 = scmp.ne.s32.totalorder %s137, %s140
    %p149 = scmp.eq.s32.totalorder %s17, 1
    %p150 = por %p148, %p149
    %p151 = scmp.ne.s32.totalorder %s140, %s141
    %p152 = scmp.eq.s32.totalorder %s17, 0
    %p153 = por %p151, %p152
    %p154 = scmp.ne.s32.totalorder %s140, %s141
    %p155 = scmp.eq.s32.totalorder %s18, 1
    %p156 = por %p154, %p155
    %p158 = scmp.ne.s32.totalorder %s141, %s157
    %p159 = scmp.eq.s32.totalorder %s18, 0
    %p160 = por %p158, %p159
    %p161 = scmp.le.s32.totalorder 1, %s12
    %p162 = scmp.lt.s32.totalorder %s12, 3
    %p163 = pnand %p161, %p162
    %p164 = pneg %p163
    // Predicated region
    $region9: #{basic_block_pallas.4} parent=5 // pred_check
      _
    $region10: #{basic_block_pallas.4} parent=5 // pred_check_branch
      %166 = sbr.rel (%p163) target = $region12
    $region11: #{basic_block_pallas.4} parent=5 // pred_region
      %s167 = ssub.s32 %s12, 1
      // Predicated region
      $region13: #{basic_block_pallas.4} parent=11 // pred_check
        %p168 = pneg %p59
      $region14: #{basic_block_pallas.4} parent=11 // pred_check_branch
        %170 = sbr.rel (%p168) target = $region16
      $region15: #{basic_block_pallas.4} parent=11 // pred_region
        _
      $region16: #{basic_block_pallas.4} parent=11 // pred_fallthru
        _
      // Predicated region
      $region17: #{basic_block_pallas.4} parent=11 // pred_check
        %p171 = pneg %p80
      $region18: #{basic_block_pallas.4} parent=11 // pred_check_branch
        %173 = sbr.rel (%p171) target = $region20
      $region19: #{basic_block_pallas.4} parent=11 // pred_region
        _
      $region20: #{basic_block_pallas.4} parent=11 // pred_fallthru
        _
      // Predicated region
      $region21: #{basic_block_pallas.4} parent=11 // pred_check
        %p174 = pneg %p101
      $region22: #{basic_block_pallas.4} parent=11 // pred_check_branch
        %176 = sbr.rel (%p174) target = $region24
      $region23: #{basic_block_pallas.4} parent=11 // pred_region
        _
      $region24: #{basic_block_pallas.4} parent=11 // pred_fallthru
        _
    $region12: #{basic_block_pallas.4} parent=5 // pred_fallthru
      _
    %p177 = scmp.lt.s32.totalorder %s12, 2
    // Predicated region
    $region25: #{basic_block_pallas.4} parent=5 // pred_check
      %p178 = pneg %p177
    $region26: #{basic_block_pallas.4} parent=5 // pred_check_branch
      %180 = sbr.rel (%p178) target = $region28
    $region27: #{basic_block_pallas.4} parent=5 // pred_region
      // Predicated region
      $region29: #{basic_block_pallas.4} parent=27 // pred_check
        %p181 = pneg %p32
      $region30: #{basic_block_pallas.4} parent=27 // pred_check_branch
        %183 = sbr.rel (%p181) target = $region32
      $region31: #{basic_block_pallas.4} parent=27 // pred_region
        %p184 = scmp.lt.s32.totalorder %s12, 1
        %s185 = scalar_select %p184, %s12, 1
        %s186 = smul.addr %s185, 54
        %s187 = smul.addr %s186, 8
        %s188 = scalar_lea.vmem %s0, %s187
      $region32: #{basic_block_pallas.4} parent=27 // pred_fallthru
        _
    $region28: #{basic_block_pallas.4} parent=5 // pred_fallthru
      _
    %p189 = scmp.le.s32.totalorder 1, %s12
    %p190 = scmp.lt.s32.totalorder %s12, 3
    %p191 = pnand %p189, %p190
    %p192 = pneg %p191
    // Predicated region
    $region33: #{basic_block_pallas.4} parent=5 // pred_check
      _
    $region34: #{basic_block_pallas.4} parent=5 // pred_check_branch
      %194 = sbr.rel (%p191) target = $region36
    $region35: #{basic_block_pallas.4} parent=5 // pred_region
      %s195 = ssub.s32 %s12, 1
      %p196 = scmp.lt.s32.totalorder %s17, 1
      %s197 = scalar_select %p196, %s17, 1
      %s198 = smul.addr %s197, 54
      %s199 = smul.addr %s198, 8
      %s200 = scalar_lea.vmem %s0, %s199
      %p201 = pneg %p38
      %p202 = pneg %p35
      %p203 = pneg %p59
      %p204 = pneg %p56
      %p205 = pneg %p80
      %p206 = pneg %p77
      %p207 = pneg %p101
      %p208 = pneg %p98
      %p209 = pneg %p127
      %p210 = pneg %p124
      %p211 = scmp.lt.s32.totalorder %s17, 1
      %s212 = scalar_select %p211, %s17, 1
      %s213 = smul.addr %s212, 32
      %s214 = smul.addr %s213, 8
      %s215 = scalar_lea.vmem %s4, %s214
      %p216 = pneg %p153
      %p217 = pneg %p150
      %p218 = scmp.lt.s32.totalorder %s17, 1
      %s219 = scalar_select %p218, %s17, 1
      %s220 = smul.addr %s219, 2
      %s221 = scalar_lea.vmem %s5, %s220
      %p222 = scmp.lt.s32.totalorder %s17, 1
      %s223 = scalar_select %p222, %s17, 1
      %s224 = smul.addr %s223, 54
      %s225 = smul.addr %s224, 8
      %s226 = scalar_lea.vmem %s0, %s225
      %p227 = scmp.lt.s32.totalorder %s17, 1
      %s228 = scalar_select %p227, %s17, 1
      %s229 = smul.addr %s228, 32
      %s230 = smul.addr %s229, 8
      %s231 = scalar_lea.vmem %s4, %s230
      %p232 = scmp.lt.s32.totalorder %s17, 1
      %s233 = scalar_select %p232, %s17, 1
      %s234 = smul.addr %s233, 2
      %s235 = scalar_lea.vmem %s5, %s234
      %v237 = vld [vmem:[%s226] sm:$0xff]
      %v238 = vld [vmem:[%s226 + $0x8] sm:$0xff]
      %v239 = vld [vmem:[%s226 + $0x10] sm:$0x3]
      %v240 = vld [vmem:[%s226 + $0x18] sm:$0xff]
      %v241 = vld [vmem:[%s226 + $0x20] sm:$0xff]
      %v242 = vld [vmem:[%s226 + $0x28] sm:$0x3]
      %v243 = vld [vmem:[%s226 + $0x30] sm:$0xff]
      %v244 = vld [vmem:[%s226 + $0x38] sm:$0xff]
      %v245 = vld [vmem:[%s226 + $0x40] sm:$0x3]
      %v246 = vld [vmem:[%s226 + $0x48] sm:$0xff]
      %v247 = vld [vmem:[%s226 + $0x50] sm:$0xff]
      %v248 = vld [vmem:[%s226 + $0x58] sm:$0x3]
      %v249 = vld [vmem:[%s226 + $0x60] sm:$0xff]
      %v250 = vld [vmem:[%s226 + $0x68] sm:$0xff]
      %v251 = vld [vmem:[%s226 + $0x70] sm:$0x3]
      %v252 = vld [vmem:[%s226 + $0x78] sm:$0xff]
      %v253 = vld [vmem:[%s226 + $0x80] sm:$0xff]
      %v254 = vld [vmem:[%s226 + $0x88] sm:$0x3]
      %v255 = vld [vmem:[%s226 + $0x90] sm:$0xff]
      %v256 = vld [vmem:[%s226 + $0x98] sm:$0xff]
      %v257 = vld [vmem:[%s226 + $0xa0] sm:$0x3]
      %v258 = vld [vmem:[%s226 + $0xa8] sm:$0xff]
      %v259 = vld [vmem:[%s226 + $0xb0] sm:$0xff]
      %v260 = vld [vmem:[%s226 + $0xb8] sm:$0x3]
      %v261 = vld [vmem:[%s226 + $0xc0] sm:$0xff]
      %v262 = vld [vmem:[%s226 + $0xc8] sm:$0xff]
      %v263 = vld [vmem:[%s226 + $0xd0] sm:$0x3]
      %v264 = vld [vmem:[%s226 + $0xd8] sm:$0xff]
      %v265 = vld [vmem:[%s226 + $0xe0] sm:$0xff]
      %v266 = vld [vmem:[%s226 + $0xe8] sm:$0x3]
      %v267 = vld [vmem:[%s226 + $0xf0] sm:$0xff]
      %v268 = vld [vmem:[%s226 + $0xf8] sm:$0xff]
      %v269 = vld [vmem:[%s226 + $0x100] sm:$0x3]
      %v270 = vld [vmem:[%s226 + $0x108] sm:$0xff]
      %v271 = vld [vmem:[%s226 + $0x110] sm:$0xff]
      %v272 = vld [vmem:[%s226 + $0x118] sm:$0x3]
      %v273 = vld [vmem:[%s226 + $0x120] sm:$0xff]
      %v274 = vld [vmem:[%s226 + $0x128] sm:$0xff]
      %v275 = vld [vmem:[%s226 + $0x130] sm:$0x3]
      %v276 = vld [vmem:[%s226 + $0x138] sm:$0xff]
      %v277 = vld [vmem:[%s226 + $0x140] sm:$0xff]
      %v278 = vld [vmem:[%s226 + $0x148] sm:$0x3]
      %v279 = vld [vmem:[%s226 + $0x150] sm:$0xff]
      %v280 = vld [vmem:[%s226 + $0x158] sm:$0xff]
      %v281 = vld [vmem:[%s226 + $0x160] sm:$0x3]
      %v282 = vld [vmem:[%s226 + $0x168] sm:$0xff]
      %v283 = vld [vmem:[%s226 + $0x170] sm:$0xff]
      %v284 = vld [vmem:[%s226 + $0x178] sm:$0x3]
      %v285 = vld [vmem:[%s226 + $0x180] sm:$0xff]
      %v286 = vld [vmem:[%s226 + $0x188] sm:$0xff]
      %v287 = vld [vmem:[%s226 + $0x190] sm:$0x3]
      %v288 = vld [vmem:[%s226 + $0x198] sm:$0xff]
      %v289 = vld [vmem:[%s226 + $0x1a0] sm:$0xff]
      %v290 = vld [vmem:[%s226 + $0x1a8] sm:$0x3]
      %v291 = vld [vmem:[%s1] sm:$0x1]
      %v293 = vlaneseq
      %v294 = vshrl.u32 %v293, 7
      %v295 = vsub.s32 0, %v294
      %v296 = vrot.slane %v291, %v295
      %v298 = vmul.f32 %v237, %v296
      %v299 = vmul.f32 %v238, %v296
      %v300 = vmul.f32 %v239, %v296
      %v301 = vmul.f32 %v240, %v296
      %v302 = vmul.f32 %v241, %v296
      %v303 = vmul.f32 %v242, %v296
      %v304 = vmul.f32 %v243, %v296
      %v305 = vmul.f32 %v244, %v296
      %v306 = vmul.f32 %v245, %v296
      %v307 = vmul.f32 %v246, %v296
      %v308 = vmul.f32 %v247, %v296
      %v309 = vmul.f32 %v248, %v296
      %v310 = vmul.f32 %v249, %v296
      %v311 = vmul.f32 %v250, %v296
      %v312 = vmul.f32 %v251, %v296
      %v313 = vmul.f32 %v252, %v296
      %v314 = vmul.f32 %v253, %v296
      %v315 = vmul.f32 %v254, %v296
      %v316 = vmul.f32 %v255, %v296
      %v317 = vmul.f32 %v256, %v296
      %v318 = vmul.f32 %v257, %v296
      %v319 = vmul.f32 %v258, %v296
      %v320 = vmul.f32 %v259, %v296
      %v321 = vmul.f32 %v260, %v296
      %v322 = vmul.f32 %v261, %v296
      %v323 = vmul.f32 %v262, %v296
      %v324 = vmul.f32 %v263, %v296
      %v325 = vmul.f32 %v264, %v296
      %v326 = vmul.f32 %v265, %v296
      %v327 = vmul.f32 %v266, %v296
      %v328 = vmul.f32 %v267, %v296
      %v329 = vmul.f32 %v268, %v296
      %v330 = vmul.f32 %v269, %v296
      %v331 = vmul.f32 %v270, %v296
      %v332 = vmul.f32 %v271, %v296
      %v333 = vmul.f32 %v272, %v296
      %v334 = vmul.f32 %v273, %v296
      %v335 = vmul.f32 %v274, %v296
      %v336 = vmul.f32 %v275, %v296
      %v337 = vmul.f32 %v276, %v296
      %v338 = vmul.f32 %v277, %v296
      %v339 = vmul.f32 %v278, %v296
      %v340 = vmul.f32 %v279, %v296
      %v341 = vmul.f32 %v280, %v296
      %v342 = vmul.f32 %v281, %v296
      %v343 = vmul.f32 %v282, %v296
      %v344 = vmul.f32 %v283, %v296
      %v345 = vmul.f32 %v284, %v296
      %v346 = vmul.f32 %v285, %v296
      %v347 = vmul.f32 %v286, %v296
      %v348 = vmul.f32 %v287, %v296
      %v349 = vmul.f32 %v288, %v296
      %v350 = vmul.f32 %v289, %v296
      %v351 = vmul.f32 %v290, %v296
      %v352 = vld [vmem:[%s2] sm:$0x1]
      %v354 = vlaneseq
      %v355 = vshrl.u32 %v354, 7
      %v356 = vsub.s32 0, %v355
      %v357 = vrot.slane %v352, %v356
      %v359 = vadd.f32 %v298, %v357
      %v360 = vadd.f32 %v299, %v357
      %v361 = vadd.f32 %v300, %v357
      %v362 = vadd.f32 %v301, %v357
      %v363 = vadd.f32 %v302, %v357
      %v364 = vadd.f32 %v303, %v357
      %v365 = vadd.f32 %v304, %v357
      %v366 = vadd.f32 %v305, %v357
      %v367 = vadd.f32 %v306, %v357
      %v368 = vadd.f32 %v307, %v357
      %v369 = vadd.f32 %v308, %v357
      %v370 = vadd.f32 %v309, %v357
      %v371 = vadd.f32 %v310, %v357
      %v372 = vadd.f32 %v311, %v357
      %v373 = vadd.f32 %v312, %v357
      %v374 = vadd.f32 %v313, %v357
      %v375 = vadd.f32 %v314, %v357
      %v376 = vadd.f32 %v315, %v357
      %v377 = vadd.f32 %v316, %v357
      %v378 = vadd.f32 %v317, %v357
      %v379 = vadd.f32 %v318, %v357
      %v380 = vadd.f32 %v319, %v357
      %v381 = vadd.f32 %v320, %v357
      %v382 = vadd.f32 %v321, %v357
      %v383 = vadd.f32 %v322, %v357
      %v384 = vadd.f32 %v323, %v357
      %v385 = vadd.f32 %v324, %v357
      %v386 = vadd.f32 %v325, %v357
      %v387 = vadd.f32 %v326, %v357
      %v388 = vadd.f32 %v327, %v357
      %v389 = vadd.f32 %v328, %v357
      %v390 = vadd.f32 %v329, %v357
      %v391 = vadd.f32 %v330, %v357
      %v392 = vadd.f32 %v331, %v357
      %v393 = vadd.f32 %v332, %v357
      %v394 = vadd.f32 %v333, %v357
      %v395 = vadd.f32 %v334, %v357
      %v396 = vadd.f32 %v335, %v357
      %v397 = vadd.f32 %v336, %v357
      %v398 = vadd.f32 %v337, %v357
      %v399 = vadd.f32 %v338, %v357
      %v400 = vadd.f32 %v339, %v357
      %v401 = vadd.f32 %v340, %v357
      %v402 = vadd.f32 %v341, %v357
      %v403 = vadd.f32 %v342, %v357
      %v404 = vadd.f32 %v343, %v357
      %v405 = vadd.f32 %v344, %v357
      %v406 = vadd.f32 %v345, %v357
      %v407 = vadd.f32 %v346, %v357
      %v408 = vadd.f32 %v347, %v357
      %v409 = vadd.f32 %v348, %v357
      %v410 = vadd.f32 %v349, %v357
      %v411 = vadd.f32 %v350, %v357
      %v412 = vadd.f32 %v351, %v357
      %v413 = vmax.f32 %v359, 0.0
      %v414 = vmax.f32 %v360, 0.0
      %v415 = vmax.f32 %v361, 0.0
      %v416 = vmax.f32 %v362, 0.0
      %v417 = vmax.f32 %v363, 0.0
      %v418 = vmax.f32 %v364, 0.0
      %v419 = vmax.f32 %v365, 0.0
      %v420 = vmax.f32 %v366, 0.0
      %v421 = vmax.f32 %v367, 0.0
      %v422 = vmax.f32 %v368, 0.0
      %v423 = vmax.f32 %v369, 0.0
      %v424 = vmax.f32 %v370, 0.0
      %v425 = vmax.f32 %v371, 0.0
      %v426 = vmax.f32 %v372, 0.0
      %v427 = vmax.f32 %v373, 0.0
      %v428 = vmax.f32 %v374, 0.0
      %v429 = vmax.f32 %v375, 0.0
      %v430 = vmax.f32 %v376, 0.0
      %v431 = vmax.f32 %v377, 0.0
      %v432 = vmax.f32 %v378, 0.0
      %v433 = vmax.f32 %v379, 0.0
      %v434 = vmax.f32 %v380, 0.0
      %v435 = vmax.f32 %v381, 0.0
      %v436 = vmax.f32 %v382, 0.0
      %v437 = vmax.f32 %v383, 0.0
      %v438 = vmax.f32 %v384, 0.0
      %v439 = vmax.f32 %v385, 0.0
      %v440 = vmax.f32 %v386, 0.0
      %v441 = vmax.f32 %v387, 0.0
      %v442 = vmax.f32 %v388, 0.0
      %v443 = vmax.f32 %v389, 0.0
      %v444 = vmax.f32 %v390, 0.0
      %v445 = vmax.f32 %v391, 0.0
      %v446 = vmax.f32 %v392, 0.0
      %v447 = vmax.f32 %v393, 0.0
      %v448 = vmax.f32 %v394, 0.0
      %v449 = vmax.f32 %v395, 0.0
      %v450 = vmax.f32 %v396, 0.0
      %v451 = vmax.f32 %v397, 0.0
      %v452 = vmax.f32 %v398, 0.0
      %v453 = vmax.f32 %v399, 0.0
      %v454 = vmax.f32 %v400, 0.0
      %v455 = vmax.f32 %v401, 0.0
      %v456 = vmax.f32 %v402, 0.0
      %v457 = vmax.f32 %v403, 0.0
      %v458 = vmax.f32 %v404, 0.0
      %v459 = vmax.f32 %v405, 0.0
      %v460 = vmax.f32 %v406, 0.0
      %v461 = vmax.f32 %v407, 0.0
      %v462 = vmax.f32 %v408, 0.0
      %v463 = vmax.f32 %v409, 0.0
      %v464 = vmax.f32 %v410, 0.0
      %v465 = vmax.f32 %v411, 0.0
      %v466 = vmax.f32 %v412, 0.0
      %v467 = vlaneseq
      %v468 = vshrl.u32 %v467, 7
      %v469 = vadd.s32 %v468, 8
      %v470 = vadd.s32 %v468, 16
      %vm471 = vcmp.ge.s32.totalorder %v468, 1
      %vm472 = vcmp.ge.s32.totalorder %v469, 1
      %vm473 = vcmp.ge.s32.totalorder %v470, 1
      %vm474 = vmand 0, %vm471
      %vm475 = vmand 0, %vm472
      %vm476 = vmand 0, %vm473
      %vm477 = vmand 1, %vm471
      %vm478 = vmand 1, %vm472
      %vm479 = vmand 1, %vm473
      %vm480 = vcmp.le.s32.totalorder %v468, 16
      %vm481 = vcmp.le.s32.totalorder %v469, 16
      %vm482 = vcmp.le.s32.totalorder %v470, 16
      %vm483 = vmand %vm474, %vm480
      %vm484 = vmand %vm475, %vm481
      %vm485 = vmand %vm476, %vm482
      %vm486 = vmand %vm477, %vm480
      %vm487 = vmand %vm478, %vm481
      %vm488 = vmand %vm479, %vm482
      %v489 = vsel %vm483, %v413, 0.0
      %v490 = vsel %vm484, %v414, 0.0
      %v491 = vsel %vm485, %v415, 0.0
      %v492 = vsel %vm486, %v416, 0.0
      %v493 = vsel %vm487, %v417, 0.0
      %v494 = vsel %vm488, %v418, 0.0
      %v495 = vsel %vm486, %v419, 0.0
      %v496 = vsel %vm487, %v420, 0.0
      %v497 = vsel %vm488, %v421, 0.0
      %v498 = vsel %vm486, %v422, 0.0
      %v499 = vsel %vm487, %v423, 0.0
      %v500 = vsel %vm488, %v424, 0.0
      %v501 = vsel %vm486, %v425, 0.0
      %v502 = vsel %vm487, %v426, 0.0
      %v503 = vsel %vm488, %v427, 0.0
      %v504 = vsel %vm486, %v428, 0.0
      %v505 = vsel %vm487, %v429, 0.0
      %v506 = vsel %vm488, %v430, 0.0
      %v507 = vsel %vm486, %v431, 0.0
      %v508 = vsel %vm487, %v432, 0.0
      %v509 = vsel %vm488, %v433, 0.0
      %v510 = vsel %vm486, %v434, 0.0
      %v511 = vsel %vm487, %v435, 0.0
      %v512 = vsel %vm488, %v436, 0.0
      %v513 = vsel %vm486, %v437, 0.0
      %v514 = vsel %vm487, %v438, 0.0
      %v515 = vsel %vm488, %v439, 0.0
      %v516 = vsel %vm486, %v440, 0.0
      %v517 = vsel %vm487, %v441, 0.0
      %v518 = vsel %vm488, %v442, 0.0
      %v519 = vsel %vm486, %v443, 0.0
      %v520 = vsel %vm487, %v444, 0.0
      %v521 = vsel %vm488, %v445, 0.0
      %v522 = vsel %vm486, %v446, 0.0
      %v523 = vsel %vm487, %v447, 0.0
      %v524 = vsel %vm488, %v448, 0.0
      %v525 = vsel %vm486, %v449, 0.0
      %v526 = vsel %vm487, %v450, 0.0
      %v527 = vsel %vm488, %v451, 0.0
      %v528 = vsel %vm486, %v452, 0.0
      %v529 = vsel %vm487, %v453, 0.0
      %v530 = vsel %vm488, %v454, 0.0
      %v531 = vsel %vm486, %v455, 0.0
      %v532 = vsel %vm487, %v456, 0.0
      %v533 = vsel %vm488, %v457, 0.0
      %v534 = vsel %vm486, %v458, 0.0
      %v535 = vsel %vm487, %v459, 0.0
      %v536 = vsel %vm488, %v460, 0.0
      %v537 = vsel %vm486, %v461, 0.0
      %v538 = vsel %vm487, %v462, 0.0
      %v539 = vsel %vm488, %v463, 0.0
      %v540 = vsel %vm483, %v464, 0.0
      %v541 = vsel %vm484, %v465, 0.0
      %v542 = vsel %vm485, %v466, 0.0
      %vm591 = vcmask 1046528
      %v592 = vrot.slane %v489, 1
      %v593 = vrot.slane %v490, 1
      %v594 = vsel %vm591, %v592, %v593
      %v595 = vrot.slane %v491, 1
      %v596 = vsel %vm591, %v593, %v595
      %v597 = vrot.slane %v492, 1
      %v598 = vrot.slane %v493, 1
      %v599 = vsel %vm591, %v597, %v598
      %v600 = vrot.slane %v494, 1
      %v601 = vsel %vm591, %v598, %v600
      %v602 = vrot.slane %v495, 1
      %v603 = vrot.slane %v496, 1
      %v604 = vsel %vm591, %v602, %v603
      %v605 = vrot.slane %v497, 1
      %v606 = vsel %vm591, %v603, %v605
      %v607 = vrot.slane %v498, 1
      %v608 = vrot.slane %v499, 1
      %v609 = vsel %vm591, %v607, %v608
      %v610 = vrot.slane %v500, 1
      %v611 = vsel %vm591, %v608, %v610
      %v612 = vrot.slane %v501, 1
      %v613 = vrot.slane %v502, 1
      %v614 = vsel %vm591, %v612, %v613
      %v615 = vrot.slane %v503, 1
      %v616 = vsel %vm591, %v613, %v615
      %v617 = vrot.slane %v504, 1
      %v618 = vrot.slane %v505, 1
      %v619 = vsel %vm591, %v617, %v618
      %v620 = vrot.slane %v506, 1
      %v621 = vsel %vm591, %v618, %v620
      %v622 = vrot.slane %v507, 1
      %v623 = vrot.slane %v508, 1
      %v624 = vsel %vm591, %v622, %v623
      %v625 = vrot.slane %v509, 1
      %v626 = vsel %vm591, %v623, %v625
      %v627 = vrot.slane %v510, 1
      %v628 = vrot.slane %v511, 1
      %v629 = vsel %vm591, %v627, %v628
      %v630 = vrot.slane %v512, 1
      %v631 = vsel %vm591, %v628, %v630
      %v632 = vrot.slane %v513, 1
      %v633 = vrot.slane %v514, 1
      %v634 = vsel %vm591, %v632, %v633
      %v635 = vrot.slane %v515, 1
      %v636 = vsel %vm591, %v633, %v635
      %v637 = vrot.slane %v516, 1
      %v638 = vrot.slane %v517, 1
      %v639 = vsel %vm591, %v637, %v638
      %v640 = vrot.slane %v518, 1
      %v641 = vsel %vm591, %v638, %v640
      %v642 = vrot.slane %v519, 1
      %v643 = vrot.slane %v520, 1
      %v644 = vsel %vm591, %v642, %v643
      %v645 = vrot.slane %v521, 1
      %v646 = vsel %vm591, %v643, %v645
      %v647 = vrot.slane %v522, 1
      %v648 = vrot.slane %v523, 1
      %v649 = vsel %vm591, %v647, %v648
      %v650 = vrot.slane %v524, 1
      %v651 = vsel %vm591, %v648, %v650
      %v652 = vrot.slane %v525, 1
      %v653 = vrot.slane %v526, 1
      %v654 = vsel %vm591, %v652, %v653
      %v655 = vrot.slane %v527, 1
      %v656 = vsel %vm591, %v653, %v655
      %v657 = vrot.slane %v528, 1
      %v658 = vrot.slane %v529, 1
      %v659 = vsel %vm591, %v657, %v658
      %v660 = vrot.slane %v530, 1
      %v661 = vsel %vm591, %v658, %v660
      %v662 = vrot.slane %v531, 1
      %v663 = vrot.slane %v532, 1
      %v664 = vsel %vm591, %v662, %v663
      %v665 = vrot.slane %v533, 1
      %v666 = vsel %vm591, %v663, %v665
      %v667 = vrot.slane %v534, 1
      %v668 = vrot.slane %v535, 1
      %v669 = vsel %vm591, %v667, %v668
      %v670 = vrot.slane %v536, 1
      %v671 = vsel %vm591, %v668, %v670
      %672 = vrot.lane.b32.xlu0 %v594, 4
      %v673 = vpop.permute.xlu0 %672
      %674 = vrot.lane.b32.xlu0 %v596, 4
      %v675 = vpop.permute.xlu0 %674
      %676 = vrot.lane.b32.xlu0 %v599, 4
      %v677 = vpop.permute.xlu0 %676
      %678 = vrot.lane.b32.xlu0 %v601, 4
      %v679 = vpop.permute.xlu0 %678
      %680 = vrot.lane.b32.xlu0 %v604, 4
      %v681 = vpop.permute.xlu0 %680
      %682 = vrot.lane.b32.xlu0 %v606, 4
      %v683 = vpop.permute.xlu0 %682
      %684 = vrot.lane.b32.xlu0 %v609, 4
      %v685 = vpop.permute.xlu0 %684
      %686 = vrot.lane.b32.xlu0 %v611, 4
      %v687 = vpop.permute.xlu0 %686
      %688 = vrot.lane.b32.xlu0 %v614, 4
      %v689 = vpop.permute.xlu0 %688
      %690 = vrot.lane.b32.xlu0 %v616, 4
      %v691 = vpop.permute.xlu0 %690
      %692 = vrot.lane.b32.xlu0 %v619, 4
      %v693 = vpop.permute.xlu0 %692
      %694 = vrot.lane.b32.xlu0 %v621, 4
      %v695 = vpop.permute.xlu0 %694
      %696 = vrot.lane.b32.xlu0 %v624, 4
      %v697 = vpop.permute.xlu0 %696
      %698 = vrot.lane.b32.xlu0 %v626, 4
      %v699 = vpop.permute.xlu0 %698
      %700 = vrot.lane.b32.xlu0 %v629, 4
      %v701 = vpop.permute.xlu0 %700
      %702 = vrot.lane.b32.xlu0 %v631, 4
      %v703 = vpop.permute.xlu0 %702
      %704 = vrot.lane.b32.xlu0 %v634, 4
      %v705 = vpop.permute.xlu0 %704
      %706 = vrot.lane.b32.xlu0 %v636, 4
      %v707 = vpop.permute.xlu0 %706
      %708 = vrot.lane.b32.xlu0 %v639, 4
      %v709 = vpop.permute.xlu0 %708
      %710 = vrot.lane.b32.xlu0 %v641, 4
      %v711 = vpop.permute.xlu0 %710
      %712 = vrot.lane.b32.xlu0 %v644, 4
      %v713 = vpop.permute.xlu0 %712
      %714 = vrot.lane.b32.xlu0 %v646, 4
      %v715 = vpop.permute.xlu0 %714
      %716 = vrot.lane.b32.xlu0 %v649, 4
      %v717 = vpop.permute.xlu0 %716
      %718 = vrot.lane.b32.xlu0 %v651, 4
      %v719 = vpop.permute.xlu0 %718
      %720 = vrot.lane.b32.xlu0 %v654, 4
      %v721 = vpop.permute.xlu0 %720
      %722 = vrot.lane.b32.xlu0 %v656, 4
      %v723 = vpop.permute.xlu0 %722
      %724 = vrot.lane.b32.xlu0 %v659, 4
      %v725 = vpop.permute.xlu0 %724
      %726 = vrot.lane.b32.xlu0 %v661, 4
      %v727 = vpop.permute.xlu0 %726
      %728 = vrot.lane.b32.xlu0 %v664, 4
      %v729 = vpop.permute.xlu0 %728
      %730 = vrot.lane.b32.xlu0 %v666, 4
      %v731 = vpop.permute.xlu0 %730
      %732 = vrot.lane.b32.xlu0 %v669, 4
      %v733 = vpop.permute.xlu0 %732
      %734 = vrot.lane.b32.xlu0 %v671, 4
      %v735 = vpop.permute.xlu0 %734
      %vm768 = vcmask 1045504
      %v769 = vrot.slane %v489, 2
      %v770 = vrot.slane %v490, 2
      %v771 = vsel %vm768, %v769, %v770
      %v772 = vrot.slane %v491, 2
      %v773 = vsel %vm768, %v770, %v772
      %v774 = vrot.slane %v492, 2
      %v775 = vrot.slane %v493, 2
      %v776 = vsel %vm768, %v774, %v775
      %v777 = vrot.slane %v494, 2
      %v778 = vsel %vm768, %v775, %v777
      %v779 = vrot.slane %v495, 2
      %v780 = vrot.slane %v496, 2
      %v781 = vsel %vm768, %v779, %v780
      %v782 = vrot.slane %v497, 2
      %v783 = vsel %vm768, %v780, %v782
      %v784 = vrot.slane %v498, 2
      %v785 = vrot.slane %v499, 2
      %v786 = vsel %vm768, %v784, %v785
      %v787 = vrot.slane %v500, 2
      %v788 = vsel %vm768, %v785, %v787
      %v789 = vrot.slane %v501, 2
      %v790 = vrot.slane %v502, 2
      %v791 = vsel %vm768, %v789, %v790
      %v792 = vrot.slane %v503, 2
      %v793 = vsel %vm768, %v790, %v792
      %v794 = vrot.slane %v504, 2
      %v795 = vrot.slane %v505, 2
      %v796 = vsel %vm768, %v794, %v795
      %v797 = vrot.slane %v506, 2
      %v798 = vsel %vm768, %v795, %v797
      %v799 = vrot.slane %v507, 2
      %v800 = vrot.slane %v508, 2
      %v801 = vsel %vm768, %v799, %v800
      %v802 = vrot.slane %v509, 2
      %v803 = vsel %vm768, %v800, %v802
      %v804 = vrot.slane %v510, 2
      %v805 = vrot.slane %v511, 2
      %v806 = vsel %vm768, %v804, %v805
      %v807 = vrot.slane %v512, 2
      %v808 = vsel %vm768, %v805, %v807
      %v809 = vrot.slane %v513, 2
      %v810 = vrot.slane %v514, 2
      %v811 = vsel %vm768, %v809, %v810
      %v812 = vrot.slane %v515, 2
      %v813 = vsel %vm768, %v810, %v812
      %v814 = vrot.slane %v516, 2
      %v815 = vrot.slane %v517, 2
      %v816 = vsel %vm768, %v814, %v815
      %v817 = vrot.slane %v518, 2
      %v818 = vsel %vm768, %v815, %v817
      %v819 = vrot.slane %v519, 2
      %v820 = vrot.slane %v520, 2
      %v821 = vsel %vm768, %v819, %v820
      %v822 = vrot.slane %v521, 2
      %v823 = vsel %vm768, %v820, %v822
      %v824 = vrot.slane %v522, 2
      %v825 = vrot.slane %v523, 2
      %v826 = vsel %vm768, %v824, %v825
      %v827 = vrot.slane %v524, 2
      %v828 = vsel %vm768, %v825, %v827
      %v829 = vrot.slane %v525, 2
      %v830 = vrot.slane %v526, 2
      %v831 = vsel %vm768, %v829, %v830
      %v832 = vrot.slane %v527, 2
      %v833 = vsel %vm768, %v830, %v832
      %v834 = vrot.slane %v528, 2
      %v835 = vrot.slane %v529, 2
      %v836 = vsel %vm768, %v834, %v835
      %v837 = vrot.slane %v530, 2
      %v838 = vsel %vm768, %v835, %v837
      %v839 = vrot.slane %v531, 2
      %v840 = vrot.slane %v532, 2
      %v841 = vsel %vm768, %v839, %v840
      %v842 = vrot.slane %v533, 2
      %v843 = vsel %vm768, %v840, %v842
      %v844 = vrot.slane %v534, 2
      %v845 = vrot.slane %v535, 2
      %v846 = vsel %vm768, %v844, %v845
      %v847 = vrot.slane %v536, 2
      %v848 = vsel %vm768, %v845, %v847
      %849 = vrot.lane.b32.xlu0 %v771, 8
      %v850 = vpop.permute.xlu0 %849
      %851 = vrot.lane.b32.xlu0 %v773, 8
      %v852 = vpop.permute.xlu0 %851
      %853 = vrot.lane.b32.xlu0 %v776, 8
      %v854 = vpop.permute.xlu0 %853
      %855 = vrot.lane.b32.xlu0 %v778, 8
      %v856 = vpop.permute.xlu0 %855
      %857 = vrot.lane.b32.xlu0 %v781, 8
      %v858 = vpop.permute.xlu0 %857
      %859 = vrot.lane.b32.xlu0 %v783, 8
      %v860 = vpop.permute.xlu0 %859
      %861 = vrot.lane.b32.xlu0 %v786, 8
      %v862 = vpop.permute.xlu0 %861
      %863 = vrot.lane.b32.xlu0 %v788, 8
      %v864 = vpop.permute.xlu0 %863
      %865 = vrot.lane.b32.xlu0 %v791, 8
      %v866 = vpop.permute.xlu0 %865
      %867 = vrot.lane.b32.xlu0 %v793, 8
      %v868 = vpop.permute.xlu0 %867
      %869 = vrot.lane.b32.xlu0 %v796, 8
      %v870 = vpop.permute.xlu0 %869
      %871 = vrot.lane.b32.xlu0 %v798, 8
      %v872 = vpop.permute.xlu0 %871
      %873 = vrot.lane.b32.xlu0 %v801, 8
      %v874 = vpop.permute.xlu0 %873
      %875 = vrot.lane.b32.xlu0 %v803, 8
      %v876 = vpop.permute.xlu0 %875
      %877 = vrot.lane.b32.xlu0 %v806, 8
      %v878 = vpop.permute.xlu0 %877
      %879 = vrot.lane.b32.xlu0 %v808, 8
      %v880 = vpop.permute.xlu0 %879
      %881 = vrot.lane.b32.xlu0 %v811, 8
      %v882 = vpop.permute.xlu0 %881
      %883 = vrot.lane.b32.xlu0 %v813, 8
      %v884 = vpop.permute.xlu0 %883
      %885 = vrot.lane.b32.xlu0 %v816, 8
      %v886 = vpop.permute.xlu0 %885
      %887 = vrot.lane.b32.xlu0 %v818, 8
      %v888 = vpop.permute.xlu0 %887
      %889 = vrot.lane.b32.xlu0 %v821, 8
      %v890 = vpop.permute.xlu0 %889
      %891 = vrot.lane.b32.xlu0 %v823, 8
      %v892 = vpop.permute.xlu0 %891
      %893 = vrot.lane.b32.xlu0 %v826, 8
      %v894 = vpop.permute.xlu0 %893
      %895 = vrot.lane.b32.xlu0 %v828, 8
      %v896 = vpop.permute.xlu0 %895
      %897 = vrot.lane.b32.xlu0 %v831, 8
      %v898 = vpop.permute.xlu0 %897
      %899 = vrot.lane.b32.xlu0 %v833, 8
      %v900 = vpop.permute.xlu0 %899
      %901 = vrot.lane.b32.xlu0 %v836, 8
      %v902 = vpop.permute.xlu0 %901
      %903 = vrot.lane.b32.xlu0 %v838, 8
      %v904 = vpop.permute.xlu0 %903
      %905 = vrot.lane.b32.xlu0 %v841, 8
      %v906 = vpop.permute.xlu0 %905
      %907 = vrot.lane.b32.xlu0 %v843, 8
      %v908 = vpop.permute.xlu0 %907
      %909 = vrot.lane.b32.xlu0 %v846, 8
      %v910 = vpop.permute.xlu0 %909
      %911 = vrot.lane.b32.xlu0 %v848, 8
      %v912 = vpop.permute.xlu0 %911
      %947 = vrot.lane.b32.xlu0 %v492, 12
      %v948 = vpop.permute.xlu0 %947
      %949 = vrot.lane.b32.xlu0 %v493, 12
      %v950 = vpop.permute.xlu0 %949
      %951 = vrot.lane.b32.xlu0 %v495, 12
      %v952 = vpop.permute.xlu0 %951
      %953 = vrot.lane.b32.xlu0 %v496, 12
      %v954 = vpop.permute.xlu0 %953
      %955 = vrot.lane.b32.xlu0 %v498, 12
      %v956 = vpop.permute.xlu0 %955
      %957 = vrot.lane.b32.xlu0 %v499, 12
      %v958 = vpop.permute.xlu0 %957
      %959 = vrot.lane.b32.xlu0 %v501, 12
      %v960 = vpop.permute.xlu0 %959
      %961 = vrot.lane.b32.xlu0 %v502, 12
      %v962 = vpop.permute.xlu0 %961
      %963 = vrot.lane.b32.xlu0 %v504, 12
      %v964 = vpop.permute.xlu0 %963
      %965 = vrot.lane.b32.xlu0 %v505, 12
      %v966 = vpop.permute.xlu0 %965
      %967 = vrot.lane.b32.xlu0 %v507, 12
      %v968 = vpop.permute.xlu0 %967
      %969 = vrot.lane.b32.xlu0 %v508, 12
      %v970 = vpop.permute.xlu0 %969
      %971 = vrot.lane.b32.xlu0 %v510, 12
      %v972 = vpop.permute.xlu0 %971
      %973 = vrot.lane.b32.xlu0 %v511, 12
      %v974 = vpop.permute.xlu0 %973
      %975 = vrot.lane.b32.xlu0 %v513, 12
      %v976 = vpop.permute.xlu0 %975
      %977 = vrot.lane.b32.xlu0 %v514, 12
      %v978 = vpop.permute.xlu0 %977
      %979 = vrot.lane.b32.xlu0 %v516, 12
      %v980 = vpop.permute.xlu0 %979
      %981 = vrot.lane.b32.xlu0 %v517, 12
      %v982 = vpop.permute.xlu0 %981
      %983 = vrot.lane.b32.xlu0 %v519, 12
      %v984 = vpop.permute.xlu0 %983
      %985 = vrot.lane.b32.xlu0 %v520, 12
      %v986 = vpop.permute.xlu0 %985
      %987 = vrot.lane.b32.xlu0 %v522, 12
      %v988 = vpop.permute.xlu0 %987
      %989 = vrot.lane.b32.xlu0 %v523, 12
      %v990 = vpop.permute.xlu0 %989
      %991 = vrot.lane.b32.xlu0 %v525, 12
      %v992 = vpop.permute.xlu0 %991
      %993 = vrot.lane.b32.xlu0 %v526, 12
      %v994 = vpop.permute.xlu0 %993
      %995 = vrot.lane.b32.xlu0 %v528, 12
      %v996 = vpop.permute.xlu0 %995
      %997 = vrot.lane.b32.xlu0 %v529, 12
      %v998 = vpop.permute.xlu0 %997
      %999 = vrot.lane.b32.xlu0 %v531, 12
      %v1000 = vpop.permute.xlu0 %999
      %1001 = vrot.lane.b32.xlu0 %v532, 12
      %v1002 = vpop.permute.xlu0 %1001
      %1003 = vrot.lane.b32.xlu0 %v534, 12
      %v1004 = vpop.permute.xlu0 %1003
      %1005 = vrot.lane.b32.xlu0 %v535, 12
      %v1006 = vpop.permute.xlu0 %1005
      %1007 = vrot.lane.b32.xlu0 %v537, 12
      %v1008 = vpop.permute.xlu0 %1007
      %1009 = vrot.lane.b32.xlu0 %v538, 12
      %v1010 = vpop.permute.xlu0 %1009
      %v1044 = vrot.slane %v537, 1
      %v1045 = vrot.slane %v538, 1
      %v1046 = vsel %vm591, %v1044, %v1045
      %v1047 = vrot.slane %v539, 1
      %v1048 = vsel %vm591, %v1045, %v1047
      %1049 = vrot.lane.b32.xlu0 %v599, 16
      %v1050 = vpop.permute.xlu0 %1049
      %1051 = vrot.lane.b32.xlu0 %v601, 16
      %v1052 = vpop.permute.xlu0 %1051
      %1053 = vrot.lane.b32.xlu0 %v604, 16
      %v1054 = vpop.permute.xlu0 %1053
      %1055 = vrot.lane.b32.xlu0 %v606, 16
      %v1056 = vpop.permute.xlu0 %1055
      %1057 = vrot.lane.b32.xlu0 %v609, 16
      %v1058 = vpop.permute.xlu0 %1057
      %1059 = vrot.lane.b32.xlu0 %v611, 16
      %v1060 = vpop.permute.xlu0 %1059
      %1061 = vrot.lane.b32.xlu0 %v614, 16
      %v1062 = vpop.permute.xlu0 %1061
      %1063 = vrot.lane.b32.xlu0 %v616, 16
      %v1064 = vpop.permute.xlu0 %1063
      %1065 = vrot.lane.b32.xlu0 %v619, 16
      %v1066 = vpop.permute.xlu0 %1065
      %1067 = vrot.lane.b32.xlu0 %v621, 16
      %v1068 = vpop.permute.xlu0 %1067
      %1069 = vrot.lane.b32.xlu0 %v624, 16
      %v1070 = vpop.permute.xlu0 %1069
      %1071 = vrot.lane.b32.xlu0 %v626, 16
      %v1072 = vpop.permute.xlu0 %1071
      %1073 = vrot.lane.b32.xlu0 %v629, 16
      %v1074 = vpop.permute.xlu0 %1073
      %1075 = vrot.lane.b32.xlu0 %v631, 16
      %v1076 = vpop.permute.xlu0 %1075
      %1077 = vrot.lane.b32.xlu0 %v634, 16
      %v1078 = vpop.permute.xlu0 %1077
      %1079 = vrot.lane.b32.xlu0 %v636, 16
      %v1080 = vpop.permute.xlu0 %1079
      %1081 = vrot.lane.b32.xlu0 %v639, 16
      %v1082 = vpop.permute.xlu0 %1081
      %1083 = vrot.lane.b32.xlu0 %v641, 16
      %v1084 = vpop.permute.xlu0 %1083
      %1085 = vrot.lane.b32.xlu0 %v644, 16
      %v1086 = vpop.permute.xlu0 %1085
      %1087 = vrot.lane.b32.xlu0 %v646, 16
      %v1088 = vpop.permute.xlu0 %1087
      %1089 = vrot.lane.b32.xlu0 %v649, 16
      %v1090 = vpop.permute.xlu0 %1089
      %1091 = vrot.lane.b32.xlu0 %v651, 16
      %v1092 = vpop.permute.xlu0 %1091
      %1093 = vrot.lane.b32.xlu0 %v654, 16
      %v1094 = vpop.permute.xlu0 %1093
      %1095 = vrot.lane.b32.xlu0 %v656, 16
      %v1096 = vpop.permute.xlu0 %1095
      %1097 = vrot.lane.b32.xlu0 %v659, 16
      %v1098 = vpop.permute.xlu0 %1097
      %1099 = vrot.lane.b32.xlu0 %v661, 16
      %v1100 = vpop.permute.xlu0 %1099
      %1101 = vrot.lane.b32.xlu0 %v664, 16
      %v1102 = vpop.permute.xlu0 %1101
      %1103 = vrot.lane.b32.xlu0 %v666, 16
      %v1104 = vpop.permute.xlu0 %1103
      %1105 = vrot.lane.b32.xlu0 %v669, 16
      %v1106 = vpop.permute.xlu0 %1105
      %1107 = vrot.lane.b32.xlu0 %v671, 16
      %v1108 = vpop.permute.xlu0 %1107
      %1109 = vrot.lane.b32.xlu0 %v1046, 16
      %v1110 = vpop.permute.xlu0 %1109
      %1111 = vrot.lane.b32.xlu0 %v1048, 16
      %v1112 = vpop.permute.xlu0 %1111
      %v1145 = vrot.slane %v537, 2
      %v1146 = vrot.slane %v538, 2
      %v1147 = vsel %vm768, %v1145, %v1146
      %v1148 = vrot.slane %v539, 2
      %v1149 = vsel %vm768, %v1146, %v1148
      %1150 = vrot.lane.b32.xlu0 %v776, 20
      %v1151 = vpop.permute.xlu0 %1150
      %1152 = vrot.lane.b32.xlu0 %v778, 20
      %v1153 = vpop.permute.xlu0 %1152
      %1154 = vrot.lane.b32.xlu0 %v781, 20
      %v1155 = vpop.permute.xlu0 %1154
      %1156 = vrot.lane.b32.xlu0 %v783, 20
      %v1157 = vpop.permute.xlu0 %1156
      %1158 = vrot.lane.b32.xlu0 %v786, 20
      %v1159 = vpop.permute.xlu0 %1158
      %1160 = vrot.lane.b32.xlu0 %v788, 20
      %v1161 = vpop.permute.xlu0 %1160
      %1162 = vrot.lane.b32.xlu0 %v791, 20
      %v1163 = vpop.permute.xlu0 %1162
      %1164 = vrot.lane.b32.xlu0 %v793, 20
      %v1165 = vpop.permute.xlu0 %1164
      %1166 = vrot.lane.b32.xlu0 %v796, 20
      %v1167 = vpop.permute.xlu0 %1166
      %1168 = vrot.lane.b32.xlu0 %v798, 20
      %v1169 = vpop.permute.xlu0 %1168
      %1170 = vrot.lane.b32.xlu0 %v801, 20
      %v1171 = vpop.permute.xlu0 %1170
      %1172 = vrot.lane.b32.xlu0 %v803, 20
      %v1173 = vpop.permute.xlu0 %1172
      %1174 = vrot.lane.b32.xlu0 %v806, 20
      %v1175 = vpop.permute.xlu0 %1174
      %1176 = vrot.lane.b32.xlu0 %v808, 20
      %v1177 = vpop.permute.xlu0 %1176
      %1178 = vrot.lane.b32.xlu0 %v811, 20
      %v1179 = vpop.permute.xlu0 %1178
      %1180 = vrot.lane.b32.xlu0 %v813, 20
      %v1181 = vpop.permute.xlu0 %1180
      %1182 = vrot.lane.b32.xlu0 %v816, 20
      %v1183 = vpop.permute.xlu0 %1182
      %1184 = vrot.lane.b32.xlu0 %v818, 20
      %v1185 = vpop.permute.xlu0 %1184
      %1186 = vrot.lane.b32.xlu0 %v821, 20
      %v1187 = vpop.permute.xlu0 %1186
      %1188 = vrot.lane.b32.xlu0 %v823, 20
      %v1189 = vpop.permute.xlu0 %1188
      %1190 = vrot.lane.b32.xlu0 %v826, 20
      %v1191 = vpop.permute.xlu0 %1190
      %1192 = vrot.lane.b32.xlu0 %v828, 20
      %v1193 = vpop.permute.xlu0 %1192
      %1194 = vrot.lane.b32.xlu0 %v831, 20
      %v1195 = vpop.permute.xlu0 %1194
      %1196 = vrot.lane.b32.xlu0 %v833, 20
      %v1197 = vpop.permute.xlu0 %1196
      %1198 = vrot.lane.b32.xlu0 %v836, 20
      %v1199 = vpop.permute.xlu0 %1198
      %1200 = vrot.lane.b32.xlu0 %v838, 20
      %v1201 = vpop.permute.xlu0 %1200
      %1202 = vrot.lane.b32.xlu0 %v841, 20
      %v1203 = vpop.permute.xlu0 %1202
      %1204 = vrot.lane.b32.xlu0 %v843, 20
      %v1205 = vpop.permute.xlu0 %1204
      %1206 = vrot.lane.b32.xlu0 %v846, 20
      %v1207 = vpop.permute.xlu0 %1206
      %1208 = vrot.lane.b32.xlu0 %v848, 20
      %v1209 = vpop.permute.xlu0 %1208
      %1210 = vrot.lane.b32.xlu0 %v1147, 20
      %v1211 = vpop.permute.xlu0 %1210
      %1212 = vrot.lane.b32.xlu0 %v1149, 20
      %v1213 = vpop.permute.xlu0 %1212
      %1248 = vrot.lane.b32.xlu0 %v495, 24
      %v1249 = vpop.permute.xlu0 %1248
      %1250 = vrot.lane.b32.xlu0 %v496, 24
      %v1251 = vpop.permute.xlu0 %1250
      %1252 = vrot.lane.b32.xlu0 %v498, 24
      %v1253 = vpop.permute.xlu0 %1252
      %1254 = vrot.lane.b32.xlu0 %v499, 24
      %v1255 = vpop.permute.xlu0 %1254
      %1256 = vrot.lane.b32.xlu0 %v501, 24
      %v1257 = vpop.permute.xlu0 %1256
      %1258 = vrot.lane.b32.xlu0 %v502, 24
      %v1259 = vpop.permute.xlu0 %1258
      %1260 = vrot.lane.b32.xlu0 %v504, 24
      %v1261 = vpop.permute.xlu0 %1260
      %1262 = vrot.lane.b32.xlu0 %v505, 24
      %v1263 = vpop.permute.xlu0 %1262
      %1264 = vrot.lane.b32.xlu0 %v507, 24
      %v1265 = vpop.permute.xlu0 %1264
      %1266 = vrot.lane.b32.xlu0 %v508, 24
      %v1267 = vpop.permute.xlu0 %1266
      %1268 = vrot.lane.b32.xlu0 %v510, 24
      %v1269 = vpop.permute.xlu0 %1268
      %1270 = vrot.lane.b32.xlu0 %v511, 24
      %v1271 = vpop.permute.xlu0 %1270
      %1272 = vrot.lane.b32.xlu0 %v513, 24
      %v1273 = vpop.permute.xlu0 %1272
      %1274 = vrot.lane.b32.xlu0 %v514, 24
      %v1275 = vpop.permute.xlu0 %1274
      %1276 = vrot.lane.b32.xlu0 %v516, 24
      %v1277 = vpop.permute.xlu0 %1276
      %1278 = vrot.lane.b32.xlu0 %v517, 24
      %v1279 = vpop.permute.xlu0 %1278
      %1280 = vrot.lane.b32.xlu0 %v519, 24
      %v1281 = vpop.permute.xlu0 %1280
      %1282 = vrot.lane.b32.xlu0 %v520, 24
      %v1283 = vpop.permute.xlu0 %1282
      %1284 = vrot.lane.b32.xlu0 %v522, 24
      %v1285 = vpop.permute.xlu0 %1284
      %1286 = vrot.lane.b32.xlu0 %v523, 24
      %v1287 = vpop.permute.xlu0 %1286
      %1288 = vrot.lane.b32.xlu0 %v525, 24
      %v1289 = vpop.permute.xlu0 %1288
      %1290 = vrot.lane.b32.xlu0 %v526, 24
      %v1291 = vpop.permute.xlu0 %1290
      %1292 = vrot.lane.b32.xlu0 %v528, 24
      %v1293 = vpop.permute.xlu0 %1292
      %1294 = vrot.lane.b32.xlu0 %v529, 24
      %v1295 = vpop.permute.xlu0 %1294
      %1296 = vrot.lane.b32.xlu0 %v531, 24
      %v1297 = vpop.permute.xlu0 %1296
      %1298 = vrot.lane.b32.xlu0 %v532, 24
      %v1299 = vpop.permute.xlu0 %1298
      %1300 = vrot.lane.b32.xlu0 %v534, 24
      %v1301 = vpop.permute.xlu0 %1300
      %1302 = vrot.lane.b32.xlu0 %v535, 24
      %v1303 = vpop.permute.xlu0 %1302
      %1304 = vrot.lane.b32.xlu0 %v537, 24
      %v1305 = vpop.permute.xlu0 %1304
      %1306 = vrot.lane.b32.xlu0 %v538, 24
      %v1307 = vpop.permute.xlu0 %1306
      %1308 = vrot.lane.b32.xlu0 %v540, 24
      %v1309 = vpop.permute.xlu0 %1308
      %1310 = vrot.lane.b32.xlu0 %v541, 24
      %v1311 = vpop.permute.xlu0 %1310
      %v1345 = vrot.slane %v540, 1
      %v1346 = vrot.slane %v541, 1
      %v1347 = vsel %vm591, %v1345, %v1346
      %v1348 = vrot.slane %v542, 1
      %v1349 = vsel %vm591, %v1346, %v1348
      %1350 = vrot.lane.b32.xlu0 %v604, 28
      %v1351 = vpop.permute.xlu0 %1350
      %1352 = vrot.lane.b32.xlu0 %v606, 28
      %v1353 = vpop.permute.xlu0 %1352
      %1354 = vrot.lane.b32.xlu0 %v609, 28
      %v1355 = vpop.permute.xlu0 %1354
      %1356 = vrot.lane.b32.xlu0 %v611, 28
      %v1357 = vpop.permute.xlu0 %1356
      %1358 = vrot.lane.b32.xlu0 %v614, 28
      %v1359 = vpop.permute.xlu0 %1358
      %1360 = vrot.lane.b32.xlu0 %v616, 28
      %v1361 = vpop.permute.xlu0 %1360
      %1362 = vrot.lane.b32.xlu0 %v619, 28
      %v1363 = vpop.permute.xlu0 %1362
      %1364 = vrot.lane.b32.xlu0 %v621, 28
      %v1365 = vpop.permute.xlu0 %1364
      %1366 = vrot.lane.b32.xlu0 %v624, 28
      %v1367 = vpop.permute.xlu0 %1366
      %1368 = vrot.lane.b32.xlu0 %v626, 28
      %v1369 = vpop.permute.xlu0 %1368
      %1370 = vrot.lane.b32.xlu0 %v629, 28
      %v1371 = vpop.permute.xlu0 %1370
      %1372 = vrot.lane.b32.xlu0 %v631, 28
      %v1373 = vpop.permute.xlu0 %1372
      %1374 = vrot.lane.b32.xlu0 %v634, 28
      %v1375 = vpop.permute.xlu0 %1374
      %1376 = vrot.lane.b32.xlu0 %v636, 28
      %v1377 = vpop.permute.xlu0 %1376
      %1378 = vrot.lane.b32.xlu0 %v639, 28
      %v1379 = vpop.permute.xlu0 %1378
      %1380 = vrot.lane.b32.xlu0 %v641, 28
      %v1381 = vpop.permute.xlu0 %1380
      %1382 = vrot.lane.b32.xlu0 %v644, 28
      %v1383 = vpop.permute.xlu0 %1382
      %1384 = vrot.lane.b32.xlu0 %v646, 28
      %v1385 = vpop.permute.xlu0 %1384
      %1386 = vrot.lane.b32.xlu0 %v649, 28
      %v1387 = vpop.permute.xlu0 %1386
      %1388 = vrot.lane.b32.xlu0 %v651, 28
      %v1389 = vpop.permute.xlu0 %1388
      %1390 = vrot.lane.b32.xlu0 %v654, 28
      %v1391 = vpop.permute.xlu0 %1390
      %1392 = vrot.lane.b32.xlu0 %v656, 28
      %v1393 = vpop.permute.xlu0 %1392
      %1394 = vrot.lane.b32.xlu0 %v659, 28
      %v1395 = vpop.permute.xlu0 %1394
      %1396 = vrot.lane.b32.xlu0 %v661, 28
      %v1397 = vpop.permute.xlu0 %1396
      %1398 = vrot.lane.b32.xlu0 %v664, 28
      %v1399 = vpop.permute.xlu0 %1398
      %1400 = vrot.lane.b32.xlu0 %v666, 28
      %v1401 = vpop.permute.xlu0 %1400
      %1402 = vrot.lane.b32.xlu0 %v669, 28
      %v1403 = vpop.permute.xlu0 %1402
      %1404 = vrot.lane.b32.xlu0 %v671, 28
      %v1405 = vpop.permute.xlu0 %1404
      %1406 = vrot.lane.b32.xlu0 %v1046, 28
      %v1407 = vpop.permute.xlu0 %1406
      %1408 = vrot.lane.b32.xlu0 %v1048, 28
      %v1409 = vpop.permute.xlu0 %1408
      %1410 = vrot.lane.b32.xlu0 %v1347, 28
      %v1411 = vpop.permute.xlu0 %1410
      %1412 = vrot.lane.b32.xlu0 %v1349, 28
      %v1413 = vpop.permute.xlu0 %1412
      %v1446 = vrot.slane %v540, 2
      %v1447 = vrot.slane %v541, 2
      %v1448 = vsel %vm768, %v1446, %v1447
      %v1449 = vrot.slane %v542, 2
      %v1450 = vsel %vm768, %v1447, %v1449
      %1451 = vrot.lane.b32.xlu0 %v781, 32
      %v1452 = vpop.permute.xlu0 %1451
      %1453 = vrot.lane.b32.xlu0 %v783, 32
      %v1454 = vpop.permute.xlu0 %1453
      %1455 = vrot.lane.b32.xlu0 %v786, 32
      %v1456 = vpop.permute.xlu0 %1455
      %1457 = vrot.lane.b32.xlu0 %v788, 32
      %v1458 = vpop.permute.xlu0 %1457
      %1459 = vrot.lane.b32.xlu0 %v791, 32
      %v1460 = vpop.permute.xlu0 %1459
      %1461 = vrot.lane.b32.xlu0 %v793, 32
      %v1462 = vpop.permute.xlu0 %1461
      %1463 = vrot.lane.b32.xlu0 %v796, 32
      %v1464 = vpop.permute.xlu0 %1463
      %1465 = vrot.lane.b32.xlu0 %v798, 32
      %v1466 = vpop.permute.xlu0 %1465
      %1467 = vrot.lane.b32.xlu0 %v801, 32
      %v1468 = vpop.permute.xlu0 %1467
      %1469 = vrot.lane.b32.xlu0 %v803, 32
      %v1470 = vpop.permute.xlu0 %1469
      %1471 = vrot.lane.b32.xlu0 %v806, 32
      %v1472 = vpop.permute.xlu0 %1471
      %1473 = vrot.lane.b32.xlu0 %v808, 32
      %v1474 = vpop.permute.xlu0 %1473
      %1475 = vrot.lane.b32.xlu0 %v811, 32
      %v1476 = vpop.permute.xlu0 %1475
      %1477 = vrot.lane.b32.xlu0 %v813, 32
      %v1478 = vpop.permute.xlu0 %1477
      %1479 = vrot.lane.b32.xlu0 %v816, 32
      %v1480 = vpop.permute.xlu0 %1479
      %1481 = vrot.lane.b32.xlu0 %v818, 32
      %v1482 = vpop.permute.xlu0 %1481
      %1483 = vrot.lane.b32.xlu0 %v821, 32
      %v1484 = vpop.permute.xlu0 %1483
      %1485 = vrot.lane.b32.xlu0 %v823, 32
      %v1486 = vpop.permute.xlu0 %1485
      %1487 = vrot.lane.b32.xlu0 %v826, 32
      %v1488 = vpop.permute.xlu0 %1487
      %1489 = vrot.lane.b32.xlu0 %v828, 32
      %v1490 = vpop.permute.xlu0 %1489
      %1491 = vrot.lane.b32.xlu0 %v831, 32
      %v1492 = vpop.permute.xlu0 %1491
      %1493 = vrot.lane.b32.xlu0 %v833, 32
      %v1494 = vpop.permute.xlu0 %1493
      %1495 = vrot.lane.b32.xlu0 %v836, 32
      %v1496 = vpop.permute.xlu0 %1495
      %1497 = vrot.lane.b32.xlu0 %v838, 32
      %v1498 = vpop.permute.xlu0 %1497
      %1499 = vrot.lane.b32.xlu0 %v841, 32
      %v1500 = vpop.permute.xlu0 %1499
      %1501 = vrot.lane.b32.xlu0 %v843, 32
      %v1502 = vpop.permute.xlu0 %1501
      %1503 = vrot.lane.b32.xlu0 %v846, 32
      %v1504 = vpop.permute.xlu0 %1503
      %1505 = vrot.lane.b32.xlu0 %v848, 32
      %v1506 = vpop.permute.xlu0 %1505
      %1507 = vrot.lane.b32.xlu0 %v1147, 32
      %v1508 = vpop.permute.xlu0 %1507
      %1509 = vrot.lane.b32.xlu0 %v1149, 32
      %v1510 = vpop.permute.xlu0 %1509
      %1511 = vrot.lane.b32.xlu0 %v1448, 32
      %v1512 = vpop.permute.xlu0 %1511
      %1513 = vrot.lane.b32.xlu0 %v1450, 32
      %v1514 = vpop.permute.xlu0 %1513
      %vm1547 = vcmask 31744
      %v1548 = vsel %vm1547, %v489, %v673
      %v1549 = vsel %vm1547, %v490, %v675
      %v1550 = vsel %vm1547, %v492, %v677
      %v1551 = vsel %vm1547, %v493, %v679
      %v1552 = vsel %vm1547, %v495, %v681
      %v1553 = vsel %vm1547, %v496, %v683
      %v1554 = vsel %vm1547, %v498, %v685
      %v1555 = vsel %vm1547, %v499, %v687
      %v1556 = vsel %vm1547, %v501, %v689
      %v1557 = vsel %vm1547, %v502, %v691
      %v1558 = vsel %vm1547, %v504, %v693
      %v1559 = vsel %vm1547, %v505, %v695
      %v1560 = vsel %vm1547, %v507, %v697
      %v1561 = vsel %vm1547, %v508, %v699
      %v1562 = vsel %vm1547, %v510, %v701
      %v1563 = vsel %vm1547, %v511, %v703
      %v1564 = vsel %vm1547, %v513, %v705
      %v1565 = vsel %vm1547, %v514, %v707
      %v1566 = vsel %vm1547, %v516, %v709
      %v1567 = vsel %vm1547, %v517, %v711
      %v1568 = vsel %vm1547, %v519, %v713
      %v1569 = vsel %vm1547, %v520, %v715
      %v1570 = vsel %vm1547, %v522, %v717
      %v1571 = vsel %vm1547, %v523, %v719
      %v1572 = vsel %vm1547, %v525, %v721
      %v1573 = vsel %vm1547, %v526, %v723
      %v1574 = vsel %vm1547, %v528, %v725
      %v1575 = vsel %vm1547, %v529, %v727
      %v1576 = vsel %vm1547, %v531, %v729
      %v1577 = vsel %vm1547, %v532, %v731
      %v1578 = vsel %vm1547, %v534, %v733
      %v1579 = vsel %vm1547, %v535, %v735
      %vm1580 = vcmask 64512
      %v1581 = vsel %vm1580, %v1548, %v850
      %v1582 = vsel %vm1580, %v1549, %v852
      %v1583 = vsel %vm1580, %v1550, %v854
      %v1584 = vsel %vm1580, %v1551, %v856
      %v1585 = vsel %vm1580, %v1552, %v858
      %v1586 = vsel %vm1580, %v1553, %v860
      %v1587 = vsel %vm1580, %v1554, %v862
      %v1588 = vsel %vm1580, %v1555, %v864
      %v1589 = vsel %vm1580, %v1556, %v866
      %v1590 = vsel %vm1580, %v1557, %v868
      %v1591 = vsel %vm1580, %v1558, %v870
      %v1592 = vsel %vm1580, %v1559, %v872
      %v1593 = vsel %vm1580, %v1560, %v874
      %v1594 = vsel %vm1580, %v1561, %v876
      %v1595 = vsel %vm1580, %v1562, %v878
      %v1596 = vsel %vm1580, %v1563, %v880
      %v1597 = vsel %vm1580, %v1564, %v882
      %v1598 = vsel %vm1580, %v1565, %v884
      %v1599 = vsel %vm1580, %v1566, %v886
      %v1600 = vsel %vm1580, %v1567, %v888
      %v1601 = vsel %vm1580, %v1568, %v890
      %v1602 = vsel %vm1580, %v1569, %v892
      %v1603 = vsel %vm1580, %v1570, %v894
      %v1604 = vsel %vm1580, %v1571, %v896
      %v1605 = vsel %vm1580, %v1572, %v898
      %v1606 = vsel %vm1580, %v1573, %v900
      %v1607 = vsel %vm1580, %v1574, %v902
      %v1608 = vsel %vm1580, %v1575, %v904
      %v1609 = vsel %vm1580, %v1576, %v906
      %v1610 = vsel %vm1580, %v1577, %v908
      %v1611 = vsel %vm1580, %v1578, %v910
      %v1612 = vsel %vm1580, %v1579, %v912
      %vm1613 = vcmask 97280
      %v1614 = vsel %vm1613, %v1581, %v948
      %v1615 = vsel %vm1613, %v1582, %v950
      %v1616 = vsel %vm1613, %v1583, %v952
      %v1617 = vsel %vm1613, %v1584, %v954
      %v1618 = vsel %vm1613, %v1585, %v956
      %v1619 = vsel %vm1613, %v1586, %v958
      %v1620 = vsel %vm1613, %v1587, %v960
      %v1621 = vsel %vm1613, %v1588, %v962
      %v1622 = vsel %vm1613, %v1589, %v964
      %v1623 = vsel %vm1613, %v1590, %v966
      %v1624 = vsel %vm1613, %v1591, %v968
      %v1625 = vsel %vm1613, %v1592, %v970
      %v1626 = vsel %vm1613, %v1593, %v972
      %v1627 = vsel %vm1613, %v1594, %v974
      %v1628 = vsel %vm1613, %v1595, %v976
      %v1629 = vsel %vm1613, %v1596, %v978
      %v1630 = vsel %vm1613, %v1597, %v980
      %v1631 = vsel %vm1613, %v1598, %v982
      %v1632 = vsel %vm1613, %v1599, %v984
      %v1633 = vsel %vm1613, %v1600, %v986
      %v1634 = vsel %vm1613, %v1601, %v988
      %v1635 = vsel %vm1613, %v1602, %v990
      %v1636 = vsel %vm1613, %v1603, %v992
      %v1637 = vsel %vm1613, %v1604, %v994
      %v1638 = vsel %vm1613, %v1605, %v996
      %v1639 = vsel %vm1613, %v1606, %v998
      %v1640 = vsel %vm1613, %v1607, %v1000
      %v1641 = vsel %vm1613, %v1608, %v1002
      %v1642 = vsel %vm1613, %v1609, %v1004
      %v1643 = vsel %vm1613, %v1610, %v1006
      %v1644 = vsel %vm1613, %v1611, %v1008
      %v1645 = vsel %vm1613, %v1612, %v1010
      %vm1646 = vcmask 130048
      %v1647 = vsel %vm1646, %v1614, %v1050
      %v1648 = vsel %vm1646, %v1615, %v1052
      %v1649 = vsel %vm1646, %v1616, %v1054
      %v1650 = vsel %vm1646, %v1617, %v1056
      %v1651 = vsel %vm1646, %v1618, %v1058
      %v1652 = vsel %vm1646, %v1619, %v1060
      %v1653 = vsel %vm1646, %v1620, %v1062
      %v1654 = vsel %vm1646, %v1621, %v1064
      %v1655 = vsel %vm1646, %v1622, %v1066
      %v1656 = vsel %vm1646, %v1623, %v1068
      %v1657 = vsel %vm1646, %v1624, %v1070
      %v1658 = vsel %vm1646, %v1625, %v1072
      %v1659 = vsel %vm1646, %v1626, %v1074
      %v1660 = vsel %vm1646, %v1627, %v1076
      %v1661 = vsel %vm1646, %v1628, %v1078
      %v1662 = vsel %vm1646, %v1629, %v1080
      %v1663 = vsel %vm1646, %v1630, %v1082
      %v1664 = vsel %vm1646, %v1631, %v1084
      %v1665 = vsel %vm1646, %v1632, %v1086
      %v1666 = vsel %vm1646, %v1633, %v1088
      %v1667 = vsel %vm1646, %v1634, %v1090
      %v1668 = vsel %vm1646, %v1635, %v1092
      %v1669 = vsel %vm1646, %v1636, %v1094
      %v1670 = vsel %vm1646, %v1637, %v1096
      %v1671 = vsel %vm1646, %v1638, %v1098
      %v1672 = vsel %vm1646, %v1639, %v1100
      %v1673 = vsel %vm1646, %v1640, %v1102
      %v1674 = vsel %vm1646, %v1641, %v1104
      %v1675 = vsel %vm1646, %v1642, %v1106
      %v1676 = vsel %vm1646, %v1643, %v1108
      %v1677 = vsel %vm1646, %v1644, %v1110
      %v1678 = vsel %vm1646, %v1645, %v1112
      %vm1679 = vcmask 162816
      %v1680 = vsel %vm1679, %v1647, %v1151
      %v1681 = vsel %vm1679, %v1648, %v1153
      %v1682 = vsel %vm1679, %v1649, %v1155
      %v1683 = vsel %vm1679, %v1650, %v1157
      %v1684 = vsel %vm1679, %v1651, %v1159
      %v1685 = vsel %vm1679, %v1652, %v1161
      %v1686 = vsel %vm1679, %v1653, %v1163
      %v1687 = vsel %vm1679, %v1654, %v1165
      %v1688 = vsel %vm1679, %v1655, %v1167
      %v1689 = vsel %vm1679, %v1656, %v1169
      %v1690 = vsel %vm1679, %v1657, %v1171
      %v1691 = vsel %vm1679, %v1658, %v1173
      %v1692 = vsel %vm1679, %v1659, %v1175
      %v1693 = vsel %vm1679, %v1660, %v1177
      %v1694 = vsel %vm1679, %v1661, %v1179
      %v1695 = vsel %vm1679, %v1662, %v1181
      %v1696 = vsel %vm1679, %v1663, %v1183
      %v1697 = vsel %vm1679, %v1664, %v1185
      %v1698 = vsel %vm1679, %v1665, %v1187
      %v1699 = vsel %vm1679, %v1666, %v1189
      %v1700 = vsel %vm1679, %v1667, %v1191
      %v1701 = vsel %vm1679, %v1668, %v1193
      %v1702 = vsel %vm1679, %v1669, %v1195
      %v1703 = vsel %vm1679, %v1670, %v1197
      %v1704 = vsel %vm1679, %v1671, %v1199
      %v1705 = vsel %vm1679, %v1672, %v1201
      %v1706 = vsel %vm1679, %v1673, %v1203
      %v1707 = vsel %vm1679, %v1674, %v1205
      %v1708 = vsel %vm1679, %v1675, %v1207
      %v1709 = vsel %vm1679, %v1676, %v1209
      %v1710 = vsel %vm1679, %v1677, %v1211
      %v1711 = vsel %vm1679, %v1678, %v1213
      %vm1712 = vcmask 195584
      %v1713 = vsel %vm1712, %v1680, %v1249
      %v1714 = vsel %vm1712, %v1681, %v1251
      %v1715 = vsel %vm1712, %v1682, %v1253
      %v1716 = vsel %vm1712, %v1683, %v1255
      %v1717 = vsel %vm1712, %v1684, %v1257
      %v1718 = vsel %vm1712, %v1685, %v1259
      %v1719 = vsel %vm1712, %v1686, %v1261
      %v1720 = vsel %vm1712, %v1687, %v1263
      %v1721 = vsel %vm1712, %v1688, %v1265
      %v1722 = vsel %vm1712, %v1689, %v1267
      %v1723 = vsel %vm1712, %v1690, %v1269
      %v1724 = vsel %vm1712, %v1691, %v1271
      %v1725 = vsel %vm1712, %v1692, %v1273
      %v1726 = vsel %vm1712, %v1693, %v1275
      %v1727 = vsel %vm1712, %v1694, %v1277
      %v1728 = vsel %vm1712, %v1695, %v1279
      %v1729 = vsel %vm1712, %v1696, %v1281
      %v1730 = vsel %vm1712, %v1697, %v1283
      %v1731 = vsel %vm1712, %v1698, %v1285
      %v1732 = vsel %vm1712, %v1699, %v1287
      %v1733 = vsel %vm1712, %v1700, %v1289
      %v1734 = vsel %vm1712, %v1701, %v1291
      %v1735 = vsel %vm1712, %v1702, %v1293
      %v1736 = vsel %vm1712, %v1703, %v1295
      %v1737 = vsel %vm1712, %v1704, %v1297
      %v1738 = vsel %vm1712, %v1705, %v1299
      %v1739 = vsel %vm1712, %v1706, %v1301
      %v1740 = vsel %vm1712, %v1707, %v1303
      %v1741 = vsel %vm1712, %v1708, %v1305
      %v1742 = vsel %vm1712, %v1709, %v1307
      %v1743 = vsel %vm1712, %v1710, %v1309
      %v1744 = vsel %vm1712, %v1711, %v1311
      %vm1745 = vcmask 228352
      %v1746 = vsel %vm1745, %v1713, %v1351
      %v1747 = vsel %vm1745, %v1714, %v1353
      %v1748 = vsel %vm1745, %v1715, %v1355
      %v1749 = vsel %vm1745, %v1716, %v1357
      %v1750 = vsel %vm1745, %v1717, %v1359
      %v1751 = vsel %vm1745, %v1718, %v1361
      %v1752 = vsel %vm1745, %v1719, %v1363
      %v1753 = vsel %vm1745, %v1720, %v1365
      %v1754 = vsel %vm1745, %v1721, %v1367
      %v1755 = vsel %vm1745, %v1722, %v1369
      %v1756 = vsel %vm1745, %v1723, %v1371
      %v1757 = vsel %vm1745, %v1724, %v1373
      %v1758 = vsel %vm1745, %v1725, %v1375
      %v1759 = vsel %vm1745, %v1726, %v1377
      %v1760 = vsel %vm1745, %v1727, %v1379
      %v1761 = vsel %vm1745, %v1728, %v1381
      %v1762 = vsel %vm1745, %v1729, %v1383
      %v1763 = vsel %vm1745, %v1730, %v1385
      %v1764 = vsel %vm1745, %v1731, %v1387
      %v1765 = vsel %vm1745, %v1732, %v1389
      %v1766 = vsel %vm1745, %v1733, %v1391
      %v1767 = vsel %vm1745, %v1734, %v1393
      %v1768 = vsel %vm1745, %v1735, %v1395
      %v1769 = vsel %vm1745, %v1736, %v1397
      %v1770 = vsel %vm1745, %v1737, %v1399
      %v1771 = vsel %vm1745, %v1738, %v1401
      %v1772 = vsel %vm1745, %v1739, %v1403
      %v1773 = vsel %vm1745, %v1740, %v1405
      %v1774 = vsel %vm1745, %v1741, %v1407
      %v1775 = vsel %vm1745, %v1742, %v1409
      %v1776 = vsel %vm1745, %v1743, %v1411
      %v1777 = vsel %vm1745, %v1744, %v1413
      %vm1778 = vcmask 261120
      %v1779 = vsel %vm1778, %v1746, %v1452
      %v1780 = vsel %vm1778, %v1747, %v1454
      %v1781 = vsel %vm1778, %v1748, %v1456
      %v1782 = vsel %vm1778, %v1749, %v1458
      %v1783 = vsel %vm1778, %v1750, %v1460
      %v1784 = vsel %vm1778, %v1751, %v1462
      %v1785 = vsel %vm1778, %v1752, %v1464
      %v1786 = vsel %vm1778, %v1753, %v1466
      %v1787 = vsel %vm1778, %v1754, %v1468
      %v1788 = vsel %vm1778, %v1755, %v1470
      %v1789 = vsel %vm1778, %v1756, %v1472
      %v1790 = vsel %vm1778, %v1757, %v1474
      %v1791 = vsel %vm1778, %v1758, %v1476
      %v1792 = vsel %vm1778, %v1759, %v1478
      %v1793 = vsel %vm1778, %v1760, %v1480
      %v1794 = vsel %vm1778, %v1761, %v1482
      %v1795 = vsel %vm1778, %v1762, %v1484
      %v1796 = vsel %vm1778, %v1763, %v1486
      %v1797 = vsel %vm1778, %v1764, %v1488
      %v1798 = vsel %vm1778, %v1765, %v1490
      %v1799 = vsel %vm1778, %v1766, %v1492
      %v1800 = vsel %vm1778, %v1767, %v1494
      %v1801 = vsel %vm1778, %v1768, %v1496
      %v1802 = vsel %vm1778, %v1769, %v1498
      %v1803 = vsel %vm1778, %v1770, %v1500
      %v1804 = vsel %vm1778, %v1771, %v1502
      %v1805 = vsel %vm1778, %v1772, %v1504
      %v1806 = vsel %vm1778, %v1773, %v1506
      %v1807 = vsel %vm1778, %v1774, %v1508
      %v1808 = vsel %vm1778, %v1775, %v1510
      %v1809 = vsel %vm1778, %v1776, %v1512
      %v1810 = vsel %vm1778, %v1777, %v1514
      %v1811 = vpack.c.bf16 %v1780, %v1779
      %v1812 = vpack.c.bf16 %v1782, %v1781
      %v1813 = vpack.c.bf16 %v1784, %v1783
      %v1814 = vpack.c.bf16 %v1786, %v1785
      %v1815 = vpack.c.bf16 %v1788, %v1787
      %v1816 = vpack.c.bf16 %v1790, %v1789
      %v1817 = vpack.c.bf16 %v1792, %v1791
      %v1818 = vpack.c.bf16 %v1794, %v1793
      %v1819 = vpack.c.bf16 %v1796, %v1795
      %v1820 = vpack.c.bf16 %v1798, %v1797
      %v1821 = vpack.c.bf16 %v1800, %v1799
      %v1822 = vpack.c.bf16 %v1802, %v1801
      %v1823 = vpack.c.bf16 %v1804, %v1803
      %v1824 = vpack.c.bf16 %v1806, %v1805
      %v1825 = vpack.c.bf16 %v1808, %v1807
      %v1826 = vpack.c.bf16 %v1810, %v1809
      %v1827 = vld [vmem:[%s3] sm:$0xf]
      %v1828 = vld [vmem:[%s3 + $0x4] sm:$0xf]
      %v1829 = vld [vmem:[%s3 + $0x8] sm:$0xf]
      %v1830 = vld [vmem:[%s3 + $0xc] sm:$0xf]
      %v1831 = vld [vmem:[%s3 + $0x10] sm:$0x3]
      %v1837 = vunpack.c.l.b16 %v1827
      %v1838 = vunpack.c.l.b16 %v1828
      %v1839 = vunpack.c.l.b16 %v1829
      %v1840 = vunpack.c.l.b16 %v1830
      %v1841 = vunpack.c.l.b16 %v1831
      %v1842 = vpack.c.b16 %v1838, %v1837
      %v1843 = vpack.c.b16 %v1840, %v1839
      %v1844 = vpack.c.b16 %v1841, %v1841
      %vm1847 = vcmask 293888
      %v1849 = vsel %vm1847, %v1811, 0
      %v1852 = vsel %vm1847, %v1812, 0
      %v1855 = vsel %vm1847, %v1813, 0
      %v1858 = vsel %vm1847, %v1814, 0
      %v1861 = vsel %vm1847, %v1815, 0
      %v1864 = vsel %vm1847, %v1816, 0
      %v1867 = vsel %vm1847, %v1817, 0
      %v1870 = vsel %vm1847, %v1818, 0
      %v1873 = vsel %vm1847, %v1819, 0
      %v1876 = vsel %vm1847, %v1820, 0
      %v1879 = vsel %vm1847, %v1821, 0
      %v1882 = vsel %vm1847, %v1822, 0
      %v1885 = vsel %vm1847, %v1823, 0
      %v1888 = vsel %vm1847, %v1824, 0
      %v1891 = vsel %vm1847, %v1825, 0
      %v1894 = vsel %vm1847, %v1826, 0
      %vm1896 = vcmask 1041408
      %v1898 = vsel %vm1896, %v1844, 0
      %1900 = vmatprep.subr.bf16.mxu0 0
      %1901 = vmatpush1.bf16.msra.mxu0 %v1842
      %1902 = vmatprep.subr.bf16.mxu0 0
      %1903 = vmatpush1.bf16.msra.mxu0 %v1843
      %1904 = vmatprep.subr.bf16.mxu0 0
      %1905 = vmatpush1.bf16.msra.mxu0 %v1898
      %1906 = vmatprep.subr.bf16.mxu0 0
      %1907 = vmatpush1.bf16.msra.mxu0 0
      %1908 = vmatprep.subr.bf16.mxu0 0
      %1909 = vmatpush1.bf16.msra.mxu0 0
      %1910 = vmatprep.subr.bf16.mxu0 0
      %1911 = vmatpush1.bf16.msra.mxu0 0
      %1912 = vmatprep.subr.bf16.mxu0 0
      %1913 = vmatpush1.bf16.msra.mxu0 0
      %1914 = vmatprep.subr.bf16.mxu0 0
      %1915 = vmatpush1.bf16.msra.mxu0 0
      %1916 = vmatprep.subr.bf16.mxu0 0
      %1917 = vmatpush1.bf16.msra.mxu0 0
      %1918 = vmatprep.subr.bf16.mxu0 0
      %1919 = vmatpush1.bf16.msra.mxu0 0
      %1920 = vmatprep.subr.bf16.mxu0 0
      %1921 = vmatpush1.bf16.msra.mxu0 0
      %1922 = vmatprep.subr.bf16.mxu0 0
      %1923 = vmatpush1.bf16.msra.mxu0 0
      %1924 = vmatprep.subr.bf16.mxu0 0
      %1925 = vmatpush1.bf16.msra.mxu0 0
      %1926 = vmatprep.subr.bf16.mxu0 0
      %1927 = vmatpush1.bf16.msra.mxu0 0
      %1928 = vmatprep.subr.bf16.mxu0 0
      %1929 = vmatpush1.bf16.msra.mxu0 0
      %1930 = vmatprep.subr.bf16.mxu0 0
      %1931 = vmatpush1.bf16.msra.mxu0 0
      %1932 = vmatprep.mubr.bf16.mxu0 0
      %1933 = vmatmul.mubr.bf16.gmra.mrb[0].mxu0 %v1849
      %v1934 = vpop.f32.mrb[0].mxu0
      %v1935 = vadd.f32 0.0, %v1934
      %v1936 = vpop.f32.mrb[0].mxu0
      %v1937 = vpop.f32.mrb[0].mxu0
      %v1938 = vadd.f32 0.0, %v1937
      %v1939 = vpop.f32.mrb[0].mxu0
      %1940 = vmatprep.mubr.bf16.mxu0 0
      %1941 = vmatmul.mubr.bf16.gmra.mrb[0].mxu0 %v1852
      %v1942 = vpop.f32.mrb[0].mxu0
      %v1943 = vadd.f32 0.0, %v1942
      %v1944 = vpop.f32.mrb[0].mxu0
      %v1945 = vpop.f32.mrb[0].mxu0
      %v1946 = vadd.f32 0.0, %v1945
      %v1947 = vpop.f32.mrb[0].mxu0
      %1948 = vmatprep.mubr.bf16.mxu0 0
      %1949 = vmatmul.mubr.bf16.gmra.mrb[0].mxu0 %v1855
      %v1950 = vpop.f32.mrb[0].mxu0
      %v1951 = vadd.f32 0.0, %v1950
      %v1952 = vpop.f32.mrb[0].mxu0
      %v1953 = vpop.f32.mrb[0].mxu0
      %v1954 = vadd.f32 0.0, %v1953
      %v1955 = vpop.f32.mrb[0].mxu0
      %1956 = vmatprep.mubr.bf16.mxu0 0
      %1957 = vmatmul.mubr.bf16.gmra.mrb[0].mxu0 %v1858
      %v1958 = vpop.f32.mrb[0].mxu0
      %v1959 = vadd.f32 0.0, %v1958
      %v1960 = vpop.f32.mrb[0].mxu0
      %v1961 = vpop.f32.mrb[0].mxu0
      %v1962 = vadd.f32 0.0, %v1961
      %v1963 = vpop.f32.mrb[0].mxu0
      %1964 = vmatprep.mubr.bf16.mxu0 0
      %1965 = vmatmul.mubr.bf16.gmra.mrb[0].mxu0 %v1861
      %v1966 = vpop.f32.mrb[0].mxu0
      %v1967 = vadd.f32 0.0, %v1966
      %v1968 = vpop.f32.mrb[0].mxu0
      %v1969 = vpop.f32.mrb[0].mxu0
      %v1970 = vadd.f32 0.0, %v1969
      %v1971 = vpop.f32.mrb[0].mxu0
      %1972 = vmatprep.mubr.bf16.mxu0 0
      %1973 = vmatmul.mubr.bf16.gmra.mrb[0].mxu0 %v1864
      %v1974 = vpop.f32.mrb[0].mxu0
      %v1975 = vadd.f32 0.0, %v1974
      %v1976 = vpop.f32.mrb[0].mxu0
      %v1977 = vpop.f32.mrb[0].mxu0
      %v1978 = vadd.f32 0.0, %v1977
      %v1979 = vpop.f32.mrb[0].mxu0
      %1980 = vmatprep.mubr.bf16.mxu0 0
      %1981 = vmatmul.mubr.bf16.gmra.mrb[0].mxu0 %v1867
      %v1982 = vpop.f32.mrb[0].mxu0
      %v1983 = vadd.f32 0.0, %v1982
      %v1984 = vpop.f32.mrb[0].mxu0
      %v1985 = vpop.f32.mrb[0].mxu0
      %v1986 = vadd.f32 0.0, %v1985
      %v1987 = vpop.f32.mrb[0].mxu0
      %1988 = vmatprep.mubr.bf16.mxu0 0
      %1989 = vmatmul.mubr.bf16.gmra.mrb[0].mxu0 %v1870
      %v1990 = vpop.f32.mrb[0].mxu0
      %v1991 = vadd.f32 0.0, %v1990
      %v1992 = vpop.f32.mrb[0].mxu0
      %v1993 = vpop.f32.mrb[0].mxu0
      %v1994 = vadd.f32 0.0, %v1993
      %v1995 = vpop.f32.mrb[0].mxu0
      %1996 = vmatprep.mubr.bf16.mxu0 0
      %1997 = vmatmul.mubr.bf16.gmra.mrb[0].mxu0 %v1873
      %v1998 = vpop.f32.mrb[0].mxu0
      %v1999 = vadd.f32 0.0, %v1998
      %v2000 = vpop.f32.mrb[0].mxu0
      %v2001 = vpop.f32.mrb[0].mxu0
      %v2002 = vadd.f32 0.0, %v2001
      %v2003 = vpop.f32.mrb[0].mxu0
      %2004 = vmatprep.mubr.bf16.mxu0 0
      %2005 = vmatmul.mubr.bf16.gmra.mrb[0].mxu0 %v1876
      %v2006 = vpop.f32.mrb[0].mxu0
      %v2007 = vadd.f32 0.0, %v2006
      %v2008 = vpop.f32.mrb[0].mxu0
      %v2009 = vpop.f32.mrb[0].mxu0
      %v2010 = vadd.f32 0.0, %v2009
      %v2011 = vpop.f32.mrb[0].mxu0
      %2012 = vmatprep.mubr.bf16.mxu0 0
      %2013 = vmatmul.mubr.bf16.gmra.mrb[0].mxu0 %v1879
      %v2014 = vpop.f32.mrb[0].mxu0
      %v2015 = vadd.f32 0.0, %v2014
      %v2016 = vpop.f32.mrb[0].mxu0
      %v2017 = vpop.f32.mrb[0].mxu0
      %v2018 = vadd.f32 0.0, %v2017
      %v2019 = vpop.f32.mrb[0].mxu0
      %2020 = vmatprep.mubr.bf16.mxu0 0
      %2021 = vmatmul.mubr.bf16.gmra.mrb[0].mxu0 %v1882
      %v2022 = vpop.f32.mrb[0].mxu0
      %v2023 = vadd.f32 0.0, %v2022
      %v2024 = vpop.f32.mrb[0].mxu0
      %v2025 = vpop.f32.mrb[0].mxu0
      %v2026 = vadd.f32 0.0, %v2025
      %v2027 = vpop.f32.mrb[0].mxu0
      %2028 = vmatprep.mubr.bf16.mxu0 0
      %2029 = vmatmul.mubr.bf16.gmra.mrb[0].mxu0 %v1885
      %v2030 = vpop.f32.mrb[0].mxu0
      %v2031 = vadd.f32 0.0, %v2030
      %v2032 = vpop.f32.mrb[0].mxu0
      %v2033 = vpop.f32.mrb[0].mxu0
      %v2034 = vadd.f32 0.0, %v2033
      %v2035 = vpop.f32.mrb[0].mxu0
      %2036 = vmatprep.mubr.bf16.mxu0 0
      %2037 = vmatmul.mubr.bf16.gmra.mrb[0].mxu0 %v1888
      %v2038 = vpop.f32.mrb[0].mxu0
      %v2039 = vadd.f32 0.0, %v2038
      %v2040 = vpop.f32.mrb[0].mxu0
      %v2041 = vpop.f32.mrb[0].mxu0
      %v2042 = vadd.f32 0.0, %v2041
      %v2043 = vpop.f32.mrb[0].mxu0
      %2044 = vmatprep.mubr.bf16.mxu0 0
      %2045 = vmatmul.mubr.bf16.gmra.mrb[0].mxu0 %v1891
      %v2046 = vpop.f32.mrb[0].mxu0
      %v2047 = vadd.f32 0.0, %v2046
      %v2048 = vpop.f32.mrb[0].mxu0
      %v2049 = vpop.f32.mrb[0].mxu0
      %v2050 = vadd.f32 0.0, %v2049
      %v2051 = vpop.f32.mrb[0].mxu0
      %2052 = vmatprep.mubr.bf16.mxu0 0
      %2053 = vmatmul.mubr.bf16.gmra.mrb[0].mxu0 %v1894
      %v2054 = vpop.f32.mrb[0].mxu0
      %v2055 = vadd.f32 0.0, %v2054
      %v2056 = vpop.f32.mrb[0].mxu0
      %v2057 = vpop.f32.mrb[0].mxu0
      %v2058 = vadd.f32 0.0, %v2057
      %v2059 = vpop.f32.mrb[0].mxu0
      %2060 = vdwg.mxu0
      %v2061 = vsel %vm1547, %v1935, 0.0
      %v2062 = vsel %vm1547, %v1938, 0.0
      %v2063 = vadd.f32 %v2061, %v2062
      %v2064 = vsel %vm1547, %v1943, 0.0
      %v2065 = vadd.f32 %v2063, %v2064
      %v2066 = vsel %vm1547, %v1946, 0.0
      %v2067 = vadd.f32 %v2065, %v2066
      %v2068 = vsel %vm1547, %v1951, 0.0
      %v2069 = vadd.f32 %v2067, %v2068
      %v2070 = vsel %vm1547, %v1954, 0.0
      %v2071 = vadd.f32 %v2069, %v2070
      %v2072 = vsel %vm1547, %v1959, 0.0
      %v2073 = vadd.f32 %v2071, %v2072
      %v2074 = vsel %vm1547, %v1962, 0.0
      %v2075 = vadd.f32 %v2073, %v2074
      %v2076 = vsel %vm1547, %v1967, 0.0
      %v2077 = vadd.f32 %v2075, %v2076
      %v2078 = vsel %vm1547, %v1970, 0.0
      %v2079 = vadd.f32 %v2077, %v2078
      %v2080 = vsel %vm1547, %v1975, 0.0
      %v2081 = vadd.f32 %v2079, %v2080
      %v2082 = vsel %vm1547, %v1978, 0.0
      %v2083 = vadd.f32 %v2081, %v2082
      %v2084 = vsel %vm1547, %v1983, 0.0
      %v2085 = vadd.f32 %v2083, %v2084
      %v2086 = vsel %vm1547, %v1986, 0.0
      %v2087 = vadd.f32 %v2085, %v2086
      %v2088 = vsel %vm1547, %v1991, 0.0
      %v2089 = vadd.f32 %v2087, %v2088
      %v2090 = vsel %vm1547, %v1994, 0.0
      %v2091 = vadd.f32 %v2089, %v2090
      %v2092 = vsel %vm1547, %v1999, 0.0
      %v2093 = vadd.f32 %v2091, %v2092
      %v2094 = vsel %vm1547, %v2002, 0.0
      %v2095 = vadd.f32 %v2093, %v2094
      %v2096 = vsel %vm1547, %v2007, 0.0
      %v2097 = vadd.f32 %v2095, %v2096
      %v2098 = vsel %vm1547, %v2010, 0.0
      %v2099 = vadd.f32 %v2097, %v2098
      %v2100 = vsel %vm1547, %v2015, 0.0
      %v2101 = vadd.f32 %v2099, %v2100
      %v2102 = vsel %vm1547, %v2018, 0.0
      %v2103 = vadd.f32 %v2101, %v2102
      %v2104 = vsel %vm1547, %v2023, 0.0
      %v2105 = vadd.f32 %v2103, %v2104
      %v2106 = vsel %vm1547, %v2026, 0.0
      %v2107 = vadd.f32 %v2105, %v2106
      %v2108 = vsel %vm1547, %v2031, 0.0
      %v2109 = vadd.f32 %v2107, %v2108
      %v2110 = vsel %vm1547, %v2034, 0.0
      %v2111 = vadd.f32 %v2109, %v2110
      %v2112 = vsel %vm1547, %v2039, 0.0
      %v2113 = vadd.f32 %v2111, %v2112
      %v2114 = vsel %vm1547, %v2042, 0.0
      %v2115 = vadd.f32 %v2113, %v2114
      %v2116 = vsel %vm1547, %v2047, 0.0
      %v2117 = vadd.f32 %v2115, %v2116
      %v2118 = vsel %vm1547, %v2050, 0.0
      %v2119 = vadd.f32 %v2117, %v2118
      %v2120 = vsel %vm1547, %v2055, 0.0
      %v2121 = vadd.f32 %v2119, %v2120
      %v2122 = vsel %vm1547, %v2058, 0.0
      %v2123 = vadd.f32 %v2121, %v2122
      %v2124 = vrot.slane %v2123, 4
      %v2125 = vadd.f32 %v2123, %v2124
      %v2126 = vrot.slane %v2125, 2
      %v2127 = vadd.f32 %v2125, %v2126
      %v2128 = vrot.slane %v2127, 1
      %v2129 = vadd.f32 %v2127, %v2128
      %vm2130 = vcmask 24576
      %2131 = vst.msk [vmem:[%s235] sm:$0x1] %vm2130, %v2129
      %v2132 = vmul.f32 %v1935, %v1935
      %v2133 = vmul.f32 %v1938, %v1938
      %v2134 = vmul.f32 %v1943, %v1943
      %v2135 = vmul.f32 %v1946, %v1946
      %v2136 = vmul.f32 %v1951, %v1951
      %v2137 = vmul.f32 %v1954, %v1954
      %v2138 = vmul.f32 %v1959, %v1959
      %v2139 = vmul.f32 %v1962, %v1962
      %v2140 = vmul.f32 %v1967, %v1967
      %v2141 = vmul.f32 %v1970, %v1970
      %v2142 = vmul.f32 %v1975, %v1975
      %v2143 = vmul.f32 %v1978, %v1978
      %v2144 = vmul.f32 %v1983, %v1983
      %v2145 = vmul.f32 %v1986, %v1986
      %v2146 = vmul.f32 %v1991, %v1991
      %v2147 = vmul.f32 %v1994, %v1994
      %v2148 = vmul.f32 %v1999, %v1999
      %v2149 = vmul.f32 %v2002, %v2002
      %v2150 = vmul.f32 %v2007, %v2007
      %v2151 = vmul.f32 %v2010, %v2010
      %v2152 = vmul.f32 %v2015, %v2015
      %v2153 = vmul.f32 %v2018, %v2018
      %v2154 = vmul.f32 %v2023, %v2023
      %v2155 = vmul.f32 %v2026, %v2026
      %v2156 = vmul.f32 %v2031, %v2031
      %v2157 = vmul.f32 %v2034, %v2034
      %v2158 = vmul.f32 %v2039, %v2039
      %v2159 = vmul.f32 %v2042, %v2042
      %v2160 = vmul.f32 %v2047, %v2047
      %v2161 = vmul.f32 %v2050, %v2050
      %v2162 = vmul.f32 %v2055, %v2055
      %v2163 = vmul.f32 %v2058, %v2058
      %v2164 = vsel %vm1547, %v2132, 0.0
      %v2165 = vsel %vm1547, %v2133, 0.0
      %v2166 = vadd.f32 %v2164, %v2165
      %v2167 = vsel %vm1547, %v2134, 0.0
      %v2168 = vadd.f32 %v2166, %v2167
      %v2169 = vsel %vm1547, %v2135, 0.0
      %v2170 = vadd.f32 %v2168, %v2169
      %v2171 = vsel %vm1547, %v2136, 0.0
      %v2172 = vadd.f32 %v2170, %v2171
      %v2173 = vsel %vm1547, %v2137, 0.0
      %v2174 = vadd.f32 %v2172, %v2173
      %v2175 = vsel %vm1547, %v2138, 0.0
      %v2176 = vadd.f32 %v2174, %v2175
      %v2177 = vsel %vm1547, %v2139, 0.0
      %v2178 = vadd.f32 %v2176, %v2177
      %v2179 = vsel %vm1547, %v2140, 0.0
      %v2180 = vadd.f32 %v2178, %v2179
      %v2181 = vsel %vm1547, %v2141, 0.0
      %v2182 = vadd.f32 %v2180, %v2181
      %v2183 = vsel %vm1547, %v2142, 0.0
      %v2184 = vadd.f32 %v2182, %v2183
      %v2185 = vsel %vm1547, %v2143, 0.0
      %v2186 = vadd.f32 %v2184, %v2185
      %v2187 = vsel %vm1547, %v2144, 0.0
      %v2188 = vadd.f32 %v2186, %v2187
      %v2189 = vsel %vm1547, %v2145, 0.0
      %v2190 = vadd.f32 %v2188, %v2189
      %v2191 = vsel %vm1547, %v2146, 0.0
      %v2192 = vadd.f32 %v2190, %v2191
      %v2193 = vsel %vm1547, %v2147, 0.0
      %v2194 = vadd.f32 %v2192, %v2193
      %v2195 = vsel %vm1547, %v2148, 0.0
      %v2196 = vadd.f32 %v2194, %v2195
      %v2197 = vsel %vm1547, %v2149, 0.0
      %v2198 = vadd.f32 %v2196, %v2197
      %v2199 = vsel %vm1547, %v2150, 0.0
      %v2200 = vadd.f32 %v2198, %v2199
      %v2201 = vsel %vm1547, %v2151, 0.0
      %v2202 = vadd.f32 %v2200, %v2201
      %v2203 = vsel %vm1547, %v2152, 0.0
      %v2204 = vadd.f32 %v2202, %v2203
      %v2205 = vsel %vm1547, %v2153, 0.0
      %v2206 = vadd.f32 %v2204, %v2205
      %v2207 = vsel %vm1547, %v2154, 0.0
      %v2208 = vadd.f32 %v2206, %v2207
      %v2209 = vsel %vm1547, %v2155, 0.0
      %v2210 = vadd.f32 %v2208, %v2209
      %v2211 = vsel %vm1547, %v2156, 0.0
      %v2212 = vadd.f32 %v2210, %v2211
      %v2213 = vsel %vm1547, %v2157, 0.0
      %v2214 = vadd.f32 %v2212, %v2213
      %v2215 = vsel %vm1547, %v2158, 0.0
      %v2216 = vadd.f32 %v2214, %v2215
      %v2217 = vsel %vm1547, %v2159, 0.0
      %v2218 = vadd.f32 %v2216, %v2217
      %v2219 = vsel %vm1547, %v2160, 0.0
      %v2220 = vadd.f32 %v2218, %v2219
      %v2221 = vsel %vm1547, %v2161, 0.0
      %v2222 = vadd.f32 %v2220, %v2221
      %v2223 = vsel %vm1547, %v2162, 0.0
      %v2224 = vadd.f32 %v2222, %v2223
      %v2225 = vsel %vm1547, %v2163, 0.0
      %v2226 = vadd.f32 %v2224, %v2225
      %v2227 = vrot.slane %v2226, 4
      %v2228 = vadd.f32 %v2226, %v2227
      %v2229 = vrot.slane %v2228, 2
      %v2230 = vadd.f32 %v2228, %v2229
      %v2231 = vrot.slane %v2230, 1
      %v2232 = vadd.f32 %v2230, %v2231
      %2233 = vst.msk [vmem:[%s235 + $0x1] sm:$0x1] %vm2130, %v2232
      %2234 = vst.msk [vmem:[%s231] sm:$0xff] %vm1547, %v1935
      %2235 = vst.msk [vmem:[%s231 + $0x8] sm:$0xff] %vm1547, %v1938
      %2236 = vst.msk [vmem:[%s231 + $0x10] sm:$0xff] %vm1547, %v1943
      %2237 = vst.msk [vmem:[%s231 + $0x18] sm:$0xff] %vm1547, %v1946
      %2238 = vst.msk [vmem:[%s231 + $0x20] sm:$0xff] %vm1547, %v1951
      %2239 = vst.msk [vmem:[%s231 + $0x28] sm:$0xff] %vm1547, %v1954
      %2240 = vst.msk [vmem:[%s231 + $0x30] sm:$0xff] %vm1547, %v1959
      %2241 = vst.msk [vmem:[%s231 + $0x38] sm:$0xff] %vm1547, %v1962
      %2242 = vst.msk [vmem:[%s231 + $0x40] sm:$0xff] %vm1547, %v1967
      %2243 = vst.msk [vmem:[%s231 + $0x48] sm:$0xff] %vm1547, %v1970
      %2244 = vst.msk [vmem:[%s231 + $0x50] sm:$0xff] %vm1547, %v1975
      %2245 = vst.msk [vmem:[%s231 + $0x58] sm:$0xff] %vm1547, %v1978
      %2246 = vst.msk [vmem:[%s231 + $0x60] sm:$0xff] %vm1547, %v1983
      %2247 = vst.msk [vmem:[%s231 + $0x68] sm:$0xff] %vm1547, %v1986
      %2248 = vst.msk [vmem:[%s231 + $0x70] sm:$0xff] %vm1547, %v1991
      %2249 = vst.msk [vmem:[%s231 + $0x78] sm:$0xff] %vm1547, %v1994
      %2250 = vst.msk [vmem:[%s231 + $0x80] sm:$0xff] %vm1547, %v1999
      %2251 = vst.msk [vmem:[%s231 + $0x88] sm:$0xff] %vm1547, %v2002
      %2252 = vst.msk [vmem:[%s231 + $0x90] sm:$0xff] %vm1547, %v2007
      %2253 = vst.msk [vmem:[%s231 + $0x98] sm:$0xff] %vm1547, %v2010
      %2254 = vst.msk [vmem:[%s231 + $0xa0] sm:$0xff] %vm1547, %v2015
      %2255 = vst.msk [vmem:[%s231 + $0xa8] sm:$0xff] %vm1547, %v2018
      %2256 = vst.msk [vmem:[%s231 + $0xb0] sm:$0xff] %vm1547, %v2023
      %2257 = vst.msk [vmem:[%s231 + $0xb8] sm:$0xff] %vm1547, %v2026
      %2258 = vst.msk [vmem:[%s231 + $0xc0] sm:$0xff] %vm1547, %v2031
      %2259 = vst.msk [vmem:[%s231 + $0xc8] sm:$0xff] %vm1547, %v2034
      %2260 = vst.msk [vmem:[%s231 + $0xd0] sm:$0xff] %vm1547, %v2039
      %2261 = vst.msk [vmem:[%s231 + $0xd8] sm:$0xff] %vm1547, %v2042
      %2262 = vst.msk [vmem:[%s231 + $0xe0] sm:$0xff] %vm1547, %v2047
      %2263 = vst.msk [vmem:[%s231 + $0xe8] sm:$0xff] %vm1547, %v2050
      %2264 = vst.msk [vmem:[%s231 + $0xf0] sm:$0xff] %vm1547, %v2055
      %2265 = vst.msk [vmem:[%s231 + $0xf8] sm:$0xff] %vm1547, %v2058
      %p2266 = scmp.lt.s32.totalorder %s17, 1
      %s2267 = scalar_select %p2266, %s17, 1
      %s2268 = smul.addr %s2267, 32
      %s2269 = smul.addr %s2268, 8
      %s2270 = scalar_lea.vmem %s4, %s2269
      %p2271 = scmp.lt.s32.totalorder %s17, 1
      %s2272 = scalar_select %p2271, %s17, 1
      %s2273 = smul.addr %s2272, 2
      %s2274 = scalar_lea.vmem %s5, %s2273
      // Predicated region
      $region37: #{basic_block_pallas.4} parent=35 // pred_check
        %p2275 = pneg %p124
      $region38: #{basic_block_pallas.4} parent=35 // pred_check_branch
        %2277 = sbr.rel (%p2275) target = $region40
      $region39: #{basic_block_pallas.4} parent=35 // pred_region
        _
      $region40: #{basic_block_pallas.4} parent=35 // pred_fallthru
        _
      // Predicated region
      $region41: #{basic_block_pallas.4} parent=35 // pred_check
        %p2278 = pneg %p150
      $region42: #{basic_block_pallas.4} parent=35 // pred_check_branch
        %2280 = sbr.rel (%p2278) target = $region44
      $region43: #{basic_block_pallas.4} parent=35 // pred_region
        _
      $region44: #{basic_block_pallas.4} parent=35 // pred_fallthru
        _
    $region36: #{basic_block_pallas.4} parent=5 // pred_fallthru
      _
    %p2281 = scmp.le.s32.totalorder 2, %s12
    // Predicated region
    $region45: #{basic_block_pallas.4} parent=5 // pred_check
      %p2282 = pneg %p2281
    $region46: #{basic_block_pallas.4} parent=5 // pred_check_branch
      %2284 = sbr.rel (%p2282) target = $region48
    $region47: #{basic_block_pallas.4} parent=5 // pred_region
      %s2285 = ssub.s32 %s12, 2
      // Predicated region
      $region49: #{basic_block_pallas.4} parent=47 // pred_check
        %p2286 = pneg %p130
      $region50: #{basic_block_pallas.4} parent=47 // pred_check_branch
        %2288 = sbr.rel (%p2286) target = $region52
      $region51: #{basic_block_pallas.4} parent=47 // pred_region
        %p2289 = scmp.lt.s32.totalorder %s18, 1
        %s2290 = scalar_select %p2289, %s18, 1
        %s2291 = smul.addr %s2290, 32
        %s2292 = smul.addr %s2291, 8
        %s2293 = scalar_lea.vmem %s4, %s2292
      $region52: #{basic_block_pallas.4} parent=47 // pred_fallthru
        _
      // Predicated region
      $region53: #{basic_block_pallas.4} parent=47 // pred_check
        %p2294 = pneg %p156
      $region54: #{basic_block_pallas.4} parent=47 // pred_check_branch
        %2296 = sbr.rel (%p2294) target = $region56
      $region55: #{basic_block_pallas.4} parent=47 // pred_region
        %p2297 = scmp.lt.s32.totalorder %s18, 1
        %s2298 = scalar_select %p2297, %s18, 1
        %s2299 = smul.addr %s2298, 2
        %s2300 = scalar_lea.vmem %s5, %s2299
      $region56: #{basic_block_pallas.4} parent=47 // pred_fallthru
        _
    $region48: #{basic_block_pallas.4} parent=5 // pred_fallthru
      _
  $region6: #{basic_block_pallas.4} parent=0 // loop_footer
    %s16 = sadd.s32 1, %s12
  $region7: #{basic_block_pallas.4} parent=0 // loop_footer_branch
    %11 = sbr.rel target = $region3
  $region8: #{basic_block_pallas.4} parent=0 // loop_exit
    _

</llo_original>
